<compile_context>
chip_gen: v7x
topology: tpu7x:2x2x1
jax: 0.10.0
libtpu: 0.0.40
codegen_flags: <defaults>
</compile_context>

<pallas_src>
from functools import partial

import jax
import jax.numpy as jnp
from jax import lax
from jax.experimental import pallas as pl
from jax.experimental.pallas import tpu as pltpu


# ---------------------------------------------------------------------------
# Fused Pallas kernel: one grid step == one batch element, full forward pass.
# ---------------------------------------------------------------------------
def _make_kernel(is_conv, C, HW):
    def kernel(*refs):
        if is_conv:
            (betas_ref, x_ref, lw_ref, lh_ref, mw_ref, mh_ref,
             w_ref, b_ref, o_ref) = refs
        else:
            betas_ref, x_ref, lw_ref, lh_ref, mw_ref, mh_ref, o_ref = refs
            w_ref = b_ref = None

        f32 = jnp.float32
        xc = x_ref[0]          # (C, HW)   lane-dense carried state
        lw = lw_ref[...]       # (HW, W)   kron(1_{Hx1}, I_W)
        lh = lh_ref[...]       # (HW, H)   kron(I_H, 1_{Wx1})
        mw = mw_ref[...]       # (HW, HW)  kron(I_H, 1_{WxW})   -> delta[h1,h2]
        mh = mh_ref[...]       # (HW, HW)  kron(1_{HxH}, I_W)   -> delta[w1,w2]

        def project(x):
            # Three 1x1 convs fused into one stacked (3C, C) @ (C, HW) matmul.
            if is_conv:
                proj = jnp.dot(w_ref[...], x, preferred_element_type=f32)
                proj = proj + b_ref[...]           # (3C, 1) broadcast over HW
                return proj[:C], proj[C:2 * C], proj[2 * C:]
            return x, x, x

        def softmax_rows(s):
            s = s - jnp.max(s, axis=-1, keepdims=True)
            e = jnp.exp(s)
            # divide -> EUP reciprocal (free slot)
            return e * pl.reciprocal(jnp.sum(e, axis=-1, keepdims=True),
                                     approx=True)

        def pooled_block(x, l, m, beta):
            # width / height attention via Gram pooling (no permutes needed)
            th, ph, g = project(x)
            gram = lax.dot_general(th, ph, (((0,), (0,)), ((), ())),
                                   preferred_element_type=f32)        # (HW,HW)
            s = jnp.dot(
                lax.dot_general(l, gram * m, (((0,), (0,)), ((), ())),
                                preferred_element_type=f32),          # (N, HW)
                l, preferred_element_type=f32)                        # (N, N)
            p = softmax_rows(s)
            e = lax.dot_general(jnp.dot(l, p, preferred_element_type=f32), l,
                                (((1,), (1,)), ((), ())),
                                preferred_element_type=f32) * m       # (HW,HW)
            xt = lax.dot_general(g, e, (((1,), (1,)), ((), ())),
                                 preferred_element_type=f32)          # (C, HW)
            return x + beta * xt

        def channel_block(x, beta):
            th, ph, g = project(x)
            s = lax.dot_general(th, ph, (((1,), (1,)), ((), ())),
                                preferred_element_type=f32)           # (C, C)
            p = softmax_rows(s)
            xt = jnp.dot(p, g, preferred_element_type=f32)            # (C, HW)
            return x + beta * xt

        xc = pooled_block(xc, lw, mw, betas_ref[0])   # vectorAttBlockWidth
        xc = pooled_block(xc, lh, mh, betas_ref[1])   # vectorAttBlockHeight
        xc = channel_block(xc, betas_ref[2])          # vectorAttBlockChannel
        o_ref[0] = xc

    return kernel


def _structural_constants(H, W):
    f32 = jnp.float32
    eye_h = jnp.eye(H, dtype=f32)
    eye_w = jnp.eye(W, dtype=f32)
    lw = jnp.kron(jnp.ones((H, 1), f32), eye_w)       # (HW, W)
    lh = jnp.kron(eye_h, jnp.ones((W, 1), f32))       # (HW, H)
    mw = jnp.kron(eye_h, jnp.ones((W, W), f32))       # (HW, HW)
    mh = jnp.kron(jnp.ones((H, H), f32), eye_w)       # (HW, HW)
    return lw, lh, mw, mh


@partial(jax.jit, static_argnums=(2,))
def full_ele_att_pallas(x, params, is_conv):
    B, C, H, W = x.shape
    HW = H * W
    xc = x.reshape(B, C, HW)                          # free reshape, no permute
    lw, lh, mw, mh = _structural_constants(H, W)
    betas = jnp.stack([params["beta_width"], params["beta_height"],
                       params["beta_channel"]]).astype(jnp.float32)

    args = [betas, xc, lw, lh, mw, mh]
    in_specs = [
        pl.BlockSpec(memory_space=pltpu.MemorySpace.SMEM),          # betas (3,)
        pl.BlockSpec((1, C, HW), lambda b: (b, 0, 0)),              # x
        pl.BlockSpec((HW, W), lambda b: (0, 0)),                    # lw
        pl.BlockSpec((HW, H), lambda b: (0, 0)),                    # lh
        pl.BlockSpec((HW, HW), lambda b: (0, 0)),                   # mw
        pl.BlockSpec((HW, HW), lambda b: (0, 0)),                   # mh
    ]
    if is_conv:
        w_all = jnp.concatenate([params["theta_w"], params["phi_w"],
                                 params["g_w"]], axis=0)            # (3C, C)
        b_all = jnp.concatenate([params["theta_b"], params["phi_b"],
                                 params["g_b"]])[:, None]           # (3C, 1)
        args += [w_all, b_all]
        in_specs += [pl.BlockSpec((3 * C, C), lambda b: (0, 0)),
                     pl.BlockSpec((3 * C, 1), lambda b: (0, 0))]

    out = pl.pallas_call(
        _make_kernel(is_conv, C, HW),
        out_shape=jax.ShapeDtypeStruct((B, C, HW), jnp.float32),
        grid=(B,),
        in_specs=in_specs,
        out_specs=pl.BlockSpec((1, C, HW), lambda b: (b, 0, 0)),
        compiler_params=pltpu.CompilerParams(
            dimension_semantics=("parallel",)),
    )(*args)
    return out.reshape(B, C, H, W)


# ---------------------------------------------------------------------------
# Pure-JAX reference (mirrors the PyTorch module literally).
# ---------------------------------------------------------------------------
def _ref_att(xq, xk, g):
    s = jnp.einsum("bnd,bmd->bnm", xq, xk, precision=lax.Precision.HIGHEST)
    p = jax.nn.softmax(s, axis=-1)
    return jnp.einsum("bnm,bmd->bnd", p, g, precision=lax.Precision.HIGHEST)


def _ref_conv(x, w, b):
    return jnp.einsum("oi,bihw->bohw", w, x,
                      precision=lax.Precision.HIGHEST) + b[None, :, None, None]


def full_ele_att_ref(x, params, is_conv):
    def width(t, p_, g):
        B, C, H, W = g.shape
        to = lambda a: jnp.transpose(a, (0, 3, 2, 1)).reshape(B, W, H * C)
        o = _ref_att(to(t), to(p_), to(g)).reshape(B, W, H, C)
        return jnp.transpose(o, (0, 3, 2, 1))

    def height(t, p_, g):
        B, C, H, W = g.shape
        to = lambda a: jnp.transpose(a, (0, 2, 1, 3)).reshape(B, H, C * W)
        o = _ref_att(to(t), to(p_), to(g)).reshape(B, H, C, W)
        return jnp.transpose(o, (0, 2, 1, 3))

    def channel(t, p_, g):
        B, C, H, W = g.shape
        to = lambda a: a.reshape(B, C, H * W)
        return _ref_att(to(t), to(p_), to(g)).reshape(B, C, H, W)

    blocks = [width, height, channel]
    betas = [params["beta_width"], params["beta_height"], params["beta_channel"]]
    for blk, beta in zip(blocks, betas):
        if is_conv:
            th = _ref_conv(x, params["theta_w"], params["theta_b"])
            ph = _ref_conv(x, params["phi_w"], params["phi_b"])
            g = _ref_conv(x, params["g_w"], params["g_b"])
            xt = blk(th, ph, g)
        else:
            xt = blk(x, x, x)
        x = x + xt * beta
    return x


# ---------------------------------------------------------------------------
# main
# ---------------------------------------------------------------------------
if __name__ == "__main__":
    key = jax.random.PRNGKey(0)
    B, C, H, W = 2, 8, 16, 16

    keys = jax.random.split(key, 8)
    x = jax.random.normal(keys[0], (B, C, H, W), jnp.float32)

    params = {
        "theta_w": 0.1 * jax.random.normal(keys[1], (C, C), jnp.float32),
        "theta_b": 0.1 * jax.random.normal(keys[2], (C,), jnp.float32),
        "phi_w": 0.1 * jax.random.normal(keys[3], (C, C), jnp.float32),
        "phi_b": 0.1 * jax.random.normal(keys[4], (C,), jnp.float32),
        "g_w": 0.1 * jax.random.normal(keys[5], (C, C), jnp.float32),
        "g_b": 0.1 * jax.random.normal(keys[6], (C,), jnp.float32),
        # __init__ sets these to 0.0 (identity forward); non-zero here so the
        # attention / conv paths are actually exercised.
        "beta_width": jnp.float32(0.1),
        "beta_height": jnp.float32(0.2),
        "beta_channel": jnp.float32(0.3),
    }

    ok = True
    for is_conv in (False, True):
        out = jax.block_until_ready(full_ele_att_pallas(x, params, is_conv))
        ref = jax.block_until_ready(full_ele_att_ref(x, params, is_conv))
        err = float(jnp.max(jnp.abs(out - ref)))
        if not (err < 5e-2):
            ok = False
            print(f"mismatch (is_conv={is_conv}): max abs err = {err}")

    if ok:
        print("KERNEL_OK")
</pallas_src>

<mosaic_0001>
module attributes {stable_mosaic.version = 11 : i64} {
  func.func @kernel(%arg0: i32, %arg1: memref<3xf32, #tpu.memory_space<smem>>, %arg2: memref<1x8x256xf32, #tpu.memory_space<vmem>>, %arg3: memref<256x16xf32, #tpu.memory_space<vmem>>, %arg4: memref<256x16xf32, #tpu.memory_space<vmem>>, %arg5: memref<256x256xf32, #tpu.memory_space<vmem>>, %arg6: memref<256x256xf32, #tpu.memory_space<vmem>>, %arg7: memref<1x8x256xf32, #tpu.memory_space<vmem>>) attributes {dimension_semantics = [#tpu.dimension_semantics<parallel>], iteration_bounds = array<i64: 2>, scalar_prefetch = 0 : i64, scratch_operands = 0 : i64, tpu.core_type = #tpu.core_type<tc>, window_params = [{transform_indices = @transform_0, window_bounds = array<i64: 3>}, {transform_indices = @transform_1, window_bounds = array<i64: 1, 8, 256>}, {pipeline_mode = #tpu.pipeline_mode<synchronous>, transform_indices = @transform_2, window_bounds = array<i64: 256, 16>}, {pipeline_mode = #tpu.pipeline_mode<synchronous>, transform_indices = @transform_3, window_bounds = array<i64: 256, 16>}, {pipeline_mode = #tpu.pipeline_mode<synchronous>, transform_indices = @transform_4, window_bounds = array<i64: 256, 256>}, {pipeline_mode = #tpu.pipeline_mode<synchronous>, transform_indices = @transform_5, window_bounds = array<i64: 256, 256>}, {transform_indices = @transform_6, window_bounds = array<i64: 1, 8, 256>}]} {
    %c0 = arith.constant 0 : index
    %c0_0 = arith.constant 0 : index
    %c0_1 = arith.constant 0 : index
    %0 = vector.load %arg2[%c0, %c0_0, %c0_1] : memref<1x8x256xf32, #tpu.memory_space<vmem>>, vector<1x8x256xf32>
    %1 = vector.shape_cast %0 : vector<1x8x256xf32> to vector<8x256xf32>
    %c0_2 = arith.constant 0 : index
    %c0_3 = arith.constant 0 : index
    %2 = vector.load %arg3[%c0_2, %c0_3] : memref<256x16xf32, #tpu.memory_space<vmem>>, vector<256x16xf32>
    %c0_4 = arith.constant 0 : index
    %c0_5 = arith.constant 0 : index
    %3 = vector.load %arg4[%c0_4, %c0_5] : memref<256x16xf32, #tpu.memory_space<vmem>>, vector<256x16xf32>
    %c0_6 = arith.constant 0 : index
    %c0_7 = arith.constant 0 : index
    %4 = vector.load %arg5[%c0_6, %c0_7] : memref<256x256xf32, #tpu.memory_space<vmem>>, vector<256x256xf32>
    %c0_8 = arith.constant 0 : index
    %c0_9 = arith.constant 0 : index
    %5 = vector.load %arg6[%c0_8, %c0_9] : memref<256x256xf32, #tpu.memory_space<vmem>>, vector<256x256xf32>
    %c0_10 = arith.constant 0 : index
    %6 = memref.load %arg1[%c0_10] : memref<3xf32, #tpu.memory_space<smem>>
    %cst = arith.constant dense<0.000000e+00> : vector<256x256xf32>
    %7 = tpu.matmul %1, %1, %cst {dimension_numbers = #tpu.dot_dimension_numbers<[0], [0], [1], [1], [0, 1, 1, 1], [], []>} : vector<8x256xf32>, vector<8x256xf32>, vector<256x256xf32> -> vector<256x256xf32>
    %8 = arith.mulf %7, %4 : vector<256x256xf32>
    %cst_11 = arith.constant dense<0.000000e+00> : vector<16x256xf32>
    %9 = tpu.matmul %2, %8, %cst_11 {dimension_numbers = #tpu.dot_dimension_numbers<[0], [0], [1], [1], [0, 1, 1, 1], [], []>} : vector<256x16xf32>, vector<256x256xf32>, vector<16x256xf32> -> vector<16x256xf32>
    %cst_12 = arith.constant dense<0.000000e+00> : vector<16x16xf32>
    %10 = tpu.matmul %9, %2, %cst_12 {dimension_numbers = #tpu.dot_dimension_numbers<[1], [0], [0], [1], [0, 0, 1, 1], [], []>} : vector<16x256xf32>, vector<256x16xf32>, vector<16x16xf32> -> vector<16x16xf32>
    %cst_13 = arith.constant dense<0xFF800000> : vector<16xf32>
    %11 = vector.multi_reduction <maximumf>, %10, %cst_13 [1] : vector<16x16xf32> to vector<16xf32>
    %12 = vector.shape_cast %11 : vector<16xf32> to vector<16x1xf32>
    %13 = vector.broadcast %12 : vector<16x1xf32> to vector<16x16xf32>
    %14 = arith.subf %10, %13 : vector<16x16xf32>
    %15 = math.exp %14 : vector<16x16xf32>
    %cst_14 = arith.constant dense<0.000000e+00> : vector<16xf32>
    %16 = vector.multi_reduction <add>, %15, %cst_14 [1] : vector<16x16xf32> to vector<16xf32>
    %17 = vector.shape_cast %16 : vector<16xf32> to vector<16x1xf32>
    %18 = tpu.reciprocal %17 {approx = true} : vector<16x1xf32> -> vector<16x1xf32>
    %19 = vector.broadcast %18 : vector<16x1xf32> to vector<16x16xf32>
    %20 = arith.mulf %15, %19 : vector<16x16xf32>
    %cst_15 = arith.constant dense<0.000000e+00> : vector<256x16xf32>
    %21 = tpu.matmul %2, %20, %cst_15 {dimension_numbers = #tpu.dot_dimension_numbers<[1], [0], [0], [1], [0, 0, 1, 1], [], []>} : vector<256x16xf32>, vector<16x16xf32>, vector<256x16xf32> -> vector<256x16xf32>
    %cst_16 = arith.constant dense<0.000000e+00> : vector<256x256xf32>
    %22 = tpu.matmul %21, %2, %cst_16 {dimension_numbers = #tpu.dot_dimension_numbers<[1], [1], [0], [0], [0, 0, 1, 0], [], []>} : vector<256x16xf32>, vector<256x16xf32>, vector<256x256xf32> -> vector<256x256xf32>
    %23 = arith.mulf %22, %4 : vector<256x256xf32>
    %cst_17 = arith.constant dense<0.000000e+00> : vector<8x256xf32>
    %24 = tpu.matmul %1, %23, %cst_17 {dimension_numbers = #tpu.dot_dimension_numbers<[1], [1], [0], [0], [0, 0, 1, 0], [], []>} : vector<8x256xf32>, vector<256x256xf32>, vector<8x256xf32> -> vector<8x256xf32>
    %25 = vector.broadcast %6 : f32 to vector<8x256xf32>
    %26 = arith.mulf %25, %24 : vector<8x256xf32>
    %27 = arith.addf %1, %26 : vector<8x256xf32>
    %c1 = arith.constant 1 : index
    %28 = memref.load %arg1[%c1] : memref<3xf32, #tpu.memory_space<smem>>
    %cst_18 = arith.constant dense<0.000000e+00> : vector<256x256xf32>
    %29 = tpu.matmul %27, %27, %cst_18 {dimension_numbers = #tpu.dot_dimension_numbers<[0], [0], [1], [1], [0, 1, 1, 1], [], []>} : vector<8x256xf32>, vector<8x256xf32>, vector<256x256xf32> -> vector<256x256xf32>
    %30 = arith.mulf %29, %5 : vector<256x256xf32>
    %cst_19 = arith.constant dense<0.000000e+00> : vector<16x256xf32>
    %31 = tpu.matmul %3, %30, %cst_19 {dimension_numbers = #tpu.dot_dimension_numbers<[0], [0], [1], [1], [0, 1, 1, 1], [], []>} : vector<256x16xf32>, vector<256x256xf32>, vector<16x256xf32> -> vector<16x256xf32>
    %cst_20 = arith.constant dense<0.000000e+00> : vector<16x16xf32>
    %32 = tpu.matmul %31, %3, %cst_20 {dimension_numbers = #tpu.dot_dimension_numbers<[1], [0], [0], [1], [0, 0, 1, 1], [], []>} : vector<16x256xf32>, vector<256x16xf32>, vector<16x16xf32> -> vector<16x16xf32>
    %cst_21 = arith.constant dense<0xFF800000> : vector<16xf32>
    %33 = vector.multi_reduction <maximumf>, %32, %cst_21 [1] : vector<16x16xf32> to vector<16xf32>
    %34 = vector.shape_cast %33 : vector<16xf32> to vector<16x1xf32>
    %35 = vector.broadcast %34 : vector<16x1xf32> to vector<16x16xf32>
    %36 = arith.subf %32, %35 : vector<16x16xf32>
    %37 = math.exp %36 : vector<16x16xf32>
    %cst_22 = arith.constant dense<0.000000e+00> : vector<16xf32>
    %38 = vector.multi_reduction <add>, %37, %cst_22 [1] : vector<16x16xf32> to vector<16xf32>
    %39 = vector.shape_cast %38 : vector<16xf32> to vector<16x1xf32>
    %40 = tpu.reciprocal %39 {approx = true} : vector<16x1xf32> -> vector<16x1xf32>
    %41 = vector.broadcast %40 : vector<16x1xf32> to vector<16x16xf32>
    %42 = arith.mulf %37, %41 : vector<16x16xf32>
    %cst_23 = arith.constant dense<0.000000e+00> : vector<256x16xf32>
    %43 = tpu.matmul %3, %42, %cst_23 {dimension_numbers = #tpu.dot_dimension_numbers<[1], [0], [0], [1], [0, 0, 1, 1], [], []>} : vector<256x16xf32>, vector<16x16xf32>, vector<256x16xf32> -> vector<256x16xf32>
    %cst_24 = arith.constant dense<0.000000e+00> : vector<256x256xf32>
    %44 = tpu.matmul %43, %3, %cst_24 {dimension_numbers = #tpu.dot_dimension_numbers<[1], [1], [0], [0], [0, 0, 1, 0], [], []>} : vector<256x16xf32>, vector<256x16xf32>, vector<256x256xf32> -> vector<256x256xf32>
    %45 = arith.mulf %44, %5 : vector<256x256xf32>
    %cst_25 = arith.constant dense<0.000000e+00> : vector<8x256xf32>
    %46 = tpu.matmul %27, %45, %cst_25 {dimension_numbers = #tpu.dot_dimension_numbers<[1], [1], [0], [0], [0, 0, 1, 0], [], []>} : vector<8x256xf32>, vector<256x256xf32>, vector<8x256xf32> -> vector<8x256xf32>
    %47 = vector.broadcast %28 : f32 to vector<8x256xf32>
    %48 = arith.mulf %47, %46 : vector<8x256xf32>
    %49 = arith.addf %27, %48 : vector<8x256xf32>
    %c2 = arith.constant 2 : index
    %50 = memref.load %arg1[%c2] : memref<3xf32, #tpu.memory_space<smem>>
    %cst_26 = arith.constant dense<0.000000e+00> : vector<8x8xf32>
    %51 = tpu.matmul %49, %49, %cst_26 {dimension_numbers = #tpu.dot_dimension_numbers<[1], [1], [0], [0], [0, 0, 1, 0], [], []>} : vector<8x256xf32>, vector<8x256xf32>, vector<8x8xf32> -> vector<8x8xf32>
    %cst_27 = arith.constant dense<0xFF800000> : vector<8xf32>
    %52 = vector.multi_reduction <maximumf>, %51, %cst_27 [1] : vector<8x8xf32> to vector<8xf32>
    %53 = vector.shape_cast %52 : vector<8xf32> to vector<8x1xf32>
    %54 = vector.broadcast %53 : vector<8x1xf32> to vector<8x8xf32>
    %55 = arith.subf %51, %54 : vector<8x8xf32>
    %56 = math.exp %55 : vector<8x8xf32>
    %cst_28 = arith.constant dense<0.000000e+00> : vector<8xf32>
    %57 = vector.multi_reduction <add>, %56, %cst_28 [1] : vector<8x8xf32> to vector<8xf32>
    %58 = vector.shape_cast %57 : vector<8xf32> to vector<8x1xf32>
    %59 = tpu.reciprocal %58 {approx = true} : vector<8x1xf32> -> vector<8x1xf32>
    %60 = vector.broadcast %59 : vector<8x1xf32> to vector<8x8xf32>
    %61 = arith.mulf %56, %60 : vector<8x8xf32>
    %cst_29 = arith.constant dense<0.000000e+00> : vector<8x256xf32>
    %62 = tpu.matmul %61, %49, %cst_29 {dimension_numbers = #tpu.dot_dimension_numbers<[1], [0], [0], [1], [0, 0, 1, 1], [], []>} : vector<8x8xf32>, vector<8x256xf32>, vector<8x256xf32> -> vector<8x256xf32>
    %63 = vector.broadcast %50 : f32 to vector<8x256xf32>
    %64 = arith.mulf %63, %62 : vector<8x256xf32>
    %65 = arith.addf %49, %64 : vector<8x256xf32>
    %c0_30 = arith.constant 0 : index
    %c0_31 = arith.constant 0 : index
    %c0_32 = arith.constant 0 : index
    %66 = vector.load %arg7[%c0_30, %c0_31, %c0_32] : memref<1x8x256xf32, #tpu.memory_space<vmem>>, vector<1x8x256xf32>
    %67 = vector.shape_cast %66 : vector<1x8x256xf32> to vector<8x256xf32>
    %68 = vector.shape_cast %65 : vector<8x256xf32> to vector<1x8x256xf32>
    tpu.vector_store %arg7[%c0_30, %c0_31, %c0_32], %68 {strides = array<i32>} : memref<1x8x256xf32, #tpu.memory_space<vmem>>, vector<1x8x256xf32>,
    return
  }
  func.func @transform_0(%arg0: i32) -> i32 {
    %c0_i32 = arith.constant 0 : i32
    %c0_i32_0 = arith.constant 0 : i32
    return %c0_i32 : i32
  }
  func.func @transform_1(%arg0: i32) -> (i32, i32, i32) {
    %c0_i32 = arith.constant 0 : i32
    %c0_i32_0 = arith.constant 0 : i32
    %c0_i32_1 = arith.constant 0 : i32
    return %arg0, %c0_i32, %c0_i32_0 : i32, i32, i32
  }
  func.func @transform_2(%arg0: i32) -> (i32, i32) {
    %c0_i32 = arith.constant 0 : i32
    %c0_i32_0 = arith.constant 0 : i32
    %c0_i32_1 = arith.constant 0 : i32
    return %c0_i32, %c0_i32_0 : i32, i32
  }
  func.func @transform_3(%arg0: i32) -> (i32, i32) {
    %c0_i32 = arith.constant 0 : i32
    %c0_i32_0 = arith.constant 0 : i32
    %c0_i32_1 = arith.constant 0 : i32
    return %c0_i32, %c0_i32_0 : i32, i32
  }
  func.func @transform_4(%arg0: i32) -> (i32, i32) {
    %c0_i32 = arith.constant 0 : i32
    %c0_i32_0 = arith.constant 0 : i32
    %c0_i32_1 = arith.constant 0 : i32
    return %c0_i32, %c0_i32_0 : i32, i32
  }
  func.func @transform_5(%arg0: i32) -> (i32, i32) {
    %c0_i32 = arith.constant 0 : i32
    %c0_i32_0 = arith.constant 0 : i32
    %c0_i32_1 = arith.constant 0 : i32
    return %c0_i32, %c0_i32_0 : i32, i32
  }
  func.func @transform_6(%arg0: i32) -> (i32, i32, i32) {
    %c0_i32 = arith.constant 0 : i32
    %c0_i32_0 = arith.constant 0 : i32
    %c0_i32_1 = arith.constant 0 : i32
    return %arg0, %c0_i32, %c0_i32_0 : i32, i32, i32
  }
}

</mosaic_0001>

<llo_original>
// kernel: full_ele_att_pallas.1
$region0: #{full_ele_att_pallas.1}
  #allocation0 [shape = 'u32[]', space=smem, size = 0x4, offset = 0x4, fixed_abs, tag = 'smem constant byte address 0x4 - core index']
  #allocation1 [shape = 'u32[144,128]{1,0:T(1,128)}', space=vmem, size = 0x12000, scoped, tag = 'internal scratch']
  %s0 = inlined_call_operand.vmem [shape: f32[3], index: 0, kind: input, shape index: {}]
  %s1 = inlined_call_operand.vmem [shape: f32[2,8,256], index: 1, kind: input, shape index: {}]
  %s2 = inlined_call_operand.vmem [shape: f32[256,16], index: 2, kind: input, shape index: {}]
  %s3 = inlined_call_operand.vmem [shape: f32[256,16], index: 3, kind: input, shape index: {}]
  %s4 = inlined_call_operand.vmem [shape: f32[256,256], index: 4, kind: input, shape index: {}]
  %s5 = inlined_call_operand.vmem [shape: f32[256,256], index: 5, kind: input, shape index: {}]
  %s6 = inlined_call_operand.vmem [shape: f32[2,8,256], index: 6, kind: output, shape index: {}]
  %s7 = sld [smem:[#allocation0]]
  $region61: #{full_ele_att_pallas.1} parent=0
    _
  %s9 = ssub.s32 1, %s7
  %s10 = scalar_select 0, %s9, %s7
  $region1: #{full_ele_att_pallas.1} parent=0
    #allocation2 [shape = 'u8[512]{0}', space=smem, size = 0x200, scoped, tag = 'input window, operand 0, single buffered']
    #allocation3 [shape = 's32[2]{0}', space=sflag, size = 0x8, scoped, tag = 'scoped memory for full_ele_att_pallas.1']
    %11 = vsyncpa [#allocation3], 0
    loop: start=0, step=1, limit=4
    $region2: #{full_ele_att_pallas.1} parent=1 // loop_pre_header
      _
    $region3: #{full_ele_att_pallas.1} parent=1 // loop_header
      %s13 = sphi 0, %s17
      %p14 = scmp.ge.s32.totalorder %s13, 4
      %s21 = sphi 0, %s21
      %s23 = sphi 0, %s21
      %s24 = sphi 0, %s23
      %s38 = sphi 0, %s24
      %s44 = sphi 0, %s46
      %s47 = sphi 0, %s44
      %s48 = sphi 0, %s47
      %s64 = sphi 0, %s48
      %s68 = sphi 0, %s68
      %s70 = sphi 0, %s68
      %s71 = sphi 0, %s70
      %s85 = sphi 0, %s71
      %s89 = sphi 0, %s89
      %s91 = sphi 0, %s89
      %s92 = sphi 0, %s91
      %s106 = sphi 0, %s92
      %s110 = sphi 0, %s110
      %s112 = sphi 0, %s110
      %s113 = sphi 0, %s112
      %s127 = sphi 0, %s113
      %s131 = sphi 0, %s131
      %s133 = sphi 0, %s131
      %s134 = sphi 0, %s133
      %s148 = sphi 0, %s134
      %s154 = sphi 0, %s156
      %s157 = sphi 0, %s154
      %s158 = sphi 0, %s157
      %s174 = sphi 0, %s158
    $region4: #{full_ele_att_pallas.1} parent=1 // loop_header_branch
      %16 = sbr.rel (%p14) target = $region8
    $region5: #{full_ele_att_pallas.1} parent=1 // loop_body
      %s18 = ssub.s32 %s13, 1
      %s19 = ssub.s32 %s13, 2
      %s20 = sadd.s32 %s13, 1
      %s22 = sadd.s32 %s21, 1
      %p25 = scmp.eq.s32.totalorder %s13, 1
      %p26 = scmp.ne.s32.totalorder %s21, %s23
      %p27 = scmp.eq.s32.totalorder %s13, 0
      %p28 = por %p26, %p27
      %p29 = scmp.ne.s32.totalorder %s21, %s23
      %p30 = scmp.eq.s32.totalorder %s18, 1
      %p31 = por %p29, %p30
      %p32 = scmp.ne.s32.totalorder %s23, %s24
      %p33 = scmp.eq.s32.totalorder %s18, 0
      %p34 = por %p32, %p33
      %p35 = scmp.ne.s32.totalorder %s23, %s24
      %p36 = scmp.eq.s32.totalorder %s19, 1
      %p37 = por %p35, %p36
      %p39 = scmp.ne.s32.totalorder %s24, %s38
      %p40 = scmp.eq.s32.totalorder %s19, 0
      %p41 = por %p39, %p40
      %s42 = ssub.s32 %s13, %s20
      %p43 = scmp.eq.s32.totalorder %s42, 0
      %s45 = sadd.s32 %s44, 1
      %s46 = scalar_select %p43, %s44, %s45
      %p49 = pneg %p43
      %p50 = scmp.eq.s32.totalorder %s13, 1
      %p51 = por %p49, %p50
      %p52 = scmp.ne.s32.totalorder %s44, %s47
      %p53 = scmp.eq.s32.totalorder %s13, 0
      %p54 = por %p52, %p53
      %p55 = scmp.ne.s32.totalorder %s44, %s47
      %p56 = scmp.eq.s32.totalorder %s18, 1
      %p57 = por %p55, %p56
      %p58 = scmp.ne.s32.totalorder %s47, %s48
      %p59 = scmp.eq.s32.totalorder %s18, 0
      %p60 = por %p58, %p59
      %p61 = scmp.ne.s32.totalorder %s47, %s48
      %p62 = scmp.eq.s32.totalorder %s19, 1
      %p63 = por %p61, %p62
      %p65 = scmp.ne.s32.totalorder %s48, %s64
      %p66 = scmp.eq.s32.totalorder %s19, 0
      %p67 = por %p65, %p66
      %s69 = sadd.s32 %s68, 1
      %p72 = scmp.eq.s32.totalorder %s13, 1
      %p73 = scmp.ne.s32.totalorder %s68, %s70
      %p74 = scmp.eq.s32.totalorder %s13, 0
      %p75 = por %p73, %p74
      %p76 = scmp.ne.s32.totalorder %s68, %s70
      %p77 = scmp.eq.s32.totalorder %s18, 1
      %p78 = por %p76, %p77
      %p79 = scmp.ne.s32.totalorder %s70, %s71
      %p80 = scmp.eq.s32.totalorder %s18, 0
      %p81 = por %p79, %p80
      %p82 = scmp.ne.s32.totalorder %s70, %s71
      %p83 = scmp.eq.s32.totalorder %s19, 1
      %p84 = por %p82, %p83
      %p86 = scmp.ne.s32.totalorder %s71, %s85
      %p87 = scmp.eq.s32.totalorder %s19, 0
      %p88 = por %p86, %p87
      %s90 = sadd.s32 %s89, 1
      %p93 = scmp.eq.s32.totalorder %s13, 1
      %p94 = scmp.ne.s32.totalorder %s89, %s91
      %p95 = scmp.eq.s32.totalorder %s13, 0
      %p96 = por %p94, %p95
      %p97 = scmp.ne.s32.totalorder %s89, %s91
      %p98 = scmp.eq.s32.totalorder %s18, 1
      %p99 = por %p97, %p98
      %p100 = scmp.ne.s32.totalorder %s91, %s92
      %p101 = scmp.eq.s32.totalorder %s18, 0
      %p102 = por %p100, %p101
      %p103 = scmp.ne.s32.totalorder %s91, %s92
      %p104 = scmp.eq.s32.totalorder %s19, 1
      %p105 = por %p103, %p104
      %p107 = scmp.ne.s32.totalorder %s92, %s106
      %p108 = scmp.eq.s32.totalorder %s19, 0
      %p109 = por %p107, %p108
      %s111 = sadd.s32 %s110, 1
      %p114 = scmp.eq.s32.totalorder %s13, 1
      %p115 = scmp.ne.s32.totalorder %s110, %s112
      %p116 = scmp.eq.s32.totalorder %s13, 0
      %p117 = por %p115, %p116
      %p118 = scmp.ne.s32.totalorder %s110, %s112
      %p119 = scmp.eq.s32.totalorder %s18, 1
      %p120 = por %p118, %p119
      %p121 = scmp.ne.s32.totalorder %s112, %s113
      %p122 = scmp.eq.s32.totalorder %s18, 0
      %p123 = por %p121, %p122
      %p124 = scmp.ne.s32.totalorder %s112, %s113
      %p125 = scmp.eq.s32.totalorder %s19, 1
      %p126 = por %p124, %p125
      %p128 = scmp.ne.s32.totalorder %s113, %s127
      %p129 = scmp.eq.s32.totalorder %s19, 0
      %p130 = por %p128, %p129
      %s132 = sadd.s32 %s131, 1
      %p135 = scmp.eq.s32.totalorder %s13, 1
      %p136 = scmp.ne.s32.totalorder %s131, %s133
      %p137 = scmp.eq.s32.totalorder %s13, 0
      %p138 = por %p136, %p137
      %p139 = scmp.ne.s32.totalorder %s131, %s133
      %p140 = scmp.eq.s32.totalorder %s18, 1
      %p141 = por %p139, %p140
      %p142 = scmp.ne.s32.totalorder %s133, %s134
      %p143 = scmp.eq.s32.totalorder %s18, 0
      %p144 = por %p142, %p143
      %p145 = scmp.ne.s32.totalorder %s133, %s134
      %p146 = scmp.eq.s32.totalorder %s19, 1
      %p147 = por %p145, %p146
      %p149 = scmp.ne.s32.totalorder %s134, %s148
      %p150 = scmp.eq.s32.totalorder %s19, 0
      %p151 = por %p149, %p150
      %s152 = ssub.s32 %s13, %s20
      %p153 = scmp.eq.s32.totalorder %s152, 0
      %s155 = sadd.s32 %s154, 1
      %s156 = scalar_select %p153, %s154, %s155
      %p159 = pneg %p153
      %p160 = scmp.eq.s32.totalorder %s13, 1
      %p161 = por %p159, %p160
      %p162 = scmp.ne.s32.totalorder %s154, %s157
      %p163 = scmp.eq.s32.totalorder %s13, 0
      %p164 = por %p162, %p163
      %p165 = scmp.ne.s32.totalorder %s154, %s157
      %p166 = scmp.eq.s32.totalorder %s18, 1
      %p167 = por %p165, %p166
      %p168 = scmp.ne.s32.totalorder %s157, %s158
      %p169 = scmp.eq.s32.totalorder %s18, 0
      %p170 = por %p168, %p169
      %p171 = scmp.ne.s32.totalorder %s157, %s158
      %p172 = scmp.eq.s32.totalorder %s19, 1
      %p173 = por %p171, %p172
      %p175 = scmp.ne.s32.totalorder %s158, %s174
      %p176 = scmp.eq.s32.totalorder %s19, 0
      %p177 = por %p175, %p176
      %p178 = scmp.le.s32.totalorder 1, %s13
      %p179 = scmp.lt.s32.totalorder %s13, 3
      %p180 = pnand %p178, %p179
      %p181 = pneg %p180
      // Predicated region
      $region9: #{full_ele_att_pallas.1} parent=5 // pred_check
        _
      $region10: #{full_ele_att_pallas.1} parent=5 // pred_check_branch
        %183 = sbr.rel (%p180) target = $region12
      $region11: #{full_ele_att_pallas.1} parent=5 // pred_region
        %s184 = ssub.s32 %s13, 1
        // Predicated region
        $region13: #{full_ele_att_pallas.1} parent=11 // pred_check
          %p185 = pneg %p34
        $region14: #{full_ele_att_pallas.1} parent=11 // pred_check_branch
          %187 = sbr.rel (%p185) target = $region16
        $region15: #{full_ele_att_pallas.1} parent=11 // pred_region
          %s189 = ssub.s32 16, 16
          %190 = vsyncadd [#allocation3], %s189
          %s192 = sshll.u32 %s0, 4
          %s193 = int_to_ptr.vmem [resolvable:$true] %s192
          %195 = dma.vmem_to_smem %s193, 16, [#allocation2], [#allocation3]
        $region16: #{full_ele_att_pallas.1} parent=11 // pred_fallthru
          _
        // Predicated region
        $region17: #{full_ele_att_pallas.1} parent=11 // pred_check
          %p196 = pneg %p81
        $region18: #{full_ele_att_pallas.1} parent=11 // pred_check_branch
          %198 = sbr.rel (%p196) target = $region20
        $region19: #{full_ele_att_pallas.1} parent=11 // pred_region
          _
        $region20: #{full_ele_att_pallas.1} parent=11 // pred_fallthru
          _
        // Predicated region
        $region21: #{full_ele_att_pallas.1} parent=11 // pred_check
          %p199 = pneg %p102
        $region22: #{full_ele_att_pallas.1} parent=11 // pred_check_branch
          %201 = sbr.rel (%p199) target = $region24
        $region23: #{full_ele_att_pallas.1} parent=11 // pred_region
          _
        $region24: #{full_ele_att_pallas.1} parent=11 // pred_fallthru
          _
        // Predicated region
        $region25: #{full_ele_att_pallas.1} parent=11 // pred_check
          %p202 = pneg %p123
        $region26: #{full_ele_att_pallas.1} parent=11 // pred_check_branch
          %204 = sbr.rel (%p202) target = $region28
        $region27: #{full_ele_att_pallas.1} parent=11 // pred_region
          _
        $region28: #{full_ele_att_pallas.1} parent=11 // pred_fallthru
          _
        // Predicated region
        $region29: #{full_ele_att_pallas.1} parent=11 // pred_check
          %p205 = pneg %p144
        $region30: #{full_ele_att_pallas.1} parent=11 // pred_check_branch
          %207 = sbr.rel (%p205) target = $region32
        $region31: #{full_ele_att_pallas.1} parent=11 // pred_region
          _
        $region32: #{full_ele_att_pallas.1} parent=11 // pred_fallthru
          _
      $region12: #{full_ele_att_pallas.1} parent=5 // pred_fallthru
        _
      %p208 = scmp.lt.s32.totalorder %s13, 2
      // Predicated region
      $region33: #{full_ele_att_pallas.1} parent=5 // pred_check
        %p209 = pneg %p208
      $region34: #{full_ele_att_pallas.1} parent=5 // pred_check_branch
        %211 = sbr.rel (%p209) target = $region36
      $region35: #{full_ele_att_pallas.1} parent=5 // pred_region
        // Predicated region
        $region37: #{full_ele_att_pallas.1} parent=35 // pred_check
          %p212 = pneg %p54
        $region38: #{full_ele_att_pallas.1} parent=35 // pred_check_branch
          %214 = sbr.rel (%p212) target = $region40
        $region39: #{full_ele_att_pallas.1} parent=35 // pred_region
          %p215 = scmp.lt.s32.totalorder %s13, 1
          %s216 = scalar_select %p215, %s13, 1
          %s217 = smul.addr %s216, 2
          %s218 = smul.addr %s217, 8
          %s219 = scalar_lea.vmem %s1, %s218
        $region40: #{full_ele_att_pallas.1} parent=35 // pred_fallthru
          _
      $region36: #{full_ele_att_pallas.1} parent=5 // pred_fallthru
        _
      %p220 = scmp.le.s32.totalorder 1, %s13
      %p221 = scmp.lt.s32.totalorder %s13, 3
      %p222 = pnand %p220, %p221
      %p223 = pneg %p222
      // Predicated region
      $region41: #{full_ele_att_pallas.1} parent=5 // pred_check
        _
      $region42: #{full_ele_att_pallas.1} parent=5 // pred_check_branch
        %225 = sbr.rel (%p222) target = $region44
      $region43: #{full_ele_att_pallas.1} parent=5 // pred_region
        %s226 = ssub.s32 %s13, 1
        // Predicated region
        $region45: #{full_ele_att_pallas.1} parent=43 // pred_check
          %p227 = pneg %p34
        $region46: #{full_ele_att_pallas.1} parent=43 // pred_check_branch
          %229 = sbr.rel (%p227) target = $region48
        $region47: #{full_ele_att_pallas.1} parent=43 // pred_region
          %230 = dma.done [#allocation3], 16
        $region48: #{full_ele_att_pallas.1} parent=43 // pred_fallthru
          _
        %231 = sfence
        %p232 = pneg %p34
        %p233 = pneg %p31
        %p234 = scmp.lt.s32.totalorder %s18, 1
        %s235 = scalar_select %p234, %s18, 1
        %s236 = smul.addr %s235, 2
        %s237 = smul.addr %s236, 8
        %s238 = scalar_lea.vmem %s1, %s237
        %p239 = pneg %p60
        %p240 = pneg %p57
        %p241 = pneg %p81
        %p242 = pneg %p78
        %p243 = pneg %p102
        %p244 = pneg %p99
        %p245 = pneg %p123
        %p246 = pneg %p120
        %p247 = pneg %p144
        %p248 = pneg %p141
        %p249 = pneg %p170
        %p250 = pneg %p167
        %p251 = scmp.lt.s32.totalorder %s18, 1
        %s252 = scalar_select %p251, %s18, 1
        %s253 = smul.addr %s252, 2
        %s254 = smul.addr %s253, 8
        %s255 = scalar_lea.vmem %s6, %s254
        %p256 = scmp.lt.s32.totalorder %s18, 1
        %s257 = scalar_select %p256, %s18, 1
        %s258 = smul.addr %s257, 2
        %s259 = smul.addr %s258, 8
        %s260 = scalar_lea.vmem %s1, %s259
        %p261 = scmp.lt.s32.totalorder %s18, 1
        %s262 = scalar_select %p261, %s18, 1
        %s263 = smul.addr %s262, 2
        %s264 = smul.addr %s263, 8
        %s265 = scalar_lea.vmem %s6, %s264
        %v266 = vld [vmem:[%s260] sm:$0xff]
        %v267 = vld [vmem:[%s260 + $0x8] sm:$0xff]
        %v268 = vld [vmem:[%s2] sm:$0xff]
        %v269 = vld [vmem:[%s2 + $0x8] sm:$0xff]
        %v270 = vld [vmem:[%s2 + $0x10] sm:$0xff]
        %v271 = vld [vmem:[%s2 + $0x18] sm:$0xff]
        %v272 = vld [vmem:[%s2 + $0x20] sm:$0xff]
        %v273 = vld [vmem:[%s2 + $0x28] sm:$0xff]
        %v274 = vld [vmem:[%s2 + $0x30] sm:$0xff]
        %v275 = vld [vmem:[%s2 + $0x38] sm:$0xff]
        %v276 = vld [vmem:[%s2 + $0x40] sm:$0xff]
        %v277 = vld [vmem:[%s2 + $0x48] sm:$0xff]
        %v278 = vld [vmem:[%s2 + $0x50] sm:$0xff]
        %v279 = vld [vmem:[%s2 + $0x58] sm:$0xff]
        %v280 = vld [vmem:[%s2 + $0x60] sm:$0xff]
        %v281 = vld [vmem:[%s2 + $0x68] sm:$0xff]
        %v282 = vld [vmem:[%s2 + $0x70] sm:$0xff]
        %v283 = vld [vmem:[%s2 + $0x78] sm:$0xff]
        %v284 = vld [vmem:[%s2 + $0x80] sm:$0xff]
        %v285 = vld [vmem:[%s2 + $0x88] sm:$0xff]
        %v286 = vld [vmem:[%s2 + $0x90] sm:$0xff]
        %v287 = vld [vmem:[%s2 + $0x98] sm:$0xff]
        %v288 = vld [vmem:[%s2 + $0xa0] sm:$0xff]
        %v289 = vld [vmem:[%s2 + $0xa8] sm:$0xff]
        %v290 = vld [vmem:[%s2 + $0xb0] sm:$0xff]
        %v291 = vld [vmem:[%s2 + $0xb8] sm:$0xff]
        %v292 = vld [vmem:[%s2 + $0xc0] sm:$0xff]
        %v293 = vld [vmem:[%s2 + $0xc8] sm:$0xff]
        %v294 = vld [vmem:[%s2 + $0xd0] sm:$0xff]
        %v295 = vld [vmem:[%s2 + $0xd8] sm:$0xff]
        %v296 = vld [vmem:[%s2 + $0xe0] sm:$0xff]
        %v297 = vld [vmem:[%s2 + $0xe8] sm:$0xff]
        %v298 = vld [vmem:[%s2 + $0xf0] sm:$0xff]
        %v299 = vld [vmem:[%s2 + $0xf8] sm:$0xff]
        %v300 = vld [vmem:[%s3] sm:$0xff]
        %v301 = vld [vmem:[%s3 + $0x8] sm:$0xff]
        %v302 = vld [vmem:[%s3 + $0x10] sm:$0xff]
        %v303 = vld [vmem:[%s3 + $0x18] sm:$0xff]
        %v304 = vld [vmem:[%s3 + $0x20] sm:$0xff]
        %v305 = vld [vmem:[%s3 + $0x28] sm:$0xff]
        %v306 = vld [vmem:[%s3 + $0x30] sm:$0xff]
        %v307 = vld [vmem:[%s3 + $0x38] sm:$0xff]
        %v308 = vld [vmem:[%s3 + $0x40] sm:$0xff]
        %v309 = vld [vmem:[%s3 + $0x48] sm:$0xff]
        %v310 = vld [vmem:[%s3 + $0x50] sm:$0xff]
        %v311 = vld [vmem:[%s3 + $0x58] sm:$0xff]
        %v312 = vld [vmem:[%s3 + $0x60] sm:$0xff]
        %v313 = vld [vmem:[%s3 + $0x68] sm:$0xff]
        %v314 = vld [vmem:[%s3 + $0x70] sm:$0xff]
        %v315 = vld [vmem:[%s3 + $0x78] sm:$0xff]
        %v316 = vld [vmem:[%s3 + $0x80] sm:$0xff]
        %v317 = vld [vmem:[%s3 + $0x88] sm:$0xff]
        %v318 = vld [vmem:[%s3 + $0x90] sm:$0xff]
        %v319 = vld [vmem:[%s3 + $0x98] sm:$0xff]
        %v320 = vld [vmem:[%s3 + $0xa0] sm:$0xff]
        %v321 = vld [vmem:[%s3 + $0xa8] sm:$0xff]
        %v322 = vld [vmem:[%s3 + $0xb0] sm:$0xff]
        %v323 = vld [vmem:[%s3 + $0xb8] sm:$0xff]
        %v324 = vld [vmem:[%s3 + $0xc0] sm:$0xff]
        %v325 = vld [vmem:[%s3 + $0xc8] sm:$0xff]
        %v326 = vld [vmem:[%s3 + $0xd0] sm:$0xff]
        %v327 = vld [vmem:[%s3 + $0xd8] sm:$0xff]
        %v328 = vld [vmem:[%s3 + $0xe0] sm:$0xff]
        %v329 = vld [vmem:[%s3 + $0xe8] sm:$0xff]
        %v330 = vld [vmem:[%s3 + $0xf0] sm:$0xff]
        %v331 = vld [vmem:[%s3 + $0xf8] sm:$0xff]
        %v332 = vld [vmem:[%s4] sm:$0xff]
        %v333 = vld [vmem:[%s4 + $0x8] sm:$0xff]
        %v334 = vld [vmem:[%s4 + $0x10] sm:$0xff]
        %v335 = vld [vmem:[%s4 + $0x18] sm:$0xff]
        %v336 = vld [vmem:[%s4 + $0x20] sm:$0xff]
        %v337 = vld [vmem:[%s4 + $0x28] sm:$0xff]
        %v338 = vld [vmem:[%s4 + $0x30] sm:$0xff]
        %v339 = vld [vmem:[%s4 + $0x38] sm:$0xff]
        %v340 = vld [vmem:[%s4 + $0x40] sm:$0xff]
        %v341 = vld [vmem:[%s4 + $0x48] sm:$0xff]
        %v342 = vld [vmem:[%s4 + $0x50] sm:$0xff]
        %v343 = vld [vmem:[%s4 + $0x58] sm:$0xff]
        %v344 = vld [vmem:[%s4 + $0x60] sm:$0xff]
        %v345 = vld [vmem:[%s4 + $0x68] sm:$0xff]
        %v346 = vld [vmem:[%s4 + $0x70] sm:$0xff]
        %v347 = vld [vmem:[%s4 + $0x78] sm:$0xff]
        %v348 = vld [vmem:[%s4 + $0x80] sm:$0xff]
        %v349 = vld [vmem:[%s4 + $0x88] sm:$0xff]
        %v350 = vld [vmem:[%s4 + $0x90] sm:$0xff]
        %v351 = vld [vmem:[%s4 + $0x98] sm:$0xff]
        %v352 = vld [vmem:[%s4 + $0xa0] sm:$0xff]
        %v353 = vld [vmem:[%s4 + $0xa8] sm:$0xff]
        %v354 = vld [vmem:[%s4 + $0xb0] sm:$0xff]
        %v355 = vld [vmem:[%s4 + $0xb8] sm:$0xff]
        %v356 = vld [vmem:[%s4 + $0xc0] sm:$0xff]
        %v357 = vld [vmem:[%s4 + $0xc8] sm:$0xff]
        %v358 = vld [vmem:[%s4 + $0xd0] sm:$0xff]
        %v359 = vld [vmem:[%s4 + $0xd8] sm:$0xff]
        %v360 = vld [vmem:[%s4 + $0xe0] sm:$0xff]
        %v361 = vld [vmem:[%s4 + $0xe8] sm:$0xff]
        %v362 = vld [vmem:[%s4 + $0xf0] sm:$0xff]
        %v363 = vld [vmem:[%s4 + $0xf8] sm:$0xff]
        %v364 = vld [vmem:[%s4 + $0x100] sm:$0xff]
        %v365 = vld [vmem:[%s4 + $0x108] sm:$0xff]
        %v366 = vld [vmem:[%s4 + $0x110] sm:$0xff]
        %v367 = vld [vmem:[%s4 + $0x118] sm:$0xff]
        %v368 = vld [vmem:[%s4 + $0x120] sm:$0xff]
        %v369 = vld [vmem:[%s4 + $0x128] sm:$0xff]
        %v370 = vld [vmem:[%s4 + $0x130] sm:$0xff]
        %v371 = vld [vmem:[%s4 + $0x138] sm:$0xff]
        %v372 = vld [vmem:[%s4 + $0x140] sm:$0xff]
        %v373 = vld [vmem:[%s4 + $0x148] sm:$0xff]
        %v374 = vld [vmem:[%s4 + $0x150] sm:$0xff]
        %v375 = vld [vmem:[%s4 + $0x158] sm:$0xff]
        %v376 = vld [vmem:[%s4 + $0x160] sm:$0xff]
        %v377 = vld [vmem:[%s4 + $0x168] sm:$0xff]
        %v378 = vld [vmem:[%s4 + $0x170] sm:$0xff]
        %v379 = vld [vmem:[%s4 + $0x178] sm:$0xff]
        %v380 = vld [vmem:[%s4 + $0x180] sm:$0xff]
        %v381 = vld [vmem:[%s4 + $0x188] sm:$0xff]
        %v382 = vld [vmem:[%s4 + $0x190] sm:$0xff]
        %v383 = vld [vmem:[%s4 + $0x198] sm:$0xff]
        %v384 = vld [vmem:[%s4 + $0x1a0] sm:$0xff]
        %v385 = vld [vmem:[%s4 + $0x1a8] sm:$0xff]
        %v386 = vld [vmem:[%s4 + $0x1b0] sm:$0xff]
        %v387 = vld [vmem:[%s4 + $0x1b8] sm:$0xff]
        %v388 = vld [vmem:[%s4 + $0x1c0] sm:$0xff]
        %v389 = vld [vmem:[%s4 + $0x1c8] sm:$0xff]
        %v390 = vld [vmem:[%s4 + $0x1d0] sm:$0xff]
        %v391 = vld [vmem:[%s4 + $0x1d8] sm:$0xff]
        %v392 = vld [vmem:[%s4 + $0x1e0] sm:$0xff]
        %v393 = vld [vmem:[%s4 + $0x1e8] sm:$0xff]
        %v394 = vld [vmem:[%s4 + $0x1f0] sm:$0xff]
        %v395 = vld [vmem:[%s4 + $0x1f8] sm:$0xff]
        %v396 = vld [vmem:[%s5] sm:$0xff]
        %v397 = vld [vmem:[%s5 + $0x8] sm:$0xff]
        %v398 = vld [vmem:[%s5 + $0x10] sm:$0xff]
        %v399 = vld [vmem:[%s5 + $0x18] sm:$0xff]
        %v400 = vld [vmem:[%s5 + $0x20] sm:$0xff]
        %v401 = vld [vmem:[%s5 + $0x28] sm:$0xff]
        %v402 = vld [vmem:[%s5 + $0x30] sm:$0xff]
        %v403 = vld [vmem:[%s5 + $0x38] sm:$0xff]
        %v404 = vld [vmem:[%s5 + $0x40] sm:$0xff]
        %v405 = vld [vmem:[%s5 + $0x48] sm:$0xff]
        %v406 = vld [vmem:[%s5 + $0x50] sm:$0xff]
        %v407 = vld [vmem:[%s5 + $0x58] sm:$0xff]
        %v408 = vld [vmem:[%s5 + $0x60] sm:$0xff]
        %v409 = vld [vmem:[%s5 + $0x68] sm:$0xff]
        %v410 = vld [vmem:[%s5 + $0x70] sm:$0xff]
        %v411 = vld [vmem:[%s5 + $0x78] sm:$0xff]
        %v412 = vld [vmem:[%s5 + $0x80] sm:$0xff]
        %v413 = vld [vmem:[%s5 + $0x88] sm:$0xff]
        %v414 = vld [vmem:[%s5 + $0x90] sm:$0xff]
        %v415 = vld [vmem:[%s5 + $0x98] sm:$0xff]
        %v416 = vld [vmem:[%s5 + $0xa0] sm:$0xff]
        %v417 = vld [vmem:[%s5 + $0xa8] sm:$0xff]
        %v418 = vld [vmem:[%s5 + $0xb0] sm:$0xff]
        %v419 = vld [vmem:[%s5 + $0xb8] sm:$0xff]
        %v420 = vld [vmem:[%s5 + $0xc0] sm:$0xff]
        %v421 = vld [vmem:[%s5 + $0xc8] sm:$0xff]
        %v422 = vld [vmem:[%s5 + $0xd0] sm:$0xff]
        %v423 = vld [vmem:[%s5 + $0xd8] sm:$0xff]
        %v424 = vld [vmem:[%s5 + $0xe0] sm:$0xff]
        %v425 = vld [vmem:[%s5 + $0xe8] sm:$0xff]
        %v426 = vld [vmem:[%s5 + $0xf0] sm:$0xff]
        %v427 = vld [vmem:[%s5 + $0xf8] sm:$0xff]
        %v428 = vld [vmem:[%s5 + $0x100] sm:$0xff]
        %v429 = vld [vmem:[%s5 + $0x108] sm:$0xff]
        %v430 = vld [vmem:[%s5 + $0x110] sm:$0xff]
        %v431 = vld [vmem:[%s5 + $0x118] sm:$0xff]
        %v432 = vld [vmem:[%s5 + $0x120] sm:$0xff]
        %v433 = vld [vmem:[%s5 + $0x128] sm:$0xff]
        %v434 = vld [vmem:[%s5 + $0x130] sm:$0xff]
        %v435 = vld [vmem:[%s5 + $0x138] sm:$0xff]
        %v436 = vld [vmem:[%s5 + $0x140] sm:$0xff]
        %v437 = vld [vmem:[%s5 + $0x148] sm:$0xff]
        %v438 = vld [vmem:[%s5 + $0x150] sm:$0xff]
        %v439 = vld [vmem:[%s5 + $0x158] sm:$0xff]
        %v440 = vld [vmem:[%s5 + $0x160] sm:$0xff]
        %v441 = vld [vmem:[%s5 + $0x168] sm:$0xff]
        %v442 = vld [vmem:[%s5 + $0x170] sm:$0xff]
        %v443 = vld [vmem:[%s5 + $0x178] sm:$0xff]
        %v444 = vld [vmem:[%s5 + $0x180] sm:$0xff]
        %v445 = vld [vmem:[%s5 + $0x188] sm:$0xff]
        %v446 = vld [vmem:[%s5 + $0x190] sm:$0xff]
        %v447 = vld [vmem:[%s5 + $0x198] sm:$0xff]
        %v448 = vld [vmem:[%s5 + $0x1a0] sm:$0xff]
        %v449 = vld [vmem:[%s5 + $0x1a8] sm:$0xff]
        %v450 = vld [vmem:[%s5 + $0x1b0] sm:$0xff]
        %v451 = vld [vmem:[%s5 + $0x1b8] sm:$0xff]
        %v452 = vld [vmem:[%s5 + $0x1c0] sm:$0xff]
        %v453 = vld [vmem:[%s5 + $0x1c8] sm:$0xff]
        %v454 = vld [vmem:[%s5 + $0x1d0] sm:$0xff]
        %v455 = vld [vmem:[%s5 + $0x1d8] sm:$0xff]
        %v456 = vld [vmem:[%s5 + $0x1e0] sm:$0xff]
        %v457 = vld [vmem:[%s5 + $0x1e8] sm:$0xff]
        %v458 = vld [vmem:[%s5 + $0x1f0] sm:$0xff]
        %v459 = vld [vmem:[%s5 + $0x1f8] sm:$0xff]
        %s460 = sld [smem:[#allocation2]]
        %461 = vxpose.xlu0.b32.start [1/16] %v266, 128
        %462 = vxpose.xlu0.b32.cont [2/16] 0.0, 128
        %463 = vxpose.xlu0.b32.cont [3/16] 0.0, 128
        %464 = vxpose.xlu0.b32.cont [4/16] 0.0, 128
        %465 = vxpose.xlu0.b32.cont [5/16] 0.0, 128
        %466 = vxpose.xlu0.b32.cont [6/16] 0.0, 128
        %467 = vxpose.xlu0.b32.cont [7/16] 0.0, 128
        %468 = vxpose.xlu0.b32.cont [8/16] 0.0, 128
        %469 = vxpose.xlu0.b32.cont [9/16] 0.0, 128
        %470 = vxpose.xlu0.b32.cont [10/16] 0.0, 128
        %471 = vxpose.xlu0.b32.cont [11/16] 0.0, 128
        %472 = vxpose.xlu0.b32.cont [12/16] 0.0, 128
        %473 = vxpose.xlu0.b32.cont [13/16] 0.0, 128
        %474 = vxpose.xlu0.b32.cont [14/16] 0.0, 128
        %475 = vxpose.xlu0.b32.cont [15/16] 0.0, 128
        %476 = vxpose.xlu0.b32.end [16/16] 0.0, 128
        %v477 = vpop.trf.xlu0
        %v478 = vpop.trf.xlu0
        %v479 = vpop.trf.xlu0
        %v480 = vpop.trf.xlu0
        %v481 = vpop.trf.xlu0
        %v482 = vpop.trf.xlu0
        %v483 = vpop.trf.xlu0
        %v484 = vpop.trf.xlu0
        %v485 = vpop.trf.xlu0
        %v486 = vpop.trf.xlu0
        %v487 = vpop.trf.xlu0
        %v488 = vpop.trf.xlu0
        %v489 = vpop.trf.xlu0
        %v490 = vpop.trf.xlu0
        %v491 = vpop.trf.xlu0
        %v492 = vpop.trf.xlu0
        %493 = vxpose.xlu0.b32.start [1/16] %v267, 128
        %494 = vxpose.xlu0.b32.cont [2/16] 0.0, 128
        %495 = vxpose.xlu0.b32.cont [3/16] 0.0, 128
        %496 = vxpose.xlu0.b32.cont [4/16] 0.0, 128
        %497 = vxpose.xlu0.b32.cont [5/16] 0.0, 128
        %498 = vxpose.xlu0.b32.cont [6/16] 0.0, 128
        %499 = vxpose.xlu0.b32.cont [7/16] 0.0, 128
        %500 = vxpose.xlu0.b32.cont [8/16] 0.0, 128
        %501 = vxpose.xlu0.b32.cont [9/16] 0.0, 128
        %502 = vxpose.xlu0.b32.cont [10/16] 0.0, 128
        %503 = vxpose.xlu0.b32.cont [11/16] 0.0, 128
        %504 = vxpose.xlu0.b32.cont [12/16] 0.0, 128
        %505 = vxpose.xlu0.b32.cont [13/16] 0.0, 128
        %506 = vxpose.xlu0.b32.cont [14/16] 0.0, 128
        %507 = vxpose.xlu0.b32.cont [15/16] 0.0, 128
        %508 = vxpose.xlu0.b32.end [16/16] 0.0, 128
        %v509 = vpop.trf.xlu0
        %v510 = vpop.trf.xlu0
        %v511 = vpop.trf.xlu0
        %v512 = vpop.trf.xlu0
        %v513 = vpop.trf.xlu0
        %v514 = vpop.trf.xlu0
        %v515 = vpop.trf.xlu0
        %v516 = vpop.trf.xlu0
        %v517 = vpop.trf.xlu0
        %v518 = vpop.trf.xlu0
        %v519 = vpop.trf.xlu0
        %v520 = vpop.trf.xlu0
        %v521 = vpop.trf.xlu0
        %v522 = vpop.trf.xlu0
        %v523 = vpop.trf.xlu0
        %v524 = vpop.trf.xlu0
        %vm525 = vcmask 64512
        %v527 = vsel %vm525, %v477, 0
        %v530 = vsel %vm525, %v478, 0
        %v533 = vsel %vm525, %v479, 0
        %v536 = vsel %vm525, %v480, 0
        %v539 = vsel %vm525, %v481, 0
        %v542 = vsel %vm525, %v482, 0
        %v545 = vsel %vm525, %v483, 0
        %v548 = vsel %vm525, %v484, 0
        %v551 = vsel %vm525, %v485, 0
        %v554 = vsel %vm525, %v486, 0
        %v557 = vsel %vm525, %v487, 0
        %v560 = vsel %vm525, %v488, 0
        %v563 = vsel %vm525, %v489, 0
        %v566 = vsel %vm525, %v490, 0
        %v569 = vsel %vm525, %v491, 0
        %v572 = vsel %vm525, %v492, 0
        %v575 = vsel %vm525, %v509, 0
        %v578 = vsel %vm525, %v510, 0
        %v581 = vsel %vm525, %v511, 0
        %v584 = vsel %vm525, %v512, 0
        %v587 = vsel %vm525, %v513, 0
        %v590 = vsel %vm525, %v514, 0
        %v593 = vsel %vm525, %v515, 0
        %v596 = vsel %vm525, %v516, 0
        %v599 = vsel %vm525, %v517, 0
        %v602 = vsel %vm525, %v518, 0
        %v605 = vsel %vm525, %v519, 0
        %v608 = vsel %vm525, %v520, 0
        %v611 = vsel %vm525, %v521, 0
        %v614 = vsel %vm525, %v522, 0
        %v617 = vsel %vm525, %v523, 0
        %v620 = vsel %vm525, %v524, 0
        %622 = vmatprep.subr.mxu0 %v267
        %623 = vmatpush1.msra.mxu0 %v266
        %624 = vmatprep.subr.mxu0 0.0
        %625 = vmatpush1.msra.mxu0 0.0
        %626 = vmatprep.subr.mxu0 0.0
        %627 = vmatpush1.msra.mxu0 0.0
        %628 = vmatprep.subr.mxu0 0.0
        %629 = vmatpush1.msra.mxu0 0.0
        %630 = vmatprep.subr.mxu0 0.0
        %631 = vmatpush1.msra.mxu0 0.0
        %632 = vmatprep.subr.mxu0 0.0
        %633 = vmatpush1.msra.mxu0 0.0
        %634 = vmatprep.subr.mxu0 0.0
        %635 = vmatpush1.msra.mxu0 0.0
        %636 = vmatprep.subr.mxu0 0.0
        %637 = vmatpush1.msra.mxu0 0.0
        %638 = vmatprep.subr.mxu0 0.0
        %639 = vmatpush1.msra.mxu0 0.0
        %640 = vmatprep.subr.mxu0 0.0
        %641 = vmatpush1.msra.mxu0 0.0
        %642 = vmatprep.subr.mxu0 0.0
        %643 = vmatpush1.msra.mxu0 0.0
        %644 = vmatprep.subr.mxu0 0.0
        %645 = vmatpush1.msra.mxu0 0.0
        %646 = vmatprep.subr.mxu0 0.0
        %647 = vmatpush1.msra.mxu0 0.0
        %648 = vmatprep.subr.mxu0 0.0
        %649 = vmatpush1.msra.mxu0 0.0
        %650 = vmatprep.subr.mxu0 0.0
        %651 = vmatpush1.msra.mxu0 0.0
        %652 = vmatprep.subr.mxu0 0.0
        %653 = vmatpush1.msra.mxu0 0.0
        %654 = vmatprep.subr.mxu0 0.0
        %655 = vmatpush1.msra.mxu0 0.0
        %656 = vmatprep.subr.mxu0 0.0
        %657 = vmatpush1.msra.mxu0 0.0
        %658 = vmatprep.subr.mxu0 0.0
        %659 = vmatpush1.msra.mxu0 0.0
        %660 = vmatprep.subr.mxu0 0.0
        %661 = vmatpush1.msra.mxu0 0.0
        %662 = vmatprep.subr.mxu0 0.0
        %663 = vmatpush1.msra.mxu0 0.0
        %664 = vmatprep.subr.mxu0 0.0
        %665 = vmatpush1.msra.mxu0 0.0
        %666 = vmatprep.subr.mxu0 0.0
        %667 = vmatpush1.msra.mxu0 0.0
        %668 = vmatprep.subr.mxu0 0.0
        %669 = vmatpush1.msra.mxu0 0.0
        %670 = vmatprep.subr.mxu0 0.0
        %671 = vmatpush1.msra.mxu0 0.0
        %672 = vmatprep.subr.mxu0 0.0
        %673 = vmatpush1.msra.mxu0 0.0
        %674 = vmatprep.subr.mxu0 0.0
        %675 = vmatpush1.msra.mxu0 0.0
        %676 = vmatprep.subr.mxu0 0.0
        %677 = vmatpush1.msra.mxu0 0.0
        %678 = vmatprep.subr.mxu0 0.0
        %679 = vmatpush1.msra.mxu0 0.0
        %680 = vmatprep.subr.mxu0 0.0
        %681 = vmatpush1.msra.mxu0 0.0
        %682 = vmatprep.subr.mxu0 0.0
        %683 = vmatpush1.msra.mxu0 0.0
        %684 = vmatprep.subr.mxu0 0.0
        %685 = vmatpush1.msra.mxu0 0.0
        %686 = vmatprep.mubr.f32.mxu0 0.0
        %687 = vmatmul.mubr.f32.gmra.mrb[0].mxu0 %v527
        %v688 = vpop.f32.mrb[0].mxu0
        %v689 = vadd.f32 0.0, %v688
        %v690 = vpop.f32.mrb[0].mxu0
        %v691 = vadd.f32 0.0, %v690
        %692 = vmatprep.mubr.f32.mxu0 0.0
        %693 = vmatmul.mubr.f32.gmra.mrb[0].mxu0 %v530
        %v694 = vpop.f32.mrb[0].mxu0
        %v695 = vadd.f32 0.0, %v694
        %v696 = vpop.f32.mrb[0].mxu0
        %v697 = vadd.f32 0.0, %v696
        %698 = vmatprep.mubr.f32.mxu0 0.0
        %699 = vmatmul.mubr.f32.gmra.mrb[0].mxu0 %v533
        %v700 = vpop.f32.mrb[0].mxu0
        %v701 = vadd.f32 0.0, %v700
        %v702 = vpop.f32.mrb[0].mxu0
        %v703 = vadd.f32 0.0, %v702
        %704 = vmatprep.mubr.f32.mxu0 0.0
        %705 = vmatmul.mubr.f32.gmra.mrb[0].mxu0 %v536
        %v706 = vpop.f32.mrb[0].mxu0
        %v707 = vadd.f32 0.0, %v706
        %v708 = vpop.f32.mrb[0].mxu0
        %v709 = vadd.f32 0.0, %v708
        %710 = vmatprep.mubr.f32.mxu0 0.0
        %711 = vmatmul.mubr.f32.gmra.mrb[0].mxu0 %v539
        %v712 = vpop.f32.mrb[0].mxu0
        %v713 = vadd.f32 0.0, %v712
        %v714 = vpop.f32.mrb[0].mxu0
        %v715 = vadd.f32 0.0, %v714
        %716 = vmatprep.mubr.f32.mxu0 0.0
        %717 = vmatmul.mubr.f32.gmra.mrb[0].mxu0 %v542
        %v718 = vpop.f32.mrb[0].mxu0
        %v719 = vadd.f32 0.0, %v718
        %v720 = vpop.f32.mrb[0].mxu0
        %v721 = vadd.f32 0.0, %v720
        %722 = vmatprep.mubr.f32.mxu0 0.0
        %723 = vmatmul.mubr.f32.gmra.mrb[0].mxu0 %v545
        %v724 = vpop.f32.mrb[0].mxu0
        %v725 = vadd.f32 0.0, %v724
        %v726 = vpop.f32.mrb[0].mxu0
        %v727 = vadd.f32 0.0, %v726
        %728 = vmatprep.mubr.f32.mxu0 0.0
        %729 = vmatmul.mubr.f32.gmra.mrb[0].mxu0 %v548
        %v730 = vpop.f32.mrb[0].mxu0
        %v731 = vadd.f32 0.0, %v730
        %v732 = vpop.f32.mrb[0].mxu0
        %v733 = vadd.f32 0.0, %v732
        %734 = vmatprep.mubr.f32.mxu0 0.0
        %735 = vmatmul.mubr.f32.gmra.mrb[0].mxu0 %v551
        %v736 = vpop.f32.mrb[0].mxu0
        %v737 = vadd.f32 0.0, %v736
        %v738 = vpop.f32.mrb[0].mxu0
        %v739 = vadd.f32 0.0, %v738
        %740 = vmatprep.mubr.f32.mxu0 0.0
        %741 = vmatmul.mubr.f32.gmra.mrb[0].mxu0 %v554
        %v742 = vpop.f32.mrb[0].mxu0
        %v743 = vadd.f32 0.0, %v742
        %v744 = vpop.f32.mrb[0].mxu0
        %v745 = vadd.f32 0.0, %v744
        %746 = vmatprep.mubr.f32.mxu0 0.0
        %747 = vmatmul.mubr.f32.gmra.mrb[0].mxu0 %v557
        %v748 = vpop.f32.mrb[0].mxu0
        %v749 = vadd.f32 0.0, %v748
        %v750 = vpop.f32.mrb[0].mxu0
        %v751 = vadd.f32 0.0, %v750
        %752 = vmatprep.mubr.f32.mxu0 0.0
        %753 = vmatmul.mubr.f32.gmra.mrb[0].mxu0 %v560
        %v754 = vpop.f32.mrb[0].mxu0
        %v755 = vadd.f32 0.0, %v754
        %v756 = vpop.f32.mrb[0].mxu0
        %v757 = vadd.f32 0.0, %v756
        %758 = vmatprep.mubr.f32.mxu0 0.0
        %759 = vmatmul.mubr.f32.gmra.mrb[0].mxu0 %v563
        %v760 = vpop.f32.mrb[0].mxu0
        %v761 = vadd.f32 0.0, %v760
        %v762 = vpop.f32.mrb[0].mxu0
        %v763 = vadd.f32 0.0, %v762
        %764 = vmatprep.mubr.f32.mxu0 0.0
        %765 = vmatmul.mubr.f32.gmra.mrb[0].mxu0 %v566
        %v766 = vpop.f32.mrb[0].mxu0
        %v767 = vadd.f32 0.0, %v766
        %v768 = vpop.f32.mrb[0].mxu0
        %v769 = vadd.f32 0.0, %v768
        %770 = vmatprep.mubr.f32.mxu0 0.0
        %771 = vmatmul.mubr.f32.gmra.mrb[0].mxu0 %v569
        %v772 = vpop.f32.mrb[0].mxu0
        %v773 = vadd.f32 0.0, %v772
        %v774 = vpop.f32.mrb[0].mxu0
        %v775 = vadd.f32 0.0, %v774
        %776 = vmatprep.mubr.f32.mxu0 0.0
        %777 = vmatmul.mubr.f32.gmra.mrb[0].mxu0 %v572
        %v778 = vpop.f32.mrb[0].mxu0
        %v779 = vadd.f32 0.0, %v778
        %v780 = vpop.f32.mrb[0].mxu0
        %v781 = vadd.f32 0.0, %v780
        %782 = vmatprep.mubr.f32.mxu0 0.0
        %783 = vmatmul.mubr.f32.gmra.mrb[0].mxu0 %v575
        %v784 = vpop.f32.mrb[0].mxu0
        %v785 = vadd.f32 0.0, %v784
        %v786 = vpop.f32.mrb[0].mxu0
        %v787 = vadd.f32 0.0, %v786
        %788 = vmatprep.mubr.f32.mxu0 0.0
        %789 = vmatmul.mubr.f32.gmra.mrb[0].mxu0 %v578
        %v790 = vpop.f32.mrb[0].mxu0
        %v791 = vadd.f32 0.0, %v790
        %v792 = vpop.f32.mrb[0].mxu0
        %v793 = vadd.f32 0.0, %v792
        %794 = vmatprep.mubr.f32.mxu0 0.0
        %795 = vmatmul.mubr.f32.gmra.mrb[0].mxu0 %v581
        %v796 = vpop.f32.mrb[0].mxu0
        %v797 = vadd.f32 0.0, %v796
        %v798 = vpop.f32.mrb[0].mxu0
        %v799 = vadd.f32 0.0, %v798
        %800 = vmatprep.mubr.f32.mxu0 0.0
        %801 = vmatmul.mubr.f32.gmra.mrb[0].mxu0 %v584
        %v802 = vpop.f32.mrb[0].mxu0
        %v803 = vadd.f32 0.0, %v802
        %v804 = vpop.f32.mrb[0].mxu0
        %v805 = vadd.f32 0.0, %v804
        %806 = vmatprep.mubr.f32.mxu0 0.0
        %807 = vmatmul.mubr.f32.gmra.mrb[0].mxu0 %v587
        %v808 = vpop.f32.mrb[0].mxu0
        %v809 = vadd.f32 0.0, %v808
        %v810 = vpop.f32.mrb[0].mxu0
        %v811 = vadd.f32 0.0, %v810
        %812 = vmatprep.mubr.f32.mxu0 0.0
        %813 = vmatmul.mubr.f32.gmra.mrb[0].mxu0 %v590
        %v814 = vpop.f32.mrb[0].mxu0
        %v815 = vadd.f32 0.0, %v814
        %v816 = vpop.f32.mrb[0].mxu0
        %v817 = vadd.f32 0.0, %v816
        %818 = vmatprep.mubr.f32.mxu0 0.0
        %819 = vmatmul.mubr.f32.gmra.mrb[0].mxu0 %v593
        %v820 = vpop.f32.mrb[0].mxu0
        %v821 = vadd.f32 0.0, %v820
        %v822 = vpop.f32.mrb[0].mxu0
        %v823 = vadd.f32 0.0, %v822
        %824 = vmatprep.mubr.f32.mxu0 0.0
        %825 = vmatmul.mubr.f32.gmra.mrb[0].mxu0 %v596
        %v826 = vpop.f32.mrb[0].mxu0
        %v827 = vadd.f32 0.0, %v826
        %v828 = vpop.f32.mrb[0].mxu0
        %v829 = vadd.f32 0.0, %v828
        %830 = vmatprep.mubr.f32.mxu0 0.0
        %831 = vmatmul.mubr.f32.gmra.mrb[0].mxu0 %v599
        %v832 = vpop.f32.mrb[0].mxu0
        %v833 = vadd.f32 0.0, %v832
        %v834 = vpop.f32.mrb[0].mxu0
        %v835 = vadd.f32 0.0, %v834
        %836 = vmatprep.mubr.f32.mxu0 0.0
        %837 = vmatmul.mubr.f32.gmra.mrb[0].mxu0 %v602
        %v838 = vpop.f32.mrb[0].mxu0
        %v839 = vadd.f32 0.0, %v838
        %v840 = vpop.f32.mrb[0].mxu0
        %v841 = vadd.f32 0.0, %v840
        %842 = vmatprep.mubr.f32.mxu0 0.0
        %843 = vmatmul.mubr.f32.gmra.mrb[0].mxu0 %v605
        %v844 = vpop.f32.mrb[0].mxu0
        %v845 = vadd.f32 0.0, %v844
        %v846 = vpop.f32.mrb[0].mxu0
        %v847 = vadd.f32 0.0, %v846
        %848 = vmatprep.mubr.f32.mxu0 0.0
        %849 = vmatmul.mubr.f32.gmra.mrb[0].mxu0 %v608
        %v850 = vpop.f32.mrb[0].mxu0
        %v851 = vadd.f32 0.0, %v850
        %v852 = vpop.f32.mrb[0].mxu0
        %v853 = vadd.f32 0.0, %v852
        %854 = vmatprep.mubr.f32.mxu0 0.0
        %855 = vmatmul.mubr.f32.gmra.mrb[0].mxu0 %v611
        %v856 = vpop.f32.mrb[0].mxu0
        %v857 = vadd.f32 0.0, %v856
        %v858 = vpop.f32.mrb[0].mxu0
        %v859 = vadd.f32 0.0, %v858
        %860 = vmatprep.mubr.f32.mxu0 0.0
        %861 = vmatmul.mubr.f32.gmra.mrb[0].mxu0 %v614
        %v862 = vpop.f32.mrb[0].mxu0
        %v863 = vadd.f32 0.0, %v862
        %v864 = vpop.f32.mrb[0].mxu0
        %v865 = vadd.f32 0.0, %v864
        %866 = vmatprep.mubr.f32.mxu0 0.0
        %867 = vmatmul.mubr.f32.gmra.mrb[0].mxu0 %v617
        %v868 = vpop.f32.mrb[0].mxu0
        %v869 = vadd.f32 0.0, %v868
        %v870 = vpop.f32.mrb[0].mxu0
        %v871 = vadd.f32 0.0, %v870
        %872 = vmatprep.mubr.f32.mxu0 0.0
        %873 = vmatmul.mubr.f32.gmra.mrb[0].mxu0 %v620
        %v874 = vpop.f32.mrb[0].mxu0
        %v875 = vadd.f32 0.0, %v874
        %v876 = vpop.f32.mrb[0].mxu0
        %v877 = vadd.f32 0.0, %v876
        %878 = vdwg.mxu0
        %v879 = vmul.f32 %v689, %v332
        %v880 = vmul.f32 %v691, %v333
        %v881 = vmul.f32 %v695, %v334
        %v882 = vmul.f32 %v697, %v335
        %v883 = vmul.f32 %v701, %v336
        %v884 = vmul.f32 %v703, %v337
        %v885 = vmul.f32 %v707, %v338
        %v886 = vmul.f32 %v709, %v339
        %v887 = vmul.f32 %v713, %v340
        %v888 = vmul.f32 %v715, %v341
        %v889 = vmul.f32 %v719, %v342
        %v890 = vmul.f32 %v721, %v343
        %v891 = vmul.f32 %v725, %v344
        %v892 = vmul.f32 %v727, %v345
        %v893 = vmul.f32 %v731, %v346
        %v894 = vmul.f32 %v733, %v347
        %v895 = vmul.f32 %v737, %v348
        %v896 = vmul.f32 %v739, %v349
        %v897 = vmul.f32 %v743, %v350
        %v898 = vmul.f32 %v745, %v351
        %v899 = vmul.f32 %v749, %v352
        %v900 = vmul.f32 %v751, %v353
        %v901 = vmul.f32 %v755, %v354
        %v902 = vmul.f32 %v757, %v355
        %v903 = vmul.f32 %v761, %v356
        %v904 = vmul.f32 %v763, %v357
        %v905 = vmul.f32 %v767, %v358
        %v906 = vmul.f32 %v769, %v359
        %v907 = vmul.f32 %v773, %v360
        %v908 = vmul.f32 %v775, %v361
        %v909 = vmul.f32 %v779, %v362
        %v910 = vmul.f32 %v781, %v363
        %v911 = vmul.f32 %v785, %v364
        %v912 = vmul.f32 %v787, %v365
        %v913 = vmul.f32 %v791, %v366
        %v914 = vmul.f32 %v793, %v367
        %v915 = vmul.f32 %v797, %v368
        %v916 = vmul.f32 %v799, %v369
        %v917 = vmul.f32 %v803, %v370
        %v918 = vmul.f32 %v805, %v371
        %v919 = vmul.f32 %v809, %v372
        %v920 = vmul.f32 %v811, %v373
        %v921 = vmul.f32 %v815, %v374
        %v922 = vmul.f32 %v817, %v375
        %v923 = vmul.f32 %v821, %v376
        %v924 = vmul.f32 %v823, %v377
        %v925 = vmul.f32 %v827, %v378
        %v926 = vmul.f32 %v829, %v379
        %v927 = vmul.f32 %v833, %v380
        %v928 = vmul.f32 %v835, %v381
        %v929 = vmul.f32 %v839, %v382
        %v930 = vmul.f32 %v841, %v383
        %v931 = vmul.f32 %v845, %v384
        %v932 = vmul.f32 %v847, %v385
        %v933 = vmul.f32 %v851, %v386
        %v934 = vmul.f32 %v853, %v387
        %v935 = vmul.f32 %v857, %v388
        %v936 = vmul.f32 %v859, %v389
        %v937 = vmul.f32 %v863, %v390
        %v938 = vmul.f32 %v865, %v391
        %v939 = vmul.f32 %v869, %v392
        %v940 = vmul.f32 %v871, %v393
        %v941 = vmul.f32 %v875, %v394
        %v942 = vmul.f32 %v877, %v395
        %943 = vxpose.xlu0.b32.start [1/16] %v268, 128
        %944 = vxpose.xlu0.b32.cont [2/16] %v269, 128
        %945 = vxpose.xlu0.b32.cont [3/16] %v270, 128
        %946 = vxpose.xlu0.b32.cont [4/16] %v271, 128
        %947 = vxpose.xlu0.b32.cont [5/16] %v272, 128
        %948 = vxpose.xlu0.b32.cont [6/16] %v273, 128
        %949 = vxpose.xlu0.b32.cont [7/16] %v274, 128
        %950 = vxpose.xlu0.b32.cont [8/16] %v275, 128
        %951 = vxpose.xlu0.b32.cont [9/16] %v276, 128
        %952 = vxpose.xlu0.b32.cont [10/16] %v277, 128
        %953 = vxpose.xlu0.b32.cont [11/16] %v278, 128
        %954 = vxpose.xlu0.b32.cont [12/16] %v279, 128
        %955 = vxpose.xlu0.b32.cont [13/16] %v280, 128
        %956 = vxpose.xlu0.b32.cont [14/16] %v281, 128
        %957 = vxpose.xlu0.b32.cont [15/16] %v282, 128
        %958 = vxpose.xlu0.b32.end [16/16] %v283, 128
        %v959 = vpop.trf.xlu0
        %v960 = vpop.trf.xlu0
        %v961 = vpop.trf.xlu0
        %v962 = vpop.trf.xlu0
        %v963 = vpop.trf.xlu0
        %v964 = vpop.trf.xlu0
        %v965 = vpop.trf.xlu0
        %v966 = vpop.trf.xlu0
        %v967 = vpop.trf.xlu0
        %v968 = vpop.trf.xlu0
        %v969 = vpop.trf.xlu0
        %v970 = vpop.trf.xlu0
        %v971 = vpop.trf.xlu0
        %v972 = vpop.trf.xlu0
        %v973 = vpop.trf.xlu0
        %v974 = vpop.trf.xlu0
        %975 = vxpose.xlu0.b32.start [1/16] %v284, 128
        %976 = vxpose.xlu0.b32.cont [2/16] %v285, 128
        %977 = vxpose.xlu0.b32.cont [3/16] %v286, 128
        %978 = vxpose.xlu0.b32.cont [4/16] %v287, 128
        %979 = vxpose.xlu0.b32.cont [5/16] %v288, 128
        %980 = vxpose.xlu0.b32.cont [6/16] %v289, 128
        %981 = vxpose.xlu0.b32.cont [7/16] %v290, 128
        %982 = vxpose.xlu0.b32.cont [8/16] %v291, 128
        %983 = vxpose.xlu0.b32.cont [9/16] %v292, 128
        %984 = vxpose.xlu0.b32.cont [10/16] %v293, 128
        %985 = vxpose.xlu0.b32.cont [11/16] %v294, 128
        %986 = vxpose.xlu0.b32.cont [12/16] %v295, 128
        %987 = vxpose.xlu0.b32.cont [13/16] %v296, 128
        %988 = vxpose.xlu0.b32.cont [14/16] %v297, 128
        %989 = vxpose.xlu0.b32.cont [15/16] %v298, 128
        %990 = vxpose.xlu0.b32.end [16/16] %v299, 128
        %v991 = vpop.trf.xlu0
        %v992 = vpop.trf.xlu0
        %v993 = vpop.trf.xlu0
        %v994 = vpop.trf.xlu0
        %v995 = vpop.trf.xlu0
        %v996 = vpop.trf.xlu0
        %v997 = vpop.trf.xlu0
        %v998 = vpop.trf.xlu0
        %v999 = vpop.trf.xlu0
        %v1000 = vpop.trf.xlu0
        %v1001 = vpop.trf.xlu0
        %v1002 = vpop.trf.xlu0
        %v1003 = vpop.trf.xlu0
        %v1004 = vpop.trf.xlu0
        %v1005 = vpop.trf.xlu0
        %v1006 = vpop.trf.xlu0
        %1007 = vmatprep.subr.mxu0 %v880
        %1008 = vmatpush1.msra.mxu0 %v879
        %1009 = vmatprep.subr.mxu0 %v882
        %1010 = vmatpush1.msra.mxu0 %v881
        %1011 = vmatprep.subr.mxu0 %v884
        %1012 = vmatpush1.msra.mxu0 %v883
        %1013 = vmatprep.subr.mxu0 %v886
        %1014 = vmatpush1.msra.mxu0 %v885
        %1015 = vmatprep.subr.mxu0 %v888
        %1016 = vmatpush1.msra.mxu0 %v887
        %1017 = vmatprep.subr.mxu0 %v890
        %1018 = vmatpush1.msra.mxu0 %v889
        %1019 = vmatprep.subr.mxu0 %v892
        %1020 = vmatpush1.msra.mxu0 %v891
        %1021 = vmatprep.subr.mxu0 %v894
        %1022 = vmatpush1.msra.mxu0 %v893
        %1023 = vmatprep.subr.mxu0 %v896
        %1024 = vmatpush1.msra.mxu0 %v895
        %1025 = vmatprep.subr.mxu0 %v898
        %1026 = vmatpush1.msra.mxu0 %v897
        %1027 = vmatprep.subr.mxu0 %v900
        %1028 = vmatpush1.msra.mxu0 %v899
        %1029 = vmatprep.subr.mxu0 %v902
        %1030 = vmatpush1.msra.mxu0 %v901
        %1031 = vmatprep.subr.mxu0 %v904
        %1032 = vmatpush1.msra.mxu0 %v903
        %1033 = vmatprep.subr.mxu0 %v906
        %1034 = vmatpush1.msra.mxu0 %v905
        %1035 = vmatprep.subr.mxu0 %v908
        %1036 = vmatpush1.msra.mxu0 %v907
        %1037 = vmatprep.subr.mxu0 %v910
        %1038 = vmatpush1.msra.mxu0 %v909
        %1039 = vmatprep.subr.mxu0 %v912
        %1040 = vmatpush1.msra.mxu0 %v911
        %1041 = vmatprep.subr.mxu0 %v914
        %1042 = vmatpush1.msra.mxu0 %v913
        %1043 = vmatprep.subr.mxu0 %v916
        %1044 = vmatpush1.msra.mxu0 %v915
        %1045 = vmatprep.subr.mxu0 %v918
        %1046 = vmatpush1.msra.mxu0 %v917
        %1047 = vmatprep.subr.mxu0 %v920
        %1048 = vmatpush1.msra.mxu0 %v919
        %1049 = vmatprep.subr.mxu0 %v922
        %1050 = vmatpush1.msra.mxu0 %v921
        %1051 = vmatprep.subr.mxu0 %v924
        %1052 = vmatpush1.msra.mxu0 %v923
        %1053 = vmatprep.subr.mxu0 %v926
        %1054 = vmatpush1.msra.mxu0 %v925
        %1055 = vmatprep.subr.mxu0 %v928
        %1056 = vmatpush1.msra.mxu0 %v927
        %1057 = vmatprep.subr.mxu0 %v930
        %1058 = vmatpush1.msra.mxu0 %v929
        %1059 = vmatprep.subr.mxu0 %v932
        %1060 = vmatpush1.msra.mxu0 %v931
        %1061 = vmatprep.subr.mxu0 %v934
        %1062 = vmatpush1.msra.mxu0 %v933
        %1063 = vmatprep.subr.mxu0 %v936
        %1064 = vmatpush1.msra.mxu0 %v935
        %1065 = vmatprep.subr.mxu0 %v938
        %1066 = vmatpush1.msra.mxu0 %v937
        %1067 = vmatprep.subr.mxu0 %v940
        %1068 = vmatpush1.msra.mxu0 %v939
        %1069 = vmatprep.subr.mxu0 %v942
        %1070 = vmatpush1.msra.mxu0 %v941
        %1071 = vmatprep.mubr.f32.mxu0 %v991
        %1072 = vmatmul.mubr.f32.gmra.mrb[0].mxu0 %v959
        %v1073 = vpop.f32.mrb[0].mxu0
        %v1074 = vadd.f32 0.0, %v1073
        %v1075 = vpop.f32.mrb[0].mxu0
        %v1076 = vadd.f32 0.0, %v1075
        %1077 = vmatprep.mubr.f32.mxu0 %v992
        %1078 = vmatmul.mubr.f32.gmra.mrb[0].mxu0 %v960
        %v1079 = vpop.f32.mrb[0].mxu0
        %v1080 = vadd.f32 0.0, %v1079
        %v1081 = vpop.f32.mrb[0].mxu0
        %v1082 = vadd.f32 0.0, %v1081
        %1083 = vdwg.mxu0
        %1084 = vmatprep.subr.mxu0 0.0
        %1085 = vmatpush1.msra.mxu0 %v268
        %1086 = vmatprep.subr.mxu0 0.0
        %1087 = vmatpush1.msra.mxu0 %v269
        %1088 = vmatprep.subr.mxu0 0.0
        %1089 = vmatpush1.msra.mxu0 %v270
        %1090 = vmatprep.subr.mxu0 0.0
        %1091 = vmatpush1.msra.mxu0 %v271
        %1092 = vmatprep.subr.mxu0 0.0
        %1093 = vmatpush1.msra.mxu0 %v272
        %1094 = vmatprep.subr.mxu0 0.0
        %1095 = vmatpush1.msra.mxu0 %v273
        %1096 = vmatprep.subr.mxu0 0.0
        %1097 = vmatpush1.msra.mxu0 %v274
        %1098 = vmatprep.subr.mxu0 0.0
        %1099 = vmatpush1.msra.mxu0 %v275
        %1100 = vmatprep.subr.mxu0 0.0
        %1101 = vmatpush1.msra.mxu0 %v276
        %1102 = vmatprep.subr.mxu0 0.0
        %1103 = vmatpush1.msra.mxu0 %v277
        %1104 = vmatprep.subr.mxu0 0.0
        %1105 = vmatpush1.msra.mxu0 %v278
        %1106 = vmatprep.subr.mxu0 0.0
        %1107 = vmatpush1.msra.mxu0 %v279
        %1108 = vmatprep.subr.mxu0 0.0
        %1109 = vmatpush1.msra.mxu0 %v280
        %1110 = vmatprep.subr.mxu0 0.0
        %1111 = vmatpush1.msra.mxu0 %v281
        %1112 = vmatprep.subr.mxu0 0.0
        %1113 = vmatpush1.msra.mxu0 %v282
        %1114 = vmatprep.subr.mxu0 0.0
        %1115 = vmatpush1.msra.mxu0 %v283
        %1116 = vmatprep.subr.mxu0 0.0
        %1117 = vmatpush1.msra.mxu0 %v284
        %1118 = vmatprep.subr.mxu0 0.0
        %1119 = vmatpush1.msra.mxu0 %v285
        %1120 = vmatprep.subr.mxu0 0.0
        %1121 = vmatpush1.msra.mxu0 %v286
        %1122 = vmatprep.subr.mxu0 0.0
        %1123 = vmatpush1.msra.mxu0 %v287
        %1124 = vmatprep.subr.mxu0 0.0
        %1125 = vmatpush1.msra.mxu0 %v288
        %1126 = vmatprep.subr.mxu0 0.0
        %1127 = vmatpush1.msra.mxu0 %v289
        %1128 = vmatprep.subr.mxu0 0.0
        %1129 = vmatpush1.msra.mxu0 %v290
        %1130 = vmatprep.subr.mxu0 0.0
        %1131 = vmatpush1.msra.mxu0 %v291
        %1132 = vmatprep.subr.mxu0 0.0
        %1133 = vmatpush1.msra.mxu0 %v292
        %1134 = vmatprep.subr.mxu0 0.0
        %1135 = vmatpush1.msra.mxu0 %v293
        %1136 = vmatprep.subr.mxu0 0.0
        %1137 = vmatpush1.msra.mxu0 %v294
        %1138 = vmatprep.subr.mxu0 0.0
        %1139 = vmatpush1.msra.mxu0 %v295
        %1140 = vmatprep.subr.mxu0 0.0
        %1141 = vmatpush1.msra.mxu0 %v296
        %1142 = vmatprep.subr.mxu0 0.0
        %1143 = vmatpush1.msra.mxu0 %v297
        %1144 = vmatprep.subr.mxu0 0.0
        %1145 = vmatpush1.msra.mxu0 %v298
        %1146 = vmatprep.subr.mxu0 0.0
        %1147 = vmatpush1.msra.mxu0 %v299
        %1148 = vmatprep.mubr.f32.mxu0 %v1076
        %1149 = vmatmul.mubr.f32.gmra.mrb[0].mxu0 %v1074
        %v1150 = vpop.f32.mrb[0].mxu0
        %v1151 = vadd.f32 0.0, %v1150
        %v1152 = vpop.f32.mrb[0].mxu0
        %1153 = vmatprep.mubr.f32.mxu0 %v1082
        %1154 = vmatmul.mubr.f32.gmra.mrb[0].mxu0 %v1080
        %v1155 = vpop.f32.mrb[0].mxu0
        %v1156 = vadd.f32 0.0, %v1155
        %v1157 = vpop.f32.mrb[0].mxu0
        %1158 = vdwg.mxu0
        %vm1159 = vcmask 130048
        %v1160 = vsel %vm1159, %v1151, -inf
        %1161 = vmax.xlane.f32.xlu0 %v1160
        %v1162 = vpop.xlane.xlu0 %1161
        %v1163 = vsel %vm1159, %v1156, -inf
        %1164 = vmax.xlane.f32.xlu0 %v1163
        %v1165 = vpop.xlane.xlu0 %1164
        %v1166 = vsub.f32 %v1151, %v1162
        %v1167 = vsub.f32 %v1156, %v1165
        %v1168 = vmul.f32 %v1166, 1.442695
        %v1169 = vpow.pop %v1168
        %v1170 = vmul.f32 %v1167, 1.442695
        %v1171 = vpow.pop %v1170
        %v1172 = vsel %vm1159, %v1169, 0.0
        %1173 = vadd.xlane.f32.xlu0 %v1172
        %v1174 = vpop.xlane.xlu0 %1173
        %v1175 = vsel %vm1159, %v1171, 0.0
        %1176 = vadd.xlane.f32.xlu0 %v1175
        %v1177 = vpop.xlane.xlu0 %1176
        %v1178 = vrcp.pop %v1174
        %v1179 = vrcp.pop %v1177
        %v1180 = vmul.f32 %v1169, %v1178
        %v1181 = vmul.f32 %v1171, %v1179
        %v1183 = vsel %vm1159, %v268, 0
        %v1186 = vsel %vm1159, %v269, 0
        %v1189 = vsel %vm1159, %v270, 0
        %v1192 = vsel %vm1159, %v271, 0
        %v1195 = vsel %vm1159, %v272, 0
        %v1198 = vsel %vm1159, %v273, 0
        %v1201 = vsel %vm1159, %v274, 0
        %v1204 = vsel %vm1159, %v275, 0
        %v1207 = vsel %vm1159, %v276, 0
        %v1210 = vsel %vm1159, %v277, 0
        %v1213 = vsel %vm1159, %v278, 0
        %v1216 = vsel %vm1159, %v279, 0
        %v1219 = vsel %vm1159, %v280, 0
        %v1222 = vsel %vm1159, %v281, 0
        %v1225 = vsel %vm1159, %v282, 0
        %v1228 = vsel %vm1159, %v283, 0
        %v1231 = vsel %vm1159, %v284, 0
        %v1234 = vsel %vm1159, %v285, 0
        %v1237 = vsel %vm1159, %v286, 0
        %v1240 = vsel %vm1159, %v287, 0
        %v1243 = vsel %vm1159, %v288, 0
        %v1246 = vsel %vm1159, %v289, 0
        %v1249 = vsel %vm1159, %v290, 0
        %v1252 = vsel %vm1159, %v291, 0
        %v1255 = vsel %vm1159, %v292, 0
        %v1258 = vsel %vm1159, %v293, 0
        %v1261 = vsel %vm1159, %v294, 0
        %v1264 = vsel %vm1159, %v295, 0
        %v1267 = vsel %vm1159, %v296, 0
        %v1270 = vsel %vm1159, %v297, 0
        %v1273 = vsel %vm1159, %v298, 0
        %v1276 = vsel %vm1159, %v299, 0
        %1278 = vmatprep.subr.mxu0 0.0
        %1279 = vmatpush1.msra.mxu0 %v1180
        %1280 = vmatprep.subr.mxu0 0.0
        %1281 = vmatpush1.msra.mxu0 %v1181
        %1282 = vmatprep.subr.mxu0 0.0
        %1283 = vmatpush1.msra.mxu0 0.0
        %1284 = vmatprep.subr.mxu0 0.0
        %1285 = vmatpush1.msra.mxu0 0.0
        %1286 = vmatprep.subr.mxu0 0.0
        %1287 = vmatpush1.msra.mxu0 0.0
        %1288 = vmatprep.subr.mxu0 0.0
        %1289 = vmatpush1.msra.mxu0 0.0
        %1290 = vmatprep.subr.mxu0 0.0
        %1291 = vmatpush1.msra.mxu0 0.0
        %1292 = vmatprep.subr.mxu0 0.0
        %1293 = vmatpush1.msra.mxu0 0.0
        %1294 = vmatprep.subr.mxu0 0.0
        %1295 = vmatpush1.msra.mxu0 0.0
        %1296 = vmatprep.subr.mxu0 0.0
        %1297 = vmatpush1.msra.mxu0 0.0
        %1298 = vmatprep.subr.mxu0 0.0
        %1299 = vmatpush1.msra.mxu0 0.0
        %1300 = vmatprep.subr.mxu0 0.0
        %1301 = vmatpush1.msra.mxu0 0.0
        %1302 = vmatprep.subr.mxu0 0.0
        %1303 = vmatpush1.msra.mxu0 0.0
        %1304 = vmatprep.subr.mxu0 0.0
        %1305 = vmatpush1.msra.mxu0 0.0
        %1306 = vmatprep.subr.mxu0 0.0
        %1307 = vmatpush1.msra.mxu0 0.0
        %1308 = vmatprep.subr.mxu0 0.0
        %1309 = vmatpush1.msra.mxu0 0.0
        %1310 = vmatprep.subr.mxu0 0.0
        %1311 = vmatpush1.msra.mxu0 0.0
        %1312 = vmatprep.subr.mxu0 0.0
        %1313 = vmatpush1.msra.mxu0 0.0
        %1314 = vmatprep.subr.mxu0 0.0
        %1315 = vmatpush1.msra.mxu0 0.0
        %1316 = vmatprep.subr.mxu0 0.0
        %1317 = vmatpush1.msra.mxu0 0.0
        %1318 = vmatprep.subr.mxu0 0.0
        %1319 = vmatpush1.msra.mxu0 0.0
        %1320 = vmatprep.subr.mxu0 0.0
        %1321 = vmatpush1.msra.mxu0 0.0
        %1322 = vmatprep.subr.mxu0 0.0
        %1323 = vmatpush1.msra.mxu0 0.0
        %1324 = vmatprep.subr.mxu0 0.0
        %1325 = vmatpush1.msra.mxu0 0.0
        %1326 = vmatprep.subr.mxu0 0.0
        %1327 = vmatpush1.msra.mxu0 0.0
        %1328 = vmatprep.subr.mxu0 0.0
        %1329 = vmatpush1.msra.mxu0 0.0
        %1330 = vmatprep.subr.mxu0 0.0
        %1331 = vmatpush1.msra.mxu0 0.0
        %1332 = vmatprep.subr.mxu0 0.0
        %1333 = vmatpush1.msra.mxu0 0.0
        %1334 = vmatprep.subr.mxu0 0.0
        %1335 = vmatpush1.msra.mxu0 0.0
        %1336 = vmatprep.subr.mxu0 0.0
        %1337 = vmatpush1.msra.mxu0 0.0
        %1338 = vmatprep.subr.mxu0 0.0
        %1339 = vmatpush1.msra.mxu0 0.0
        %1340 = vmatprep.subr.mxu0 0.0
        %1341 = vmatpush1.msra.mxu0 0.0
        %1342 = vmatprep.mubr.f32.mxu0 0.0
        %1343 = vmatmul.mubr.f32.gmra.mrb[0].mxu0 %v1183
        %v1344 = vpop.f32.mrb[0].mxu0
        %v1345 = vadd.f32 0.0, %v1344
        %v1346 = vpop.f32.mrb[0].mxu0
        %1347 = vmatprep.mubr.f32.mxu0 0.0
        %1348 = vmatmul.mubr.f32.gmra.mrb[0].mxu0 %v1186
        %v1349 = vpop.f32.mrb[0].mxu0
        %v1350 = vadd.f32 0.0, %v1349
        %v1351 = vpop.f32.mrb[0].mxu0
        %1352 = vmatprep.mubr.f32.mxu0 0.0
        %1353 = vmatmul.mubr.f32.gmra.mrb[0].mxu0 %v1189
        %v1354 = vpop.f32.mrb[0].mxu0
        %v1355 = vadd.f32 0.0, %v1354
        %v1356 = vpop.f32.mrb[0].mxu0
        %1357 = vmatprep.mubr.f32.mxu0 0.0
        %1358 = vmatmul.mubr.f32.gmra.mrb[0].mxu0 %v1192
        %v1359 = vpop.f32.mrb[0].mxu0
        %v1360 = vadd.f32 0.0, %v1359
        %v1361 = vpop.f32.mrb[0].mxu0
        %1362 = vmatprep.mubr.f32.mxu0 0.0
        %1363 = vmatmul.mubr.f32.gmra.mrb[0].mxu0 %v1195
        %v1364 = vpop.f32.mrb[0].mxu0
        %v1365 = vadd.f32 0.0, %v1364
        %v1366 = vpop.f32.mrb[0].mxu0
        %1367 = vmatprep.mubr.f32.mxu0 0.0
        %1368 = vmatmul.mubr.f32.gmra.mrb[0].mxu0 %v1198
        %v1369 = vpop.f32.mrb[0].mxu0
        %v1370 = vadd.f32 0.0, %v1369
        %v1371 = vpop.f32.mrb[0].mxu0
        %1372 = vmatprep.mubr.f32.mxu0 0.0
        %1373 = vmatmul.mubr.f32.gmra.mrb[0].mxu0 %v1201
        %v1374 = vpop.f32.mrb[0].mxu0
        %v1375 = vadd.f32 0.0, %v1374
        %v1376 = vpop.f32.mrb[0].mxu0
        %1377 = vmatprep.mubr.f32.mxu0 0.0
        %1378 = vmatmul.mubr.f32.gmra.mrb[0].mxu0 %v1204
        %v1379 = vpop.f32.mrb[0].mxu0
        %v1380 = vadd.f32 0.0, %v1379
        %v1381 = vpop.f32.mrb[0].mxu0
        %1382 = vmatprep.mubr.f32.mxu0 0.0
        %1383 = vmatmul.mubr.f32.gmra.mrb[0].mxu0 %v1207
        %v1384 = vpop.f32.mrb[0].mxu0
        %v1385 = vadd.f32 0.0, %v1384
        %v1386 = vpop.f32.mrb[0].mxu0
        %1387 = vmatprep.mubr.f32.mxu0 0.0
        %1388 = vmatmul.mubr.f32.gmra.mrb[0].mxu0 %v1210
        %v1389 = vpop.f32.mrb[0].mxu0
        %v1390 = vadd.f32 0.0, %v1389
        %v1391 = vpop.f32.mrb[0].mxu0
        %1392 = vmatprep.mubr.f32.mxu0 0.0
        %1393 = vmatmul.mubr.f32.gmra.mrb[0].mxu0 %v1213
        %v1394 = vpop.f32.mrb[0].mxu0
        %v1395 = vadd.f32 0.0, %v1394
        %v1396 = vpop.f32.mrb[0].mxu0
        %1397 = vmatprep.mubr.f32.mxu0 0.0
        %1398 = vmatmul.mubr.f32.gmra.mrb[0].mxu0 %v1216
        %v1399 = vpop.f32.mrb[0].mxu0
        %v1400 = vadd.f32 0.0, %v1399
        %v1401 = vpop.f32.mrb[0].mxu0
        %1402 = vmatprep.mubr.f32.mxu0 0.0
        %1403 = vmatmul.mubr.f32.gmra.mrb[0].mxu0 %v1219
        %v1404 = vpop.f32.mrb[0].mxu0
        %v1405 = vadd.f32 0.0, %v1404
        %v1406 = vpop.f32.mrb[0].mxu0
        %1407 = vmatprep.mubr.f32.mxu0 0.0
        %1408 = vmatmul.mubr.f32.gmra.mrb[0].mxu0 %v1222
        %v1409 = vpop.f32.mrb[0].mxu0
        %v1410 = vadd.f32 0.0, %v1409
        %v1411 = vpop.f32.mrb[0].mxu0
        %1412 = vmatprep.mubr.f32.mxu0 0.0
        %1413 = vmatmul.mubr.f32.gmra.mrb[0].mxu0 %v1225
        %v1414 = vpop.f32.mrb[0].mxu0
        %v1415 = vadd.f32 0.0, %v1414
        %v1416 = vpop.f32.mrb[0].mxu0
        %1417 = vmatprep.mubr.f32.mxu0 0.0
        %1418 = vmatmul.mubr.f32.gmra.mrb[0].mxu0 %v1228
        %v1419 = vpop.f32.mrb[0].mxu0
        %v1420 = vadd.f32 0.0, %v1419
        %v1421 = vpop.f32.mrb[0].mxu0
        %1422 = vmatprep.mubr.f32.mxu0 0.0
        %1423 = vmatmul.mubr.f32.gmra.mrb[0].mxu0 %v1231
        %v1424 = vpop.f32.mrb[0].mxu0
        %v1425 = vadd.f32 0.0, %v1424
        %v1426 = vpop.f32.mrb[0].mxu0
        %1427 = vmatprep.mubr.f32.mxu0 0.0
        %1428 = vmatmul.mubr.f32.gmra.mrb[0].mxu0 %v1234
        %v1429 = vpop.f32.mrb[0].mxu0
        %v1430 = vadd.f32 0.0, %v1429
        %v1431 = vpop.f32.mrb[0].mxu0
        %1432 = vmatprep.mubr.f32.mxu0 0.0
        %1433 = vmatmul.mubr.f32.gmra.mrb[0].mxu0 %v1237
        %v1434 = vpop.f32.mrb[0].mxu0
        %v1435 = vadd.f32 0.0, %v1434
        %v1436 = vpop.f32.mrb[0].mxu0
        %1437 = vmatprep.mubr.f32.mxu0 0.0
        %1438 = vmatmul.mubr.f32.gmra.mrb[0].mxu0 %v1240
        %v1439 = vpop.f32.mrb[0].mxu0
        %v1440 = vadd.f32 0.0, %v1439
        %v1441 = vpop.f32.mrb[0].mxu0
        %1442 = vmatprep.mubr.f32.mxu0 0.0
        %1443 = vmatmul.mubr.f32.gmra.mrb[0].mxu0 %v1243
        %v1444 = vpop.f32.mrb[0].mxu0
        %v1445 = vadd.f32 0.0, %v1444
        %v1446 = vpop.f32.mrb[0].mxu0
        %1447 = vmatprep.mubr.f32.mxu0 0.0
        %1448 = vmatmul.mubr.f32.gmra.mrb[0].mxu0 %v1246
        %v1449 = vpop.f32.mrb[0].mxu0
        %v1450 = vadd.f32 0.0, %v1449
        %v1451 = vpop.f32.mrb[0].mxu0
        %1452 = vmatprep.mubr.f32.mxu0 0.0
        %1453 = vmatmul.mubr.f32.gmra.mrb[0].mxu0 %v1249
        %v1454 = vpop.f32.mrb[0].mxu0
        %v1455 = vadd.f32 0.0, %v1454
        %v1456 = vpop.f32.mrb[0].mxu0
        %1457 = vmatprep.mubr.f32.mxu0 0.0
        %1458 = vmatmul.mubr.f32.gmra.mrb[0].mxu0 %v1252
        %v1459 = vpop.f32.mrb[0].mxu0
        %v1460 = vadd.f32 0.0, %v1459
        %v1461 = vpop.f32.mrb[0].mxu0
        %1462 = vmatprep.mubr.f32.mxu0 0.0
        %1463 = vmatmul.mubr.f32.gmra.mrb[0].mxu0 %v1255
        %v1464 = vpop.f32.mrb[0].mxu0
        %v1465 = vadd.f32 0.0, %v1464
        %v1466 = vpop.f32.mrb[0].mxu0
        %1467 = vmatprep.mubr.f32.mxu0 0.0
        %1468 = vmatmul.mubr.f32.gmra.mrb[0].mxu0 %v1258
        %v1469 = vpop.f32.mrb[0].mxu0
        %v1470 = vadd.f32 0.0, %v1469
        %v1471 = vpop.f32.mrb[0].mxu0
        %1472 = vmatprep.mubr.f32.mxu0 0.0
        %1473 = vmatmul.mubr.f32.gmra.mrb[0].mxu0 %v1261
        %v1474 = vpop.f32.mrb[0].mxu0
        %v1475 = vadd.f32 0.0, %v1474
        %v1476 = vpop.f32.mrb[0].mxu0
        %1477 = vmatprep.mubr.f32.mxu0 0.0
        %1478 = vmatmul.mubr.f32.gmra.mrb[0].mxu0 %v1264
        %v1479 = vpop.f32.mrb[0].mxu0
        %v1480 = vadd.f32 0.0, %v1479
        %v1481 = vpop.f32.mrb[0].mxu0
        %1482 = vmatprep.mubr.f32.mxu0 0.0
        %1483 = vmatmul.mubr.f32.gmra.mrb[0].mxu0 %v1267
        %v1484 = vpop.f32.mrb[0].mxu0
        %v1485 = vadd.f32 0.0, %v1484
        %v1486 = vpop.f32.mrb[0].mxu0
        %1487 = vmatprep.mubr.f32.mxu0 0.0
        %1488 = vmatmul.mubr.f32.gmra.mrb[0].mxu0 %v1270
        %v1489 = vpop.f32.mrb[0].mxu0
        %v1490 = vadd.f32 0.0, %v1489
        %v1491 = vpop.f32.mrb[0].mxu0
        %1492 = vmatprep.mubr.f32.mxu0 0.0
        %1493 = vmatmul.mubr.f32.gmra.mrb[0].mxu0 %v1273
        %v1494 = vpop.f32.mrb[0].mxu0
        %v1495 = vadd.f32 0.0, %v1494
        %v1496 = vpop.f32.mrb[0].mxu0
        %1497 = vmatprep.mubr.f32.mxu0 0.0
        %1498 = vmatmul.mubr.f32.gmra.mrb[0].mxu0 %v1276
        %v1499 = vpop.f32.mrb[0].mxu0
        %v1500 = vadd.f32 0.0, %v1499
        %v1501 = vpop.f32.mrb[0].mxu0
        %1502 = vdwg.mxu0
        %v1504 = vsel %vm1159, %v1345, 0
        %v1507 = vsel %vm1159, %v1350, 0
        %v1510 = vsel %vm1159, %v1355, 0
        %v1513 = vsel %vm1159, %v1360, 0
        %v1516 = vsel %vm1159, %v1365, 0
        %v1519 = vsel %vm1159, %v1370, 0
        %v1522 = vsel %vm1159, %v1375, 0
        %v1525 = vsel %vm1159, %v1380, 0
        %v1528 = vsel %vm1159, %v1385, 0
        %v1531 = vsel %vm1159, %v1390, 0
        %v1534 = vsel %vm1159, %v1395, 0
        %v1537 = vsel %vm1159, %v1400, 0
        %v1540 = vsel %vm1159, %v1405, 0
        %v1543 = vsel %vm1159, %v1410, 0
        %v1546 = vsel %vm1159, %v1415, 0
        %v1549 = vsel %vm1159, %v1420, 0
        %v1552 = vsel %vm1159, %v1425, 0
        %v1555 = vsel %vm1159, %v1430, 0
        %v1558 = vsel %vm1159, %v1435, 0
        %v1561 = vsel %vm1159, %v1440, 0
        %v1564 = vsel %vm1159, %v1445, 0
        %v1567 = vsel %vm1159, %v1450, 0
        %v1570 = vsel %vm1159, %v1455, 0
        %v1573 = vsel %vm1159, %v1460, 0
        %v1576 = vsel %vm1159, %v1465, 0
        %v1579 = vsel %vm1159, %v1470, 0
        %v1582 = vsel %vm1159, %v1475, 0
        %v1585 = vsel %vm1159, %v1480, 0
        %v1588 = vsel %vm1159, %v1485, 0
        %v1591 = vsel %vm1159, %v1490, 0
        %v1594 = vsel %vm1159, %v1495, 0
        %v1597 = vsel %vm1159, %v1500, 0
        %1599 = vmatprep.subr.mxu0 0.0
        %1600 = vmatpush1.xpose.msra.mxu0 %v1183
        %1601 = vmatprep.subr.mxu0 0.0
        %1602 = vmatpush1.xpose.msra.mxu0 %v1186
        %1603 = vmatprep.subr.mxu0 0.0
        %1604 = vmatpush1.xpose.msra.mxu0 %v1189
        %1605 = vmatprep.subr.mxu0 0.0
        %1606 = vmatpush1.xpose.msra.mxu0 %v1192
        %1607 = vmatprep.subr.mxu0 0.0
        %1608 = vmatpush1.xpose.msra.mxu0 %v1195
        %1609 = vmatprep.subr.mxu0 0.0
        %1610 = vmatpush1.xpose.msra.mxu0 %v1198
        %1611 = vmatprep.subr.mxu0 0.0
        %1612 = vmatpush1.xpose.msra.mxu0 %v1201
        %1613 = vmatprep.subr.mxu0 0.0
        %1614 = vmatpush1.xpose.msra.mxu0 %v1204
        %1615 = vmatprep.subr.mxu0 0.0
        %1616 = vmatpush1.xpose.msra.mxu0 %v1207
        %1617 = vmatprep.subr.mxu0 0.0
        %1618 = vmatpush1.xpose.msra.mxu0 %v1210
        %1619 = vmatprep.subr.mxu0 0.0
        %1620 = vmatpush1.xpose.msra.mxu0 %v1213
        %1621 = vmatprep.subr.mxu0 0.0
        %1622 = vmatpush1.xpose.msra.mxu0 %v1216
        %1623 = vmatprep.subr.mxu0 0.0
        %1624 = vmatpush1.xpose.msra.mxu0 %v1219
        %1625 = vmatprep.subr.mxu0 0.0
        %1626 = vmatpush1.xpose.msra.mxu0 %v1222
        %1627 = vmatprep.subr.mxu0 0.0
        %1628 = vmatpush1.xpose.msra.mxu0 %v1225
        %1629 = vmatprep.subr.mxu0 0.0
        %1630 = vmatpush1.xpose.msra.mxu0 %v1228
        %1631 = vmatprep.subr.mxu0 0.0
        %1632 = vmatpush1.xpose.msra.mxu0 %v1231
        %1633 = vmatprep.subr.mxu0 0.0
        %1634 = vmatpush1.xpose.msra.mxu0 %v1234
        %1635 = vmatprep.subr.mxu0 0.0
        %1636 = vmatpush1.xpose.msra.mxu0 %v1237
        %1637 = vmatprep.subr.mxu0 0.0
        %1638 = vmatpush1.xpose.msra.mxu0 %v1240
        %1639 = vmatprep.subr.mxu0 0.0
        %1640 = vmatpush1.xpose.msra.mxu0 %v1243
        %1641 = vmatprep.subr.mxu0 0.0
        %1642 = vmatpush1.xpose.msra.mxu0 %v1246
        %1643 = vmatprep.subr.mxu0 0.0
        %1644 = vmatpush1.xpose.msra.mxu0 %v1249
        %1645 = vmatprep.subr.mxu0 0.0
        %1646 = vmatpush1.xpose.msra.mxu0 %v1252
        %1647 = vmatprep.subr.mxu0 0.0
        %1648 = vmatpush1.xpose.msra.mxu0 %v1255
        %1649 = vmatprep.subr.mxu0 0.0
        %1650 = vmatpush1.xpose.msra.mxu0 %v1258
        %1651 = vmatprep.subr.mxu0 0.0
        %1652 = vmatpush1.xpose.msra.mxu0 %v1261
        %1653 = vmatprep.subr.mxu0 0.0
        %1654 = vmatpush1.xpose.msra.mxu0 %v1264
        %1655 = vmatprep.subr.mxu0 0.0
        %1656 = vmatpush1.xpose.msra.mxu0 %v1267
        %1657 = vmatprep.subr.mxu0 0.0
        %1658 = vmatpush1.xpose.msra.mxu0 %v1270
        %1659 = vmatprep.subr.mxu0 0.0
        %1660 = vmatpush1.xpose.msra.mxu0 %v1273
        %1661 = vmatprep.subr.mxu0 0.0
        %1662 = vmatpush1.xpose.msra.mxu0 %v1276
        %1663 = vmatprep.mubr.f32.mxu0 0.0
        %1664 = vmatmul.mubr.f32.gmra.mrb[0].mxu0 %v1504
        %v1665 = vpop.f32.mrb[0].mxu0
        %v1666 = vadd.f32 0.0, %v1665
        %v1667 = vpop.f32.mrb[0].mxu0
        %v1668 = vadd.f32 0.0, %v1667
        %1669 = vmatprep.mubr.f32.mxu0 0.0
        %1670 = vmatmul.mubr.f32.gmra.mrb[0].mxu0 %v1507
        %v1671 = vpop.f32.mrb[0].mxu0
        %v1672 = vadd.f32 0.0, %v1671
        %v1673 = vpop.f32.mrb[0].mxu0
        %v1674 = vadd.f32 0.0, %v1673
        %1675 = vmatprep.mubr.f32.mxu0 0.0
        %1676 = vmatmul.mubr.f32.gmra.mrb[0].mxu0 %v1510
        %v1677 = vpop.f32.mrb[0].mxu0
        %v1678 = vadd.f32 0.0, %v1677
        %v1679 = vpop.f32.mrb[0].mxu0
        %v1680 = vadd.f32 0.0, %v1679
        %1681 = vmatprep.mubr.f32.mxu0 0.0
        %1682 = vmatmul.mubr.f32.gmra.mrb[0].mxu0 %v1513
        %v1683 = vpop.f32.mrb[0].mxu0
        %v1684 = vadd.f32 0.0, %v1683
        %v1685 = vpop.f32.mrb[0].mxu0
        %v1686 = vadd.f32 0.0, %v1685
        %1687 = vmatprep.mubr.f32.mxu0 0.0
        %1688 = vmatmul.mubr.f32.gmra.mrb[0].mxu0 %v1516
        %v1689 = vpop.f32.mrb[0].mxu0
        %v1690 = vadd.f32 0.0, %v1689
        %v1691 = vpop.f32.mrb[0].mxu0
        %v1692 = vadd.f32 0.0, %v1691
        %1693 = vmatprep.mubr.f32.mxu0 0.0
        %1694 = vmatmul.mubr.f32.gmra.mrb[0].mxu0 %v1519
        %v1695 = vpop.f32.mrb[0].mxu0
        %v1696 = vadd.f32 0.0, %v1695
        %v1697 = vpop.f32.mrb[0].mxu0
        %v1698 = vadd.f32 0.0, %v1697
        %1699 = vmatprep.mubr.f32.mxu0 0.0
        %1700 = vmatmul.mubr.f32.gmra.mrb[0].mxu0 %v1522
        %v1701 = vpop.f32.mrb[0].mxu0
        %v1702 = vadd.f32 0.0, %v1701
        %v1703 = vpop.f32.mrb[0].mxu0
        %v1704 = vadd.f32 0.0, %v1703
        %1705 = vmatprep.mubr.f32.mxu0 0.0
        %1706 = vmatmul.mubr.f32.gmra.mrb[0].mxu0 %v1525
        %v1707 = vpop.f32.mrb[0].mxu0
        %v1708 = vadd.f32 0.0, %v1707
        %v1709 = vpop.f32.mrb[0].mxu0
        %v1710 = vadd.f32 0.0, %v1709
        %1711 = vmatprep.mubr.f32.mxu0 0.0
        %1712 = vmatmul.mubr.f32.gmra.mrb[0].mxu0 %v1528
        %v1713 = vpop.f32.mrb[0].mxu0
        %v1714 = vadd.f32 0.0, %v1713
        %v1715 = vpop.f32.mrb[0].mxu0
        %v1716 = vadd.f32 0.0, %v1715
        %1717 = vmatprep.mubr.f32.mxu0 0.0
        %1718 = vmatmul.mubr.f32.gmra.mrb[0].mxu0 %v1531
        %v1719 = vpop.f32.mrb[0].mxu0
        %v1720 = vadd.f32 0.0, %v1719
        %v1721 = vpop.f32.mrb[0].mxu0
        %v1722 = vadd.f32 0.0, %v1721
        %1723 = vmatprep.mubr.f32.mxu0 0.0
        %1724 = vmatmul.mubr.f32.gmra.mrb[0].mxu0 %v1534
        %v1725 = vpop.f32.mrb[0].mxu0
        %v1726 = vadd.f32 0.0, %v1725
        %v1727 = vpop.f32.mrb[0].mxu0
        %v1728 = vadd.f32 0.0, %v1727
        %1729 = vmatprep.mubr.f32.mxu0 0.0
        %1730 = vmatmul.mubr.f32.gmra.mrb[0].mxu0 %v1537
        %v1731 = vpop.f32.mrb[0].mxu0
        %v1732 = vadd.f32 0.0, %v1731
        %v1733 = vpop.f32.mrb[0].mxu0
        %v1734 = vadd.f32 0.0, %v1733
        %1735 = vmatprep.mubr.f32.mxu0 0.0
        %1736 = vmatmul.mubr.f32.gmra.mrb[0].mxu0 %v1540
        %v1737 = vpop.f32.mrb[0].mxu0
        %v1738 = vadd.f32 0.0, %v1737
        %v1739 = vpop.f32.mrb[0].mxu0
        %v1740 = vadd.f32 0.0, %v1739
        %1741 = vmatprep.mubr.f32.mxu0 0.0
        %1742 = vmatmul.mubr.f32.gmra.mrb[0].mxu0 %v1543
        %v1743 = vpop.f32.mrb[0].mxu0
        %v1744 = vadd.f32 0.0, %v1743
        %v1745 = vpop.f32.mrb[0].mxu0
        %v1746 = vadd.f32 0.0, %v1745
        %1747 = vmatprep.mubr.f32.mxu0 0.0
        %1748 = vmatmul.mubr.f32.gmra.mrb[0].mxu0 %v1546
        %v1749 = vpop.f32.mrb[0].mxu0
        %v1750 = vadd.f32 0.0, %v1749
        %v1751 = vpop.f32.mrb[0].mxu0
        %v1752 = vadd.f32 0.0, %v1751
        %1753 = vmatprep.mubr.f32.mxu0 0.0
        %1754 = vmatmul.mubr.f32.gmra.mrb[0].mxu0 %v1549
        %v1755 = vpop.f32.mrb[0].mxu0
        %v1756 = vadd.f32 0.0, %v1755
        %v1757 = vpop.f32.mrb[0].mxu0
        %v1758 = vadd.f32 0.0, %v1757
        %1759 = vmatprep.mubr.f32.mxu0 0.0
        %1760 = vmatmul.mubr.f32.gmra.mrb[0].mxu0 %v1552
        %v1761 = vpop.f32.mrb[0].mxu0
        %v1762 = vadd.f32 0.0, %v1761
        %v1763 = vpop.f32.mrb[0].mxu0
        %v1764 = vadd.f32 0.0, %v1763
        %1765 = vmatprep.mubr.f32.mxu0 0.0
        %1766 = vmatmul.mubr.f32.gmra.mrb[0].mxu0 %v1555
        %v1767 = vpop.f32.mrb[0].mxu0
        %v1768 = vadd.f32 0.0, %v1767
        %v1769 = vpop.f32.mrb[0].mxu0
        %v1770 = vadd.f32 0.0, %v1769
        %1771 = vmatprep.mubr.f32.mxu0 0.0
        %1772 = vmatmul.mubr.f32.gmra.mrb[0].mxu0 %v1558
        %v1773 = vpop.f32.mrb[0].mxu0
        %v1774 = vadd.f32 0.0, %v1773
        %v1775 = vpop.f32.mrb[0].mxu0
        %v1776 = vadd.f32 0.0, %v1775
        %1777 = vmatprep.mubr.f32.mxu0 0.0
        %1778 = vmatmul.mubr.f32.gmra.mrb[0].mxu0 %v1561
        %v1779 = vpop.f32.mrb[0].mxu0
        %v1780 = vadd.f32 0.0, %v1779
        %v1781 = vpop.f32.mrb[0].mxu0
        %v1782 = vadd.f32 0.0, %v1781
        %1783 = vmatprep.mubr.f32.mxu0 0.0
        %1784 = vmatmul.mubr.f32.gmra.mrb[0].mxu0 %v1564
        %v1785 = vpop.f32.mrb[0].mxu0
        %v1786 = vadd.f32 0.0, %v1785
        %v1787 = vpop.f32.mrb[0].mxu0
        %v1788 = vadd.f32 0.0, %v1787
        %1789 = vmatprep.mubr.f32.mxu0 0.0
        %1790 = vmatmul.mubr.f32.gmra.mrb[0].mxu0 %v1567
        %v1791 = vpop.f32.mrb[0].mxu0
        %v1792 = vadd.f32 0.0, %v1791
        %v1793 = vpop.f32.mrb[0].mxu0
        %v1794 = vadd.f32 0.0, %v1793
        %1795 = vmatprep.mubr.f32.mxu0 0.0
        %1796 = vmatmul.mubr.f32.gmra.mrb[0].mxu0 %v1570
        %v1797 = vpop.f32.mrb[0].mxu0
        %v1798 = vadd.f32 0.0, %v1797
        %v1799 = vpop.f32.mrb[0].mxu0
        %v1800 = vadd.f32 0.0, %v1799
        %1801 = vmatprep.mubr.f32.mxu0 0.0
        %1802 = vmatmul.mubr.f32.gmra.mrb[0].mxu0 %v1573
        %v1803 = vpop.f32.mrb[0].mxu0
        %v1804 = vadd.f32 0.0, %v1803
        %v1805 = vpop.f32.mrb[0].mxu0
        %v1806 = vadd.f32 0.0, %v1805
        %1807 = vmatprep.mubr.f32.mxu0 0.0
        %1808 = vmatmul.mubr.f32.gmra.mrb[0].mxu0 %v1576
        %v1809 = vpop.f32.mrb[0].mxu0
        %v1810 = vadd.f32 0.0, %v1809
        %v1811 = vpop.f32.mrb[0].mxu0
        %v1812 = vadd.f32 0.0, %v1811
        %1813 = vmatprep.mubr.f32.mxu0 0.0
        %1814 = vmatmul.mubr.f32.gmra.mrb[0].mxu0 %v1579
        %v1815 = vpop.f32.mrb[0].mxu0
        %v1816 = vadd.f32 0.0, %v1815
        %v1817 = vpop.f32.mrb[0].mxu0
        %v1818 = vadd.f32 0.0, %v1817
        %1819 = vmatprep.mubr.f32.mxu0 0.0
        %1820 = vmatmul.mubr.f32.gmra.mrb[0].mxu0 %v1582
        %v1821 = vpop.f32.mrb[0].mxu0
        %v1822 = vadd.f32 0.0, %v1821
        %v1823 = vpop.f32.mrb[0].mxu0
        %v1824 = vadd.f32 0.0, %v1823
        %1825 = vmatprep.mubr.f32.mxu0 0.0
        %1826 = vmatmul.mubr.f32.gmra.mrb[0].mxu0 %v1585
        %v1827 = vpop.f32.mrb[0].mxu0
        %v1828 = vadd.f32 0.0, %v1827
        %v1829 = vpop.f32.mrb[0].mxu0
        %v1830 = vadd.f32 0.0, %v1829
        %1831 = vmatprep.mubr.f32.mxu0 0.0
        %1832 = vmatmul.mubr.f32.gmra.mrb[0].mxu0 %v1588
        %v1833 = vpop.f32.mrb[0].mxu0
        %v1834 = vadd.f32 0.0, %v1833
        %v1835 = vpop.f32.mrb[0].mxu0
        %v1836 = vadd.f32 0.0, %v1835
        %1837 = vmatprep.mubr.f32.mxu0 0.0
        %1838 = vmatmul.mubr.f32.gmra.mrb[0].mxu0 %v1591
        %v1839 = vpop.f32.mrb[0].mxu0
        %v1840 = vadd.f32 0.0, %v1839
        %v1841 = vpop.f32.mrb[0].mxu0
        %v1842 = vadd.f32 0.0, %v1841
        %1843 = vmatprep.mubr.f32.mxu0 0.0
        %1844 = vmatmul.mubr.f32.gmra.mrb[0].mxu0 %v1594
        %v1845 = vpop.f32.mrb[0].mxu0
        %v1846 = vadd.f32 0.0, %v1845
        %v1847 = vpop.f32.mrb[0].mxu0
        %v1848 = vadd.f32 0.0, %v1847
        %1849 = vmatprep.mubr.f32.mxu0 0.0
        %1850 = vmatmul.mubr.f32.gmra.mrb[0].mxu0 %v1597
        %v1851 = vpop.f32.mrb[0].mxu0
        %v1852 = vadd.f32 0.0, %v1851
        %v1853 = vpop.f32.mrb[0].mxu0
        %v1854 = vadd.f32 0.0, %v1853
        %1855 = vdwg.mxu0
        %v1856 = vmul.f32 %v1666, %v332
        %v1857 = vmul.f32 %v1668, %v333
        %v1858 = vmul.f32 %v1672, %v334
        %v1859 = vmul.f32 %v1674, %v335
        %v1860 = vmul.f32 %v1678, %v336
        %v1861 = vmul.f32 %v1680, %v337
        %v1862 = vmul.f32 %v1684, %v338
        %v1863 = vmul.f32 %v1686, %v339
        %v1864 = vmul.f32 %v1690, %v340
        %v1865 = vmul.f32 %v1692, %v341
        %v1866 = vmul.f32 %v1696, %v342
        %v1867 = vmul.f32 %v1698, %v343
        %v1868 = vmul.f32 %v1702, %v344
        %v1869 = vmul.f32 %v1704, %v345
        %v1870 = vmul.f32 %v1708, %v346
        %v1871 = vmul.f32 %v1710, %v347
        %v1872 = vmul.f32 %v1714, %v348
        %v1873 = vmul.f32 %v1716, %v349
        %v1874 = vmul.f32 %v1720, %v350
        %v1875 = vmul.f32 %v1722, %v351
        %v1876 = vmul.f32 %v1726, %v352
        %v1877 = vmul.f32 %v1728, %v353
        %v1878 = vmul.f32 %v1732, %v354
        %v1879 = vmul.f32 %v1734, %v355
        %v1880 = vmul.f32 %v1738, %v356
        %v1881 = vmul.f32 %v1740, %v357
        %v1882 = vmul.f32 %v1744, %v358
        %v1883 = vmul.f32 %v1746, %v359
        %v1884 = vmul.f32 %v1750, %v360
        %v1885 = vmul.f32 %v1752, %v361
        %v1886 = vmul.f32 %v1756, %v362
        %v1887 = vmul.f32 %v1758, %v363
        %v1888 = vmul.f32 %v1762, %v364
        %v1889 = vmul.f32 %v1764, %v365
        %v1890 = vmul.f32 %v1768, %v366
        %v1891 = vmul.f32 %v1770, %v367
        %v1892 = vmul.f32 %v1774, %v368
        %v1893 = vmul.f32 %v1776, %v369
        %v1894 = vmul.f32 %v1780, %v370
        %v1895 = vmul.f32 %v1782, %v371
        %v1896 = vmul.f32 %v1786, %v372
        %v1897 = vmul.f32 %v1788, %v373
        %v1898 = vmul.f32 %v1792, %v374
        %v1899 = vmul.f32 %v1794, %v375
        %v1900 = vmul.f32 %v1798, %v376
        %v1901 = vmul.f32 %v1800, %v377
        %v1902 = vmul.f32 %v1804, %v378
        %v1903 = vmul.f32 %v1806, %v379
        %v1904 = vmul.f32 %v1810, %v380
        %v1905 = vmul.f32 %v1812, %v381
        %v1906 = vmul.f32 %v1816, %v382
        %v1907 = vmul.f32 %v1818, %v383
        %v1908 = vmul.f32 %v1822, %v384
        %v1909 = vmul.f32 %v1824, %v385
        %v1910 = vmul.f32 %v1828, %v386
        %v1911 = vmul.f32 %v1830, %v387
        %v1912 = vmul.f32 %v1834, %v388
        %v1913 = vmul.f32 %v1836, %v389
        %v1914 = vmul.f32 %v1840, %v390
        %v1915 = vmul.f32 %v1842, %v391
        %v1916 = vmul.f32 %v1846, %v392
        %v1917 = vmul.f32 %v1848, %v393
        %v1918 = vmul.f32 %v1852, %v394
        %v1919 = vmul.f32 %v1854, %v395
        %1920 = vmatprep.subr.mxu0 %v1857
        %1921 = vmatpush1.xpose.msra.mxu0 %v1856
        %1922 = vmatprep.subr.mxu0 %v1859
        %1923 = vmatpush1.xpose.msra.mxu0 %v1858
        %1924 = vmatprep.subr.mxu0 %v1861
        %1925 = vmatpush1.xpose.msra.mxu0 %v1860
        %1926 = vmatprep.subr.mxu0 %v1863
        %1927 = vmatpush1.xpose.msra.mxu0 %v1862
        %1928 = vmatprep.subr.mxu0 %v1865
        %1929 = vmatpush1.xpose.msra.mxu0 %v1864
        %1930 = vmatprep.subr.mxu0 %v1867
        %1931 = vmatpush1.xpose.msra.mxu0 %v1866
        %1932 = vmatprep.subr.mxu0 %v1869
        %1933 = vmatpush1.xpose.msra.mxu0 %v1868
        %1934 = vmatprep.subr.mxu0 %v1871
        %1935 = vmatpush1.xpose.msra.mxu0 %v1870
        %1936 = vmatprep.subr.mxu0 %v1873
        %1937 = vmatpush1.xpose.msra.mxu0 %v1872
        %1938 = vmatprep.subr.mxu0 %v1875
        %1939 = vmatpush1.xpose.msra.mxu0 %v1874
        %1940 = vmatprep.subr.mxu0 %v1877
        %1941 = vmatpush1.xpose.msra.mxu0 %v1876
        %1942 = vmatprep.subr.mxu0 %v1879
        %1943 = vmatpush1.xpose.msra.mxu0 %v1878
        %1944 = vmatprep.subr.mxu0 %v1881
        %1945 = vmatpush1.xpose.msra.mxu0 %v1880
        %1946 = vmatprep.subr.mxu0 %v1883
        %1947 = vmatpush1.xpose.msra.mxu0 %v1882
        %1948 = vmatprep.subr.mxu0 %v1885
        %1949 = vmatpush1.xpose.msra.mxu0 %v1884
        %1950 = vmatprep.subr.mxu0 %v1887
        %1951 = vmatpush1.xpose.msra.mxu0 %v1886
        %1952 = vmatprep.subr.mxu0 %v1889
        %1953 = vmatpush1.xpose.msra.mxu0 %v1888
        %1954 = vmatprep.subr.mxu0 %v1891
        %1955 = vmatpush1.xpose.msra.mxu0 %v1890
        %1956 = vmatprep.subr.mxu0 %v1893
        %1957 = vmatpush1.xpose.msra.mxu0 %v1892
        %1958 = vmatprep.subr.mxu0 %v1895
        %1959 = vmatpush1.xpose.msra.mxu0 %v1894
        %1960 = vmatprep.subr.mxu0 %v1897
        %1961 = vmatpush1.xpose.msra.mxu0 %v1896
        %1962 = vmatprep.subr.mxu0 %v1899
        %1963 = vmatpush1.xpose.msra.mxu0 %v1898
        %1964 = vmatprep.subr.mxu0 %v1901
        %1965 = vmatpush1.xpose.msra.mxu0 %v1900
        %1966 = vmatprep.subr.mxu0 %v1903
        %1967 = vmatpush1.xpose.msra.mxu0 %v1902
        %1968 = vmatprep.subr.mxu0 %v1905
        %1969 = vmatpush1.xpose.msra.mxu0 %v1904
        %1970 = vmatprep.subr.mxu0 %v1907
        %1971 = vmatpush1.xpose.msra.mxu0 %v1906
        %1972 = vmatprep.subr.mxu0 %v1909
        %1973 = vmatpush1.xpose.msra.mxu0 %v1908
        %1974 = vmatprep.subr.mxu0 %v1911
        %1975 = vmatpush1.xpose.msra.mxu0 %v1910
        %1976 = vmatprep.subr.mxu0 %v1913
        %1977 = vmatpush1.xpose.msra.mxu0 %v1912
        %1978 = vmatprep.subr.mxu0 %v1915
        %1979 = vmatpush1.xpose.msra.mxu0 %v1914
        %1980 = vmatprep.subr.mxu0 %v1917
        %1981 = vmatpush1.xpose.msra.mxu0 %v1916
        %1982 = vmatprep.subr.mxu0 %v1919
        %1983 = vmatpush1.xpose.msra.mxu0 %v1918
        %1984 = vmatprep.mubr.f32.mxu0 %v267
        %1985 = vmatmul.mubr.f32.gmra.mrb[0].mxu0 %v266
        %v1986 = vpop.f32.mrb[0].mxu0
        %v1987 = vadd.f32 0.0, %v1986
        %v1988 = vpop.f32.mrb[0].mxu0
        %v1989 = vadd.f32 0.0, %v1988
        %1990 = vdwg.mxu0
        %v1991 = vstv %s460
        %v1992 = vmul.f32 %v1991, %v1987
        %v1993 = vmul.f32 %v1991, %v1989
        %v1994 = vadd.f32 %v266, %v1992
        %v1995 = vadd.f32 %v267, %v1993
        %s1996 = sld [smem:[#allocation2 + $0x1]]
        %1997 = vxpose.xlu0.b32.start [1/16] %v1994, 128
        %1998 = vxpose.xlu0.b32.cont [2/16] 0.0, 128
        %1999 = vxpose.xlu0.b32.cont [3/16] 0.0, 128
        %2000 = vxpose.xlu0.b32.cont [4/16] 0.0, 128
        %2001 = vxpose.xlu0.b32.cont [5/16] 0.0, 128
        %2002 = vxpose.xlu0.b32.cont [6/16] 0.0, 128
        %2003 = vxpose.xlu0.b32.cont [7/16] 0.0, 128
        %2004 = vxpose.xlu0.b32.cont [8/16] 0.0, 128
        %2005 = vxpose.xlu0.b32.cont [9/16] 0.0, 128
        %2006 = vxpose.xlu0.b32.cont [10/16] 0.0, 128
        %2007 = vxpose.xlu0.b32.cont [11/16] 0.0, 128
        %2008 = vxpose.xlu0.b32.cont [12/16] 0.0, 128
        %2009 = vxpose.xlu0.b32.cont [13/16] 0.0, 128
        %2010 = vxpose.xlu0.b32.cont [14/16] 0.0, 128
        %2011 = vxpose.xlu0.b32.cont [15/16] 0.0, 128
        %2012 = vxpose.xlu0.b32.end [16/16] 0.0, 128
        %v2013 = vpop.trf.xlu0
        %v2014 = vpop.trf.xlu0
        %v2015 = vpop.trf.xlu0
        %v2016 = vpop.trf.xlu0
        %v2017 = vpop.trf.xlu0
        %v2018 = vpop.trf.xlu0
        %v2019 = vpop.trf.xlu0
        %v2020 = vpop.trf.xlu0
        %v2021 = vpop.trf.xlu0
        %v2022 = vpop.trf.xlu0
        %v2023 = vpop.trf.xlu0
        %v2024 = vpop.trf.xlu0
        %v2025 = vpop.trf.xlu0
        %v2026 = vpop.trf.xlu0
        %v2027 = vpop.trf.xlu0
        %v2028 = vpop.trf.xlu0
        %2029 = vxpose.xlu0.b32.start [1/16] %v1995, 128
        %2030 = vxpose.xlu0.b32.cont [2/16] 0.0, 128
        %2031 = vxpose.xlu0.b32.cont [3/16] 0.0, 128
        %2032 = vxpose.xlu0.b32.cont [4/16] 0.0, 128
        %2033 = vxpose.xlu0.b32.cont [5/16] 0.0, 128
        %2034 = vxpose.xlu0.b32.cont [6/16] 0.0, 128
        %2035 = vxpose.xlu0.b32.cont [7/16] 0.0, 128
        %2036 = vxpose.xlu0.b32.cont [8/16] 0.0, 128
        %2037 = vxpose.xlu0.b32.cont [9/16] 0.0, 128
        %2038 = vxpose.xlu0.b32.cont [10/16] 0.0, 128
        %2039 = vxpose.xlu0.b32.cont [11/16] 0.0, 128
        %2040 = vxpose.xlu0.b32.cont [12/16] 0.0, 128
        %2041 = vxpose.xlu0.b32.cont [13/16] 0.0, 128
        %2042 = vxpose.xlu0.b32.cont [14/16] 0.0, 128
        %2043 = vxpose.xlu0.b32.cont [15/16] 0.0, 128
        %2044 = vxpose.xlu0.b32.end [16/16] 0.0, 128
        %v2045 = vpop.trf.xlu0
        %v2046 = vpop.trf.xlu0
        %v2047 = vpop.trf.xlu0
        %v2048 = vpop.trf.xlu0
        %v2049 = vpop.trf.xlu0
        %v2050 = vpop.trf.xlu0
        %v2051 = vpop.trf.xlu0
        %v2052 = vpop.trf.xlu0
        %v2053 = vpop.trf.xlu0
        %v2054 = vpop.trf.xlu0
        %v2055 = vpop.trf.xlu0
        %v2056 = vpop.trf.xlu0
        %v2057 = vpop.trf.xlu0
        %v2058 = vpop.trf.xlu0
        %v2059 = vpop.trf.xlu0
        %v2060 = vpop.trf.xlu0
        %v2062 = vsel %vm525, %v2013, 0
        %v2065 = vsel %vm525, %v2014, 0
        %v2068 = vsel %vm525, %v2015, 0
        %v2071 = vsel %vm525, %v2016, 0
        %v2074 = vsel %vm525, %v2017, 0
        %v2077 = vsel %vm525, %v2018, 0
        %v2080 = vsel %vm525, %v2019, 0
        %v2083 = vsel %vm525, %v2020, 0
        %v2086 = vsel %vm525, %v2021, 0
        %v2089 = vsel %vm525, %v2022, 0
        %v2092 = vsel %vm525, %v2023, 0
        %v2095 = vsel %vm525, %v2024, 0
        %v2098 = vsel %vm525, %v2025, 0
        %v2101 = vsel %vm525, %v2026, 0
        %v2104 = vsel %vm525, %v2027, 0
        %v2107 = vsel %vm525, %v2028, 0
        %v2110 = vsel %vm525, %v2045, 0
        %v2113 = vsel %vm525, %v2046, 0
        %v2116 = vsel %vm525, %v2047, 0
        %v2119 = vsel %vm525, %v2048, 0
        %v2122 = vsel %vm525, %v2049, 0
        %v2125 = vsel %vm525, %v2050, 0
        %v2128 = vsel %vm525, %v2051, 0
        %v2131 = vsel %vm525, %v2052, 0
        %v2134 = vsel %vm525, %v2053, 0
        %v2137 = vsel %vm525, %v2054, 0
        %v2140 = vsel %vm525, %v2055, 0
        %v2143 = vsel %vm525, %v2056, 0
        %v2146 = vsel %vm525, %v2057, 0
        %v2149 = vsel %vm525, %v2058, 0
        %v2152 = vsel %vm525, %v2059, 0
        %v2155 = vsel %vm525, %v2060, 0
        %2157 = vmatprep.subr.mxu0 %v1995
        %2158 = vmatpush1.msra.mxu0 %v1994
        %2159 = vmatprep.subr.mxu0 0.0
        %2160 = vmatpush1.msra.mxu0 0.0
        %2161 = vmatprep.subr.mxu0 0.0
        %2162 = vmatpush1.msra.mxu0 0.0
        %2163 = vmatprep.subr.mxu0 0.0
        %2164 = vmatpush1.msra.mxu0 0.0
        %2165 = vmatprep.subr.mxu0 0.0
        %2166 = vmatpush1.msra.mxu0 0.0
        %2167 = vmatprep.subr.mxu0 0.0
        %2168 = vmatpush1.msra.mxu0 0.0
        %2169 = vmatprep.subr.mxu0 0.0
        %2170 = vmatpush1.msra.mxu0 0.0
        %2171 = vmatprep.subr.mxu0 0.0
        %2172 = vmatpush1.msra.mxu0 0.0
        %2173 = vmatprep.subr.mxu0 0.0
        %2174 = vmatpush1.msra.mxu0 0.0
        %2175 = vmatprep.subr.mxu0 0.0
        %2176 = vmatpush1.msra.mxu0 0.0
        %2177 = vmatprep.subr.mxu0 0.0
        %2178 = vmatpush1.msra.mxu0 0.0
        %2179 = vmatprep.subr.mxu0 0.0
        %2180 = vmatpush1.msra.mxu0 0.0
        %2181 = vmatprep.subr.mxu0 0.0
        %2182 = vmatpush1.msra.mxu0 0.0
        %2183 = vmatprep.subr.mxu0 0.0
        %2184 = vmatpush1.msra.mxu0 0.0
        %2185 = vmatprep.subr.mxu0 0.0
        %2186 = vmatpush1.msra.mxu0 0.0
        %2187 = vmatprep.subr.mxu0 0.0
        %2188 = vmatpush1.msra.mxu0 0.0
        %2189 = vmatprep.subr.mxu0 0.0
        %2190 = vmatpush1.msra.mxu0 0.0
        %2191 = vmatprep.subr.mxu0 0.0
        %2192 = vmatpush1.msra.mxu0 0.0
        %2193 = vmatprep.subr.mxu0 0.0
        %2194 = vmatpush1.msra.mxu0 0.0
        %2195 = vmatprep.subr.mxu0 0.0
        %2196 = vmatpush1.msra.mxu0 0.0
        %2197 = vmatprep.subr.mxu0 0.0
        %2198 = vmatpush1.msra.mxu0 0.0
        %2199 = vmatprep.subr.mxu0 0.0
        %2200 = vmatpush1.msra.mxu0 0.0
        %2201 = vmatprep.subr.mxu0 0.0
        %2202 = vmatpush1.msra.mxu0 0.0
        %2203 = vmatprep.subr.mxu0 0.0
        %2204 = vmatpush1.msra.mxu0 0.0
        %2205 = vmatprep.subr.mxu0 0.0
        %2206 = vmatpush1.msra.mxu0 0.0
        %2207 = vmatprep.subr.mxu0 0.0
        %2208 = vmatpush1.msra.mxu0 0.0
        %2209 = vmatprep.subr.mxu0 0.0
        %2210 = vmatpush1.msra.mxu0 0.0
        %2211 = vmatprep.subr.mxu0 0.0
        %2212 = vmatpush1.msra.mxu0 0.0
        %2213 = vmatprep.subr.mxu0 0.0
        %2214 = vmatpush1.msra.mxu0 0.0
        %2215 = vmatprep.subr.mxu0 0.0
        %2216 = vmatpush1.msra.mxu0 0.0
        %2217 = vmatprep.subr.mxu0 0.0
        %2218 = vmatpush1.msra.mxu0 0.0
        %2219 = vmatprep.subr.mxu0 0.0
        %2220 = vmatpush1.msra.mxu0 0.0
        %2221 = vmatprep.mubr.f32.mxu0 0.0
        %2222 = vmatmul.mubr.f32.gmra.mrb[0].mxu0 %v2062
        %v2223 = vpop.f32.mrb[0].mxu0
        %v2224 = vadd.f32 0.0, %v2223
        %v2225 = vpop.f32.mrb[0].mxu0
        %v2226 = vadd.f32 0.0, %v2225
        %2227 = vmatprep.mubr.f32.mxu0 0.0
        %2228 = vmatmul.mubr.f32.gmra.mrb[0].mxu0 %v2065
        %v2229 = vpop.f32.mrb[0].mxu0
        %v2230 = vadd.f32 0.0, %v2229
        %v2231 = vpop.f32.mrb[0].mxu0
        %v2232 = vadd.f32 0.0, %v2231
        %2233 = vmatprep.mubr.f32.mxu0 0.0
        %2234 = vmatmul.mubr.f32.gmra.mrb[0].mxu0 %v2068
        %v2235 = vpop.f32.mrb[0].mxu0
        %v2236 = vadd.f32 0.0, %v2235
        %v2237 = vpop.f32.mrb[0].mxu0
        %v2238 = vadd.f32 0.0, %v2237
        %2239 = vmatprep.mubr.f32.mxu0 0.0
        %2240 = vmatmul.mubr.f32.gmra.mrb[0].mxu0 %v2071
        %v2241 = vpop.f32.mrb[0].mxu0
        %v2242 = vadd.f32 0.0, %v2241
        %v2243 = vpop.f32.mrb[0].mxu0
        %v2244 = vadd.f32 0.0, %v2243
        %2245 = vmatprep.mubr.f32.mxu0 0.0
        %2246 = vmatmul.mubr.f32.gmra.mrb[0].mxu0 %v2074
        %v2247 = vpop.f32.mrb[0].mxu0
        %v2248 = vadd.f32 0.0, %v2247
        %v2249 = vpop.f32.mrb[0].mxu0
        %v2250 = vadd.f32 0.0, %v2249
        %2251 = vmatprep.mubr.f32.mxu0 0.0
        %2252 = vmatmul.mubr.f32.gmra.mrb[0].mxu0 %v2077
        %v2253 = vpop.f32.mrb[0].mxu0
        %v2254 = vadd.f32 0.0, %v2253
        %v2255 = vpop.f32.mrb[0].mxu0
        %v2256 = vadd.f32 0.0, %v2255
        %2257 = vmatprep.mubr.f32.mxu0 0.0
        %2258 = vmatmul.mubr.f32.gmra.mrb[0].mxu0 %v2080
        %v2259 = vpop.f32.mrb[0].mxu0
        %v2260 = vadd.f32 0.0, %v2259
        %v2261 = vpop.f32.mrb[0].mxu0
        %v2262 = vadd.f32 0.0, %v2261
        %2263 = vmatprep.mubr.f32.mxu0 0.0
        %2264 = vmatmul.mubr.f32.gmra.mrb[0].mxu0 %v2083
        %v2265 = vpop.f32.mrb[0].mxu0
        %v2266 = vadd.f32 0.0, %v2265
        %v2267 = vpop.f32.mrb[0].mxu0
        %v2268 = vadd.f32 0.0, %v2267
        %2269 = vmatprep.mubr.f32.mxu0 0.0
        %2270 = vmatmul.mubr.f32.gmra.mrb[0].mxu0 %v2086
        %v2271 = vpop.f32.mrb[0].mxu0
        %v2272 = vadd.f32 0.0, %v2271
        %v2273 = vpop.f32.mrb[0].mxu0
        %v2274 = vadd.f32 0.0, %v2273
        %2275 = vmatprep.mubr.f32.mxu0 0.0
        %2276 = vmatmul.mubr.f32.gmra.mrb[0].mxu0 %v2089
        %v2277 = vpop.f32.mrb[0].mxu0
        %v2278 = vadd.f32 0.0, %v2277
        %v2279 = vpop.f32.mrb[0].mxu0
        %v2280 = vadd.f32 0.0, %v2279
        %2281 = vmatprep.mubr.f32.mxu0 0.0
        %2282 = vmatmul.mubr.f32.gmra.mrb[0].mxu0 %v2092
        %v2283 = vpop.f32.mrb[0].mxu0
        %v2284 = vadd.f32 0.0, %v2283
        %v2285 = vpop.f32.mrb[0].mxu0
        %v2286 = vadd.f32 0.0, %v2285
        %2287 = vmatprep.mubr.f32.mxu0 0.0
        %2288 = vmatmul.mubr.f32.gmra.mrb[0].mxu0 %v2095
        %v2289 = vpop.f32.mrb[0].mxu0
        %v2290 = vadd.f32 0.0, %v2289
        %v2291 = vpop.f32.mrb[0].mxu0
        %v2292 = vadd.f32 0.0, %v2291
        %2293 = vmatprep.mubr.f32.mxu0 0.0
        %2294 = vmatmul.mubr.f32.gmra.mrb[0].mxu0 %v2098
        %v2295 = vpop.f32.mrb[0].mxu0
        %v2296 = vadd.f32 0.0, %v2295
        %v2297 = vpop.f32.mrb[0].mxu0
        %v2298 = vadd.f32 0.0, %v2297
        %2299 = vmatprep.mubr.f32.mxu0 0.0
        %2300 = vmatmul.mubr.f32.gmra.mrb[0].mxu0 %v2101
        %v2301 = vpop.f32.mrb[0].mxu0
        %v2302 = vadd.f32 0.0, %v2301
        %v2303 = vpop.f32.mrb[0].mxu0
        %v2304 = vadd.f32 0.0, %v2303
        %2305 = vmatprep.mubr.f32.mxu0 0.0
        %2306 = vmatmul.mubr.f32.gmra.mrb[0].mxu0 %v2104
        %v2307 = vpop.f32.mrb[0].mxu0
        %v2308 = vadd.f32 0.0, %v2307
        %v2309 = vpop.f32.mrb[0].mxu0
        %v2310 = vadd.f32 0.0, %v2309
        %2311 = vmatprep.mubr.f32.mxu0 0.0
        %2312 = vmatmul.mubr.f32.gmra.mrb[0].mxu0 %v2107
        %v2313 = vpop.f32.mrb[0].mxu0
        %v2314 = vadd.f32 0.0, %v2313
        %v2315 = vpop.f32.mrb[0].mxu0
        %v2316 = vadd.f32 0.0, %v2315
        %2317 = vmatprep.mubr.f32.mxu0 0.0
        %2318 = vmatmul.mubr.f32.gmra.mrb[0].mxu0 %v2110
        %v2319 = vpop.f32.mrb[0].mxu0
        %v2320 = vadd.f32 0.0, %v2319
        %v2321 = vpop.f32.mrb[0].mxu0
        %v2322 = vadd.f32 0.0, %v2321
        %2323 = vmatprep.mubr.f32.mxu0 0.0
        %2324 = vmatmul.mubr.f32.gmra.mrb[0].mxu0 %v2113
        %v2325 = vpop.f32.mrb[0].mxu0
        %v2326 = vadd.f32 0.0, %v2325
        %v2327 = vpop.f32.mrb[0].mxu0
        %v2328 = vadd.f32 0.0, %v2327
        %2329 = vmatprep.mubr.f32.mxu0 0.0
        %2330 = vmatmul.mubr.f32.gmra.mrb[0].mxu0 %v2116
        %v2331 = vpop.f32.mrb[0].mxu0
        %v2332 = vadd.f32 0.0, %v2331
        %v2333 = vpop.f32.mrb[0].mxu0
        %v2334 = vadd.f32 0.0, %v2333
        %2335 = vmatprep.mubr.f32.mxu0 0.0
        %2336 = vmatmul.mubr.f32.gmra.mrb[0].mxu0 %v2119
        %v2337 = vpop.f32.mrb[0].mxu0
        %v2338 = vadd.f32 0.0, %v2337
        %v2339 = vpop.f32.mrb[0].mxu0
        %v2340 = vadd.f32 0.0, %v2339
        %2341 = vmatprep.mubr.f32.mxu0 0.0
        %2342 = vmatmul.mubr.f32.gmra.mrb[0].mxu0 %v2122
        %v2343 = vpop.f32.mrb[0].mxu0
        %v2344 = vadd.f32 0.0, %v2343
        %v2345 = vpop.f32.mrb[0].mxu0
        %v2346 = vadd.f32 0.0, %v2345
        %2347 = vmatprep.mubr.f32.mxu0 0.0
        %2348 = vmatmul.mubr.f32.gmra.mrb[0].mxu0 %v2125
        %v2349 = vpop.f32.mrb[0].mxu0
        %v2350 = vadd.f32 0.0, %v2349
        %v2351 = vpop.f32.mrb[0].mxu0
        %v2352 = vadd.f32 0.0, %v2351
        %2353 = vmatprep.mubr.f32.mxu0 0.0
        %2354 = vmatmul.mubr.f32.gmra.mrb[0].mxu0 %v2128
        %v2355 = vpop.f32.mrb[0].mxu0
        %v2356 = vadd.f32 0.0, %v2355
        %v2357 = vpop.f32.mrb[0].mxu0
        %v2358 = vadd.f32 0.0, %v2357
        %2359 = vmatprep.mubr.f32.mxu0 0.0
        %2360 = vmatmul.mubr.f32.gmra.mrb[0].mxu0 %v2131
        %v2361 = vpop.f32.mrb[0].mxu0
        %v2362 = vadd.f32 0.0, %v2361
        %v2363 = vpop.f32.mrb[0].mxu0
        %v2364 = vadd.f32 0.0, %v2363
        %2365 = vmatprep.mubr.f32.mxu0 0.0
        %2366 = vmatmul.mubr.f32.gmra.mrb[0].mxu0 %v2134
        %v2367 = vpop.f32.mrb[0].mxu0
        %v2368 = vadd.f32 0.0, %v2367
        %v2369 = vpop.f32.mrb[0].mxu0
        %v2370 = vadd.f32 0.0, %v2369
        %2371 = vmatprep.mubr.f32.mxu0 0.0
        %2372 = vmatmul.mubr.f32.gmra.mrb[0].mxu0 %v2137
        %v2373 = vpop.f32.mrb[0].mxu0
        %v2374 = vadd.f32 0.0, %v2373
        %v2375 = vpop.f32.mrb[0].mxu0
        %v2376 = vadd.f32 0.0, %v2375
        %2377 = vmatprep.mubr.f32.mxu0 0.0
        %2378 = vmatmul.mubr.f32.gmra.mrb[0].mxu0 %v2140
        %v2379 = vpop.f32.mrb[0].mxu0
        %v2380 = vadd.f32 0.0, %v2379
        %v2381 = vpop.f32.mrb[0].mxu0
        %v2382 = vadd.f32 0.0, %v2381
        %2383 = vmatprep.mubr.f32.mxu0 0.0
        %2384 = vmatmul.mubr.f32.gmra.mrb[0].mxu0 %v2143
        %v2385 = vpop.f32.mrb[0].mxu0
        %v2386 = vadd.f32 0.0, %v2385
        %v2387 = vpop.f32.mrb[0].mxu0
        %v2388 = vadd.f32 0.0, %v2387
        %2389 = vmatprep.mubr.f32.mxu0 0.0
        %2390 = vmatmul.mubr.f32.gmra.mrb[0].mxu0 %v2146
        %v2391 = vpop.f32.mrb[0].mxu0
        %v2392 = vadd.f32 0.0, %v2391
        %v2393 = vpop.f32.mrb[0].mxu0
        %v2394 = vadd.f32 0.0, %v2393
        %2395 = vmatprep.mubr.f32.mxu0 0.0
        %2396 = vmatmul.mubr.f32.gmra.mrb[0].mxu0 %v2149
        %v2397 = vpop.f32.mrb[0].mxu0
        %v2398 = vadd.f32 0.0, %v2397
        %v2399 = vpop.f32.mrb[0].mxu0
        %v2400 = vadd.f32 0.0, %v2399
        %2401 = vmatprep.mubr.f32.mxu0 0.0
        %2402 = vmatmul.mubr.f32.gmra.mrb[0].mxu0 %v2152
        %v2403 = vpop.f32.mrb[0].mxu0
        %v2404 = vadd.f32 0.0, %v2403
        %v2405 = vpop.f32.mrb[0].mxu0
        %v2406 = vadd.f32 0.0, %v2405
        %2407 = vmatprep.mubr.f32.mxu0 0.0
        %2408 = vmatmul.mubr.f32.gmra.mrb[0].mxu0 %v2155
        %v2409 = vpop.f32.mrb[0].mxu0
        %v2410 = vadd.f32 0.0, %v2409
        %v2411 = vpop.f32.mrb[0].mxu0
        %v2412 = vadd.f32 0.0, %v2411
        %2413 = vdwg.mxu0
        %v2414 = vmul.f32 %v2224, %v396
        %v2415 = vmul.f32 %v2226, %v397
        %v2416 = vmul.f32 %v2230, %v398
        %v2417 = vmul.f32 %v2232, %v399
        %v2418 = vmul.f32 %v2236, %v400
        %v2419 = vmul.f32 %v2238, %v401
        %v2420 = vmul.f32 %v2242, %v402
        %v2421 = vmul.f32 %v2244, %v403
        %v2422 = vmul.f32 %v2248, %v404
        %v2423 = vmul.f32 %v2250, %v405
        %v2424 = vmul.f32 %v2254, %v406
        %v2425 = vmul.f32 %v2256, %v407
        %v2426 = vmul.f32 %v2260, %v408
        %v2427 = vmul.f32 %v2262, %v409
        %v2428 = vmul.f32 %v2266, %v410
        %v2429 = vmul.f32 %v2268, %v411
        %v2430 = vmul.f32 %v2272, %v412
        %v2431 = vmul.f32 %v2274, %v413
        %v2432 = vmul.f32 %v2278, %v414
        %v2433 = vmul.f32 %v2280, %v415
        %v2434 = vmul.f32 %v2284, %v416
        %v2435 = vmul.f32 %v2286, %v417
        %v2436 = vmul.f32 %v2290, %v418
        %v2437 = vmul.f32 %v2292, %v419
        %v2438 = vmul.f32 %v2296, %v420
        %v2439 = vmul.f32 %v2298, %v421
        %v2440 = vmul.f32 %v2302, %v422
        %v2441 = vmul.f32 %v2304, %v423
        %v2442 = vmul.f32 %v2308, %v424
        %v2443 = vmul.f32 %v2310, %v425
        %v2444 = vmul.f32 %v2314, %v426
        %v2445 = vmul.f32 %v2316, %v427
        %v2446 = vmul.f32 %v2320, %v428
        %v2447 = vmul.f32 %v2322, %v429
        %v2448 = vmul.f32 %v2326, %v430
        %v2449 = vmul.f32 %v2328, %v431
        %v2450 = vmul.f32 %v2332, %v432
        %v2451 = vmul.f32 %v2334, %v433
        %v2452 = vmul.f32 %v2338, %v434
        %v2453 = vmul.f32 %v2340, %v435
        %v2454 = vmul.f32 %v2344, %v436
        %v2455 = vmul.f32 %v2346, %v437
        %v2456 = vmul.f32 %v2350, %v438
        %v2457 = vmul.f32 %v2352, %v439
        %v2458 = vmul.f32 %v2356, %v440
        %v2459 = vmul.f32 %v2358, %v441
        %v2460 = vmul.f32 %v2362, %v442
        %v2461 = vmul.f32 %v2364, %v443
        %v2462 = vmul.f32 %v2368, %v444
        %v2463 = vmul.f32 %v2370, %v445
        %v2464 = vmul.f32 %v2374, %v446
        %v2465 = vmul.f32 %v2376, %v447
        %v2466 = vmul.f32 %v2380, %v448
        %v2467 = vmul.f32 %v2382, %v449
        %v2468 = vmul.f32 %v2386, %v450
        %v2469 = vmul.f32 %v2388, %v451
        %v2470 = vmul.f32 %v2392, %v452
        %v2471 = vmul.f32 %v2394, %v453
        %v2472 = vmul.f32 %v2398, %v454
        %v2473 = vmul.f32 %v2400, %v455
        %v2474 = vmul.f32 %v2404, %v456
        %v2475 = vmul.f32 %v2406, %v457
        %v2476 = vmul.f32 %v2410, %v458
        %v2477 = vmul.f32 %v2412, %v459
        %2478 = vxpose.xlu0.b32.start [1/16] %v300, 128
        %2479 = vxpose.xlu0.b32.cont [2/16] %v301, 128
        %2480 = vxpose.xlu0.b32.cont [3/16] %v302, 128
        %2481 = vxpose.xlu0.b32.cont [4/16] %v303, 128
        %2482 = vxpose.xlu0.b32.cont [5/16] %v304, 128
        %2483 = vxpose.xlu0.b32.cont [6/16] %v305, 128
        %2484 = vxpose.xlu0.b32.cont [7/16] %v306, 128
        %2485 = vxpose.xlu0.b32.cont [8/16] %v307, 128
        %2486 = vxpose.xlu0.b32.cont [9/16] %v308, 128
        %2487 = vxpose.xlu0.b32.cont [10/16] %v309, 128
        %2488 = vxpose.xlu0.b32.cont [11/16] %v310, 128
        %2489 = vxpose.xlu0.b32.cont [12/16] %v311, 128
        %2490 = vxpose.xlu0.b32.cont [13/16] %v312, 128
        %2491 = vxpose.xlu0.b32.cont [14/16] %v313, 128
        %2492 = vxpose.xlu0.b32.cont [15/16] %v314, 128
        %2493 = vxpose.xlu0.b32.end [16/16] %v315, 128
        %v2494 = vpop.trf.xlu0
        %v2495 = vpop.trf.xlu0
        %v2496 = vpop.trf.xlu0
        %v2497 = vpop.trf.xlu0
        %v2498 = vpop.trf.xlu0
        %v2499 = vpop.trf.xlu0
        %v2500 = vpop.trf.xlu0
        %v2501 = vpop.trf.xlu0
        %v2502 = vpop.trf.xlu0
        %v2503 = vpop.trf.xlu0
        %v2504 = vpop.trf.xlu0
        %v2505 = vpop.trf.xlu0
        %v2506 = vpop.trf.xlu0
        %v2507 = vpop.trf.xlu0
        %v2508 = vpop.trf.xlu0
        %v2509 = vpop.trf.xlu0
        %2510 = vxpose.xlu0.b32.start [1/16] %v316, 128
        %2511 = vxpose.xlu0.b32.cont [2/16] %v317, 128
        %2512 = vxpose.xlu0.b32.cont [3/16] %v318, 128
        %2513 = vxpose.xlu0.b32.cont [4/16] %v319, 128
        %2514 = vxpose.xlu0.b32.cont [5/16] %v320, 128
        %2515 = vxpose.xlu0.b32.cont [6/16] %v321, 128
        %2516 = vxpose.xlu0.b32.cont [7/16] %v322, 128
        %2517 = vxpose.xlu0.b32.cont [8/16] %v323, 128
        %2518 = vxpose.xlu0.b32.cont [9/16] %v324, 128
        %2519 = vxpose.xlu0.b32.cont [10/16] %v325, 128
        %2520 = vxpose.xlu0.b32.cont [11/16] %v326, 128
        %2521 = vxpose.xlu0.b32.cont [12/16] %v327, 128
        %2522 = vxpose.xlu0.b32.cont [13/16] %v328, 128
        %2523 = vxpose.xlu0.b32.cont [14/16] %v329, 128
        %2524 = vxpose.xlu0.b32.cont [15/16] %v330, 128
        %2525 = vxpose.xlu0.b32.end [16/16] %v331, 128
        %v2526 = vpop.trf.xlu0
        %v2527 = vpop.trf.xlu0
        %v2528 = vpop.trf.xlu0
        %v2529 = vpop.trf.xlu0
        %v2530 = vpop.trf.xlu0
        %v2531 = vpop.trf.xlu0
        %v2532 = vpop.trf.xlu0
        %v2533 = vpop.trf.xlu0
        %v2534 = vpop.trf.xlu0
        %v2535 = vpop.trf.xlu0
        %v2536 = vpop.trf.xlu0
        %v2537 = vpop.trf.xlu0
        %v2538 = vpop.trf.xlu0
        %v2539 = vpop.trf.xlu0
        %v2540 = vpop.trf.xlu0
        %v2541 = vpop.trf.xlu0
        %2542 = vmatprep.subr.mxu0 %v2415
        %2543 = vmatpush1.msra.mxu0 %v2414
        %2544 = vmatprep.subr.mxu0 %v2417
        %2545 = vmatpush1.msra.mxu0 %v2416
        %2546 = vmatprep.subr.mxu0 %v2419
        %2547 = vmatpush1.msra.mxu0 %v2418
        %2548 = vmatprep.subr.mxu0 %v2421
        %2549 = vmatpush1.msra.mxu0 %v2420
        %2550 = vmatprep.subr.mxu0 %v2423
        %2551 = vmatpush1.msra.mxu0 %v2422
        %2552 = vmatprep.subr.mxu0 %v2425
        %2553 = vmatpush1.msra.mxu0 %v2424
        %2554 = vmatprep.subr.mxu0 %v2427
        %2555 = vmatpush1.msra.mxu0 %v2426
        %2556 = vmatprep.subr.mxu0 %v2429
        %2557 = vmatpush1.msra.mxu0 %v2428
        %2558 = vmatprep.subr.mxu0 %v2431
        %2559 = vmatpush1.msra.mxu0 %v2430
        %2560 = vmatprep.subr.mxu0 %v2433
        %2561 = vmatpush1.msra.mxu0 %v2432
        %2562 = vmatprep.subr.mxu0 %v2435
        %2563 = vmatpush1.msra.mxu0 %v2434
        %2564 = vmatprep.subr.mxu0 %v2437
        %2565 = vmatpush1.msra.mxu0 %v2436
        %2566 = vmatprep.subr.mxu0 %v2439
        %2567 = vmatpush1.msra.mxu0 %v2438
        %2568 = vmatprep.subr.mxu0 %v2441
        %2569 = vmatpush1.msra.mxu0 %v2440
        %2570 = vmatprep.subr.mxu0 %v2443
        %2571 = vmatpush1.msra.mxu0 %v2442
        %2572 = vmatprep.subr.mxu0 %v2445
        %2573 = vmatpush1.msra.mxu0 %v2444
        %2574 = vmatprep.subr.mxu0 %v2447
        %2575 = vmatpush1.msra.mxu0 %v2446
        %2576 = vmatprep.subr.mxu0 %v2449
        %2577 = vmatpush1.msra.mxu0 %v2448
        %2578 = vmatprep.subr.mxu0 %v2451
        %2579 = vmatpush1.msra.mxu0 %v2450
        %2580 = vmatprep.subr.mxu0 %v2453
        %2581 = vmatpush1.msra.mxu0 %v2452
        %2582 = vmatprep.subr.mxu0 %v2455
        %2583 = vmatpush1.msra.mxu0 %v2454
        %2584 = vmatprep.subr.mxu0 %v2457
        %2585 = vmatpush1.msra.mxu0 %v2456
        %2586 = vmatprep.subr.mxu0 %v2459
        %2587 = vmatpush1.msra.mxu0 %v2458
        %2588 = vmatprep.subr.mxu0 %v2461
        %2589 = vmatpush1.msra.mxu0 %v2460
        %2590 = vmatprep.subr.mxu0 %v2463
        %2591 = vmatpush1.msra.mxu0 %v2462
        %2592 = vmatprep.subr.mxu0 %v2465
        %2593 = vmatpush1.msra.mxu0 %v2464
        %2594 = vmatprep.subr.mxu0 %v2467
        %2595 = vmatpush1.msra.mxu0 %v2466
        %2596 = vmatprep.subr.mxu0 %v2469
        %2597 = vmatpush1.msra.mxu0 %v2468
        %2598 = vmatprep.subr.mxu0 %v2471
        %2599 = vmatpush1.msra.mxu0 %v2470
        %2600 = vmatprep.subr.mxu0 %v2473
        %2601 = vmatpush1.msra.mxu0 %v2472
        %2602 = vmatprep.subr.mxu0 %v2475
        %2603 = vmatpush1.msra.mxu0 %v2474
        %2604 = vmatprep.subr.mxu0 %v2477
        %2605 = vmatpush1.msra.mxu0 %v2476
        %2606 = vmatprep.mubr.f32.mxu0 %v2526
        %2607 = vmatmul.mubr.f32.gmra.mrb[0].mxu0 %v2494
        %v2608 = vpop.f32.mrb[0].mxu0
        %v2609 = vadd.f32 0.0, %v2608
        %v2610 = vpop.f32.mrb[0].mxu0
        %v2611 = vadd.f32 0.0, %v2610
        %2612 = vmatprep.mubr.f32.mxu0 %v2527
        %2613 = vmatmul.mubr.f32.gmra.mrb[0].mxu0 %v2495
        %v2614 = vpop.f32.mrb[0].mxu0
        %v2615 = vadd.f32 0.0, %v2614
        %v2616 = vpop.f32.mrb[0].mxu0
        %v2617 = vadd.f32 0.0, %v2616
        %2618 = vdwg.mxu0
        %2619 = vmatprep.subr.mxu0 0.0
        %2620 = vmatpush1.msra.mxu0 %v300
        %2621 = vmatprep.subr.mxu0 0.0
        %2622 = vmatpush1.msra.mxu0 %v301
        %2623 = vmatprep.subr.mxu0 0.0
        %2624 = vmatpush1.msra.mxu0 %v302
        %2625 = vmatprep.subr.mxu0 0.0
        %2626 = vmatpush1.msra.mxu0 %v303
        %2627 = vmatprep.subr.mxu0 0.0
        %2628 = vmatpush1.msra.mxu0 %v304
        %2629 = vmatprep.subr.mxu0 0.0
        %2630 = vmatpush1.msra.mxu0 %v305
        %2631 = vmatprep.subr.mxu0 0.0
        %2632 = vmatpush1.msra.mxu0 %v306
        %2633 = vmatprep.subr.mxu0 0.0
        %2634 = vmatpush1.msra.mxu0 %v307
        %2635 = vmatprep.subr.mxu0 0.0
        %2636 = vmatpush1.msra.mxu0 %v308
        %2637 = vmatprep.subr.mxu0 0.0
        %2638 = vmatpush1.msra.mxu0 %v309
        %2639 = vmatprep.subr.mxu0 0.0
        %2640 = vmatpush1.msra.mxu0 %v310
        %2641 = vmatprep.subr.mxu0 0.0
        %2642 = vmatpush1.msra.mxu0 %v311
        %2643 = vmatprep.subr.mxu0 0.0
        %2644 = vmatpush1.msra.mxu0 %v312
        %2645 = vmatprep.subr.mxu0 0.0
        %2646 = vmatpush1.msra.mxu0 %v313
        %2647 = vmatprep.subr.mxu0 0.0
        %2648 = vmatpush1.msra.mxu0 %v314
        %2649 = vmatprep.subr.mxu0 0.0
        %2650 = vmatpush1.msra.mxu0 %v315
        %2651 = vmatprep.subr.mxu0 0.0
        %2652 = vmatpush1.msra.mxu0 %v316
        %2653 = vmatprep.subr.mxu0 0.0
        %2654 = vmatpush1.msra.mxu0 %v317
        %2655 = vmatprep.subr.mxu0 0.0
        %2656 = vmatpush1.msra.mxu0 %v318
        %2657 = vmatprep.subr.mxu0 0.0
        %2658 = vmatpush1.msra.mxu0 %v319
        %2659 = vmatprep.subr.mxu0 0.0
        %2660 = vmatpush1.msra.mxu0 %v320
        %2661 = vmatprep.subr.mxu0 0.0
        %2662 = vmatpush1.msra.mxu0 %v321
        %2663 = vmatprep.subr.mxu0 0.0
        %2664 = vmatpush1.msra.mxu0 %v322
        %2665 = vmatprep.subr.mxu0 0.0
        %2666 = vmatpush1.msra.mxu0 %v323
        %2667 = vmatprep.subr.mxu0 0.0
        %2668 = vmatpush1.msra.mxu0 %v324
        %2669 = vmatprep.subr.mxu0 0.0
        %2670 = vmatpush1.msra.mxu0 %v325
        %2671 = vmatprep.subr.mxu0 0.0
        %2672 = vmatpush1.msra.mxu0 %v326
        %2673 = vmatprep.subr.mxu0 0.0
        %2674 = vmatpush1.msra.mxu0 %v327
        %2675 = vmatprep.subr.mxu0 0.0
        %2676 = vmatpush1.msra.mxu0 %v328
        %2677 = vmatprep.subr.mxu0 0.0
        %2678 = vmatpush1.msra.mxu0 %v329
        %2679 = vmatprep.subr.mxu0 0.0
        %2680 = vmatpush1.msra.mxu0 %v330
        %2681 = vmatprep.subr.mxu0 0.0
        %2682 = vmatpush1.msra.mxu0 %v331
        %2683 = vmatprep.mubr.f32.mxu0 %v2611
        %2684 = vmatmul.mubr.f32.gmra.mrb[0].mxu0 %v2609
        %v2685 = vpop.f32.mrb[0].mxu0
        %v2686 = vadd.f32 0.0, %v2685
        %v2687 = vpop.f32.mrb[0].mxu0
        %2688 = vmatprep.mubr.f32.mxu0 %v2617
        %2689 = vmatmul.mubr.f32.gmra.mrb[0].mxu0 %v2615
        %v2690 = vpop.f32.mrb[0].mxu0
        %v2691 = vadd.f32 0.0, %v2690
        %v2692 = vpop.f32.mrb[0].mxu0
        %2693 = vdwg.mxu0
        %v2694 = vsel %vm1159, %v2686, -inf
        %2695 = vmax.xlane.f32.xlu0 %v2694
        %v2696 = vpop.xlane.xlu0 %2695
        %v2697 = vsel %vm1159, %v2691, -inf
        %2698 = vmax.xlane.f32.xlu0 %v2697
        %v2699 = vpop.xlane.xlu0 %2698
        %v2700 = vsub.f32 %v2686, %v2696
        %v2701 = vsub.f32 %v2691, %v2699
        %v2702 = vmul.f32 %v2700, 1.442695
        %v2703 = vpow.pop %v2702
        %v2704 = vmul.f32 %v2701, 1.442695
        %v2705 = vpow.pop %v2704
        %v2706 = vsel %vm1159, %v2703, 0.0
        %2707 = vadd.xlane.f32.xlu0 %v2706
        %v2708 = vpop.xlane.xlu0 %2707
        %v2709 = vsel %vm1159, %v2705, 0.0
        %2710 = vadd.xlane.f32.xlu0 %v2709
        %v2711 = vpop.xlane.xlu0 %2710
        %v2712 = vrcp.pop %v2708
        %v2713 = vrcp.pop %v2711
        %v2714 = vmul.f32 %v2703, %v2712
        %v2715 = vmul.f32 %v2705, %v2713
        %v2717 = vsel %vm1159, %v300, 0
        %v2720 = vsel %vm1159, %v301, 0
        %v2723 = vsel %vm1159, %v302, 0
        %v2726 = vsel %vm1159, %v303, 0
        %v2729 = vsel %vm1159, %v304, 0
        %v2732 = vsel %vm1159, %v305, 0
        %v2735 = vsel %vm1159, %v306, 0
        %v2738 = vsel %vm1159, %v307, 0
        %v2741 = vsel %vm1159, %v308, 0
        %v2744 = vsel %vm1159, %v309, 0
        %v2747 = vsel %vm1159, %v310, 0
        %v2750 = vsel %vm1159, %v311, 0
        %v2753 = vsel %vm1159, %v312, 0
        %v2756 = vsel %vm1159, %v313, 0
        %v2759 = vsel %vm1159, %v314, 0
        %v2762 = vsel %vm1159, %v315, 0
        %v2765 = vsel %vm1159, %v316, 0
        %v2768 = vsel %vm1159, %v317, 0
        %v2771 = vsel %vm1159, %v318, 0
        %v2774 = vsel %vm1159, %v319, 0
        %v2777 = vsel %vm1159, %v320, 0
        %v2780 = vsel %vm1159, %v321, 0
        %v2783 = vsel %vm1159, %v322, 0
        %v2786 = vsel %vm1159, %v323, 0
        %v2789 = vsel %vm1159, %v324, 0
        %v2792 = vsel %vm1159, %v325, 0
        %v2795 = vsel %vm1159, %v326, 0
        %v2798 = vsel %vm1159, %v327, 0
        %v2801 = vsel %vm1159, %v328, 0
        %v2804 = vsel %vm1159, %v329, 0
        %v2807 = vsel %vm1159, %v330, 0
        %v2810 = vsel %vm1159, %v331, 0
        %2812 = vmatprep.subr.mxu0 0.0
        %2813 = vmatpush1.msra.mxu0 %v2714
        %2814 = vmatprep.subr.mxu0 0.0
        %2815 = vmatpush1.msra.mxu0 %v2715
        %2816 = vmatprep.subr.mxu0 0.0
        %2817 = vmatpush1.msra.mxu0 0.0
        %2818 = vmatprep.subr.mxu0 0.0
        %2819 = vmatpush1.msra.mxu0 0.0
        %2820 = vmatprep.subr.mxu0 0.0
        %2821 = vmatpush1.msra.mxu0 0.0
        %2822 = vmatprep.subr.mxu0 0.0
        %2823 = vmatpush1.msra.mxu0 0.0
        %2824 = vmatprep.subr.mxu0 0.0
        %2825 = vmatpush1.msra.mxu0 0.0
        %2826 = vmatprep.subr.mxu0 0.0
        %2827 = vmatpush1.msra.mxu0 0.0
        %2828 = vmatprep.subr.mxu0 0.0
        %2829 = vmatpush1.msra.mxu0 0.0
        %2830 = vmatprep.subr.mxu0 0.0
        %2831 = vmatpush1.msra.mxu0 0.0
        %2832 = vmatprep.subr.mxu0 0.0
        %2833 = vmatpush1.msra.mxu0 0.0
        %2834 = vmatprep.subr.mxu0 0.0
        %2835 = vmatpush1.msra.mxu0 0.0
        %2836 = vmatprep.subr.mxu0 0.0
        %2837 = vmatpush1.msra.mxu0 0.0
        %2838 = vmatprep.subr.mxu0 0.0
        %2839 = vmatpush1.msra.mxu0 0.0
        %2840 = vmatprep.subr.mxu0 0.0
        %2841 = vmatpush1.msra.mxu0 0.0
        %2842 = vmatprep.subr.mxu0 0.0
        %2843 = vmatpush1.msra.mxu0 0.0
        %2844 = vmatprep.subr.mxu0 0.0
        %2845 = vmatpush1.msra.mxu0 0.0
        %2846 = vmatprep.subr.mxu0 0.0
        %2847 = vmatpush1.msra.mxu0 0.0
        %2848 = vmatprep.subr.mxu0 0.0
        %2849 = vmatpush1.msra.mxu0 0.0
        %2850 = vmatprep.subr.mxu0 0.0
        %2851 = vmatpush1.msra.mxu0 0.0
        %2852 = vmatprep.subr.mxu0 0.0
        %2853 = vmatpush1.msra.mxu0 0.0
        %2854 = vmatprep.subr.mxu0 0.0
        %2855 = vmatpush1.msra.mxu0 0.0
        %2856 = vmatprep.subr.mxu0 0.0
        %2857 = vmatpush1.msra.mxu0 0.0
        %2858 = vmatprep.subr.mxu0 0.0
        %2859 = vmatpush1.msra.mxu0 0.0
        %2860 = vmatprep.subr.mxu0 0.0
        %2861 = vmatpush1.msra.mxu0 0.0
        %2862 = vmatprep.subr.mxu0 0.0
        %2863 = vmatpush1.msra.mxu0 0.0
        %2864 = vmatprep.subr.mxu0 0.0
        %2865 = vmatpush1.msra.mxu0 0.0
        %2866 = vmatprep.subr.mxu0 0.0
        %2867 = vmatpush1.msra.mxu0 0.0
        %2868 = vmatprep.subr.mxu0 0.0
        %2869 = vmatpush1.msra.mxu0 0.0
        %2870 = vmatprep.subr.mxu0 0.0
        %2871 = vmatpush1.msra.mxu0 0.0
        %2872 = vmatprep.subr.mxu0 0.0
        %2873 = vmatpush1.msra.mxu0 0.0
        %2874 = vmatprep.subr.mxu0 0.0
        %2875 = vmatpush1.msra.mxu0 0.0
        %2876 = vmatprep.mubr.f32.mxu0 0.0
        %2877 = vmatmul.mubr.f32.gmra.mrb[0].mxu0 %v2717
        %v2878 = vpop.f32.mrb[0].mxu0
        %v2879 = vadd.f32 0.0, %v2878
        %v2880 = vpop.f32.mrb[0].mxu0
        %2881 = vmatprep.mubr.f32.mxu0 0.0
        %2882 = vmatmul.mubr.f32.gmra.mrb[0].mxu0 %v2720
        %v2883 = vpop.f32.mrb[0].mxu0
        %v2884 = vadd.f32 0.0, %v2883
        %v2885 = vpop.f32.mrb[0].mxu0
        %2886 = vmatprep.mubr.f32.mxu0 0.0
        %2887 = vmatmul.mubr.f32.gmra.mrb[0].mxu0 %v2723
        %v2888 = vpop.f32.mrb[0].mxu0
        %v2889 = vadd.f32 0.0, %v2888
        %v2890 = vpop.f32.mrb[0].mxu0
        %2891 = vmatprep.mubr.f32.mxu0 0.0
        %2892 = vmatmul.mubr.f32.gmra.mrb[0].mxu0 %v2726
        %v2893 = vpop.f32.mrb[0].mxu0
        %v2894 = vadd.f32 0.0, %v2893
        %v2895 = vpop.f32.mrb[0].mxu0
        %2896 = vmatprep.mubr.f32.mxu0 0.0
        %2897 = vmatmul.mubr.f32.gmra.mrb[0].mxu0 %v2729
        %v2898 = vpop.f32.mrb[0].mxu0
        %v2899 = vadd.f32 0.0, %v2898
        %v2900 = vpop.f32.mrb[0].mxu0
        %2901 = vmatprep.mubr.f32.mxu0 0.0
        %2902 = vmatmul.mubr.f32.gmra.mrb[0].mxu0 %v2732
        %v2903 = vpop.f32.mrb[0].mxu0
        %v2904 = vadd.f32 0.0, %v2903
        %v2905 = vpop.f32.mrb[0].mxu0
        %2906 = vmatprep.mubr.f32.mxu0 0.0
        %2907 = vmatmul.mubr.f32.gmra.mrb[0].mxu0 %v2735
        %v2908 = vpop.f32.mrb[0].mxu0
        %v2909 = vadd.f32 0.0, %v2908
        %v2910 = vpop.f32.mrb[0].mxu0
        %2911 = vmatprep.mubr.f32.mxu0 0.0
        %2912 = vmatmul.mubr.f32.gmra.mrb[0].mxu0 %v2738
        %v2913 = vpop.f32.mrb[0].mxu0
        %v2914 = vadd.f32 0.0, %v2913
        %v2915 = vpop.f32.mrb[0].mxu0
        %2916 = vmatprep.mubr.f32.mxu0 0.0
        %2917 = vmatmul.mubr.f32.gmra.mrb[0].mxu0 %v2741
        %v2918 = vpop.f32.mrb[0].mxu0
        %v2919 = vadd.f32 0.0, %v2918
        %v2920 = vpop.f32.mrb[0].mxu0
        %2921 = vmatprep.mubr.f32.mxu0 0.0
        %2922 = vmatmul.mubr.f32.gmra.mrb[0].mxu0 %v2744
        %v2923 = vpop.f32.mrb[0].mxu0
        %v2924 = vadd.f32 0.0, %v2923
        %v2925 = vpop.f32.mrb[0].mxu0
        %2926 = vmatprep.mubr.f32.mxu0 0.0
        %2927 = vmatmul.mubr.f32.gmra.mrb[0].mxu0 %v2747
        %v2928 = vpop.f32.mrb[0].mxu0
        %v2929 = vadd.f32 0.0, %v2928
        %v2930 = vpop.f32.mrb[0].mxu0
        %2931 = vmatprep.mubr.f32.mxu0 0.0
        %2932 = vmatmul.mubr.f32.gmra.mrb[0].mxu0 %v2750
        %v2933 = vpop.f32.mrb[0].mxu0
        %v2934 = vadd.f32 0.0, %v2933
        %v2935 = vpop.f32.mrb[0].mxu0
        %2936 = vmatprep.mubr.f32.mxu0 0.0
        %2937 = vmatmul.mubr.f32.gmra.mrb[0].mxu0 %v2753
        %v2938 = vpop.f32.mrb[0].mxu0
        %v2939 = vadd.f32 0.0, %v2938
        %v2940 = vpop.f32.mrb[0].mxu0
        %2941 = vmatprep.mubr.f32.mxu0 0.0
        %2942 = vmatmul.mubr.f32.gmra.mrb[0].mxu0 %v2756
        %v2943 = vpop.f32.mrb[0].mxu0
        %v2944 = vadd.f32 0.0, %v2943
        %v2945 = vpop.f32.mrb[0].mxu0
        %2946 = vmatprep.mubr.f32.mxu0 0.0
        %2947 = vmatmul.mubr.f32.gmra.mrb[0].mxu0 %v2759
        %v2948 = vpop.f32.mrb[0].mxu0
        %v2949 = vadd.f32 0.0, %v2948
        %v2950 = vpop.f32.mrb[0].mxu0
        %2951 = vmatprep.mubr.f32.mxu0 0.0
        %2952 = vmatmul.mubr.f32.gmra.mrb[0].mxu0 %v2762
        %v2953 = vpop.f32.mrb[0].mxu0
        %v2954 = vadd.f32 0.0, %v2953
        %v2955 = vpop.f32.mrb[0].mxu0
        %2956 = vmatprep.mubr.f32.mxu0 0.0
        %2957 = vmatmul.mubr.f32.gmra.mrb[0].mxu0 %v2765
        %v2958 = vpop.f32.mrb[0].mxu0
        %v2959 = vadd.f32 0.0, %v2958
        %v2960 = vpop.f32.mrb[0].mxu0
        %2961 = vmatprep.mubr.f32.mxu0 0.0
        %2962 = vmatmul.mubr.f32.gmra.mrb[0].mxu0 %v2768
        %v2963 = vpop.f32.mrb[0].mxu0
        %v2964 = vadd.f32 0.0, %v2963
        %v2965 = vpop.f32.mrb[0].mxu0
        %2966 = vmatprep.mubr.f32.mxu0 0.0
        %2967 = vmatmul.mubr.f32.gmra.mrb[0].mxu0 %v2771
        %v2968 = vpop.f32.mrb[0].mxu0
        %v2969 = vadd.f32 0.0, %v2968
        %v2970 = vpop.f32.mrb[0].mxu0
        %2971 = vmatprep.mubr.f32.mxu0 0.0
        %2972 = vmatmul.mubr.f32.gmra.mrb[0].mxu0 %v2774
        %v2973 = vpop.f32.mrb[0].mxu0
        %v2974 = vadd.f32 0.0, %v2973
        %v2975 = vpop.f32.mrb[0].mxu0
        %2976 = vmatprep.mubr.f32.mxu0 0.0
        %2977 = vmatmul.mubr.f32.gmra.mrb[0].mxu0 %v2777
        %v2978 = vpop.f32.mrb[0].mxu0
        %v2979 = vadd.f32 0.0, %v2978
        %v2980 = vpop.f32.mrb[0].mxu0
        %2981 = vmatprep.mubr.f32.mxu0 0.0
        %2982 = vmatmul.mubr.f32.gmra.mrb[0].mxu0 %v2780
        %v2983 = vpop.f32.mrb[0].mxu0
        %v2984 = vadd.f32 0.0, %v2983
        %v2985 = vpop.f32.mrb[0].mxu0
        %2986 = vmatprep.mubr.f32.mxu0 0.0
        %2987 = vmatmul.mubr.f32.gmra.mrb[0].mxu0 %v2783
        %v2988 = vpop.f32.mrb[0].mxu0
        %v2989 = vadd.f32 0.0, %v2988
        %v2990 = vpop.f32.mrb[0].mxu0
        %2991 = vmatprep.mubr.f32.mxu0 0.0
        %2992 = vmatmul.mubr.f32.gmra.mrb[0].mxu0 %v2786
        %v2993 = vpop.f32.mrb[0].mxu0
        %v2994 = vadd.f32 0.0, %v2993
        %v2995 = vpop.f32.mrb[0].mxu0
        %2996 = vmatprep.mubr.f32.mxu0 0.0
        %2997 = vmatmul.mubr.f32.gmra.mrb[0].mxu0 %v2789
        %v2998 = vpop.f32.mrb[0].mxu0
        %v2999 = vadd.f32 0.0, %v2998
        %v3000 = vpop.f32.mrb[0].mxu0
        %3001 = vmatprep.mubr.f32.mxu0 0.0
        %3002 = vmatmul.mubr.f32.gmra.mrb[0].mxu0 %v2792
        %v3003 = vpop.f32.mrb[0].mxu0
        %v3004 = vadd.f32 0.0, %v3003
        %v3005 = vpop.f32.mrb[0].mxu0
        %3006 = vmatprep.mubr.f32.mxu0 0.0
        %3007 = vmatmul.mubr.f32.gmra.mrb[0].mxu0 %v2795
        %v3008 = vpop.f32.mrb[0].mxu0
        %v3009 = vadd.f32 0.0, %v3008
        %v3010 = vpop.f32.mrb[0].mxu0
        %3011 = vmatprep.mubr.f32.mxu0 0.0
        %3012 = vmatmul.mubr.f32.gmra.mrb[0].mxu0 %v2798
        %v3013 = vpop.f32.mrb[0].mxu0
        %v3014 = vadd.f32 0.0, %v3013
        %v3015 = vpop.f32.mrb[0].mxu0
        %3016 = vmatprep.mubr.f32.mxu0 0.0
        %3017 = vmatmul.mubr.f32.gmra.mrb[0].mxu0 %v2801
        %v3018 = vpop.f32.mrb[0].mxu0
        %v3019 = vadd.f32 0.0, %v3018
        %v3020 = vpop.f32.mrb[0].mxu0
        %3021 = vmatprep.mubr.f32.mxu0 0.0
        %3022 = vmatmul.mubr.f32.gmra.mrb[0].mxu0 %v2804
        %v3023 = vpop.f32.mrb[0].mxu0
        %v3024 = vadd.f32 0.0, %v3023
        %v3025 = vpop.f32.mrb[0].mxu0
        %3026 = vmatprep.mubr.f32.mxu0 0.0
        %3027 = vmatmul.mubr.f32.gmra.mrb[0].mxu0 %v2807
        %v3028 = vpop.f32.mrb[0].mxu0
        %v3029 = vadd.f32 0.0, %v3028
        %v3030 = vpop.f32.mrb[0].mxu0
        %3031 = vmatprep.mubr.f32.mxu0 0.0
        %3032 = vmatmul.mubr.f32.gmra.mrb[0].mxu0 %v2810
        %v3033 = vpop.f32.mrb[0].mxu0
        %v3034 = vadd.f32 0.0, %v3033
        %v3035 = vpop.f32.mrb[0].mxu0
        %3036 = vdwg.mxu0
        %v3038 = vsel %vm1159, %v2879, 0
        %v3041 = vsel %vm1159, %v2884, 0
        %v3044 = vsel %vm1159, %v2889, 0
        %v3047 = vsel %vm1159, %v2894, 0
        %v3050 = vsel %vm1159, %v2899, 0
        %v3053 = vsel %vm1159, %v2904, 0
        %v3056 = vsel %vm1159, %v2909, 0
        %v3059 = vsel %vm1159, %v2914, 0
        %v3062 = vsel %vm1159, %v2919, 0
        %v3065 = vsel %vm1159, %v2924, 0
        %v3068 = vsel %vm1159, %v2929, 0
        %v3071 = vsel %vm1159, %v2934, 0
        %v3074 = vsel %vm1159, %v2939, 0
        %v3077 = vsel %vm1159, %v2944, 0
        %v3080 = vsel %vm1159, %v2949, 0
        %v3083 = vsel %vm1159, %v2954, 0
        %v3086 = vsel %vm1159, %v2959, 0
        %v3089 = vsel %vm1159, %v2964, 0
        %v3092 = vsel %vm1159, %v2969, 0
        %v3095 = vsel %vm1159, %v2974, 0
        %v3098 = vsel %vm1159, %v2979, 0
        %v3101 = vsel %vm1159, %v2984, 0
        %v3104 = vsel %vm1159, %v2989, 0
        %v3107 = vsel %vm1159, %v2994, 0
        %v3110 = vsel %vm1159, %v2999, 0
        %v3113 = vsel %vm1159, %v3004, 0
        %v3116 = vsel %vm1159, %v3009, 0
        %v3119 = vsel %vm1159, %v3014, 0
        %v3122 = vsel %vm1159, %v3019, 0
        %v3125 = vsel %vm1159, %v3024, 0
        %v3128 = vsel %vm1159, %v3029, 0
        %v3131 = vsel %vm1159, %v3034, 0
        %3133 = vmatprep.subr.mxu0 0.0
        %3134 = vmatpush1.xpose.msra.mxu0 %v2717
        %3135 = vmatprep.subr.mxu0 0.0
        %3136 = vmatpush1.xpose.msra.mxu0 %v2720
        %3137 = vmatprep.subr.mxu0 0.0
        %3138 = vmatpush1.xpose.msra.mxu0 %v2723
        %3139 = vmatprep.subr.mxu0 0.0
        %3140 = vmatpush1.xpose.msra.mxu0 %v2726
        %3141 = vmatprep.subr.mxu0 0.0
        %3142 = vmatpush1.xpose.msra.mxu0 %v2729
        %3143 = vmatprep.subr.mxu0 0.0
        %3144 = vmatpush1.xpose.msra.mxu0 %v2732
        %3145 = vmatprep.subr.mxu0 0.0
        %3146 = vmatpush1.xpose.msra.mxu0 %v2735
        %3147 = vmatprep.subr.mxu0 0.0
        %3148 = vmatpush1.xpose.msra.mxu0 %v2738
        %3149 = vmatprep.subr.mxu0 0.0
        %3150 = vmatpush1.xpose.msra.mxu0 %v2741
        %3151 = vmatprep.subr.mxu0 0.0
        %3152 = vmatpush1.xpose.msra.mxu0 %v2744
        %3153 = vmatprep.subr.mxu0 0.0
        %3154 = vmatpush1.xpose.msra.mxu0 %v2747
        %3155 = vmatprep.subr.mxu0 0.0
        %3156 = vmatpush1.xpose.msra.mxu0 %v2750
        %3157 = vmatprep.subr.mxu0 0.0
        %3158 = vmatpush1.xpose.msra.mxu0 %v2753
        %3159 = vmatprep.subr.mxu0 0.0
        %3160 = vmatpush1.xpose.msra.mxu0 %v2756
        %3161 = vmatprep.subr.mxu0 0.0
        %3162 = vmatpush1.xpose.msra.mxu0 %v2759
        %3163 = vmatprep.subr.mxu0 0.0
        %3164 = vmatpush1.xpose.msra.mxu0 %v2762
        %3165 = vmatprep.subr.mxu0 0.0
        %3166 = vmatpush1.xpose.msra.mxu0 %v2765
        %3167 = vmatprep.subr.mxu0 0.0
        %3168 = vmatpush1.xpose.msra.mxu0 %v2768
        %3169 = vmatprep.subr.mxu0 0.0
        %3170 = vmatpush1.xpose.msra.mxu0 %v2771
        %3171 = vmatprep.subr.mxu0 0.0
        %3172 = vmatpush1.xpose.msra.mxu0 %v2774
        %3173 = vmatprep.subr.mxu0 0.0
        %3174 = vmatpush1.xpose.msra.mxu0 %v2777
        %3175 = vmatprep.subr.mxu0 0.0
        %3176 = vmatpush1.xpose.msra.mxu0 %v2780
        %3177 = vmatprep.subr.mxu0 0.0
        %3178 = vmatpush1.xpose.msra.mxu0 %v2783
        %3179 = vmatprep.subr.mxu0 0.0
        %3180 = vmatpush1.xpose.msra.mxu0 %v2786
        %3181 = vmatprep.subr.mxu0 0.0
        %3182 = vmatpush1.xpose.msra.mxu0 %v2789
        %3183 = vmatprep.subr.mxu0 0.0
        %3184 = vmatpush1.xpose.msra.mxu0 %v2792
        %3185 = vmatprep.subr.mxu0 0.0
        %3186 = vmatpush1.xpose.msra.mxu0 %v2795
        %3187 = vmatprep.subr.mxu0 0.0
        %3188 = vmatpush1.xpose.msra.mxu0 %v2798
        %3189 = vmatprep.subr.mxu0 0.0
        %3190 = vmatpush1.xpose.msra.mxu0 %v2801
        %3191 = vmatprep.subr.mxu0 0.0
        %3192 = vmatpush1.xpose.msra.mxu0 %v2804
        %3193 = vmatprep.subr.mxu0 0.0
        %3194 = vmatpush1.xpose.msra.mxu0 %v2807
        %3195 = vmatprep.subr.mxu0 0.0
        %3196 = vmatpush1.xpose.msra.mxu0 %v2810
        %3197 = vmatprep.mubr.f32.mxu0 0.0
        %3198 = vmatmul.mubr.f32.gmra.mrb[0].mxu0 %v3038
        %v3199 = vpop.f32.mrb[0].mxu0
        %v3200 = vadd.f32 0.0, %v3199
        %v3201 = vpop.f32.mrb[0].mxu0
        %v3202 = vadd.f32 0.0, %v3201
        %3203 = vmatprep.mubr.f32.mxu0 0.0
        %3204 = vmatmul.mubr.f32.gmra.mrb[0].mxu0 %v3041
        %v3205 = vpop.f32.mrb[0].mxu0
        %v3206 = vadd.f32 0.0, %v3205
        %v3207 = vpop.f32.mrb[0].mxu0
        %v3208 = vadd.f32 0.0, %v3207
        %3209 = vmatprep.mubr.f32.mxu0 0.0
        %3210 = vmatmul.mubr.f32.gmra.mrb[0].mxu0 %v3044
        %v3211 = vpop.f32.mrb[0].mxu0
        %v3212 = vadd.f32 0.0, %v3211
        %v3213 = vpop.f32.mrb[0].mxu0
        %v3214 = vadd.f32 0.0, %v3213
        %3215 = vmatprep.mubr.f32.mxu0 0.0
        %3216 = vmatmul.mubr.f32.gmra.mrb[0].mxu0 %v3047
        %v3217 = vpop.f32.mrb[0].mxu0
        %v3218 = vadd.f32 0.0, %v3217
        %v3219 = vpop.f32.mrb[0].mxu0
        %v3220 = vadd.f32 0.0, %v3219
        %3221 = vmatprep.mubr.f32.mxu0 0.0
        %3222 = vmatmul.mubr.f32.gmra.mrb[0].mxu0 %v3050
        %v3223 = vpop.f32.mrb[0].mxu0
        %v3224 = vadd.f32 0.0, %v3223
        %v3225 = vpop.f32.mrb[0].mxu0
        %v3226 = vadd.f32 0.0, %v3225
        %3227 = vmatprep.mubr.f32.mxu0 0.0
        %3228 = vmatmul.mubr.f32.gmra.mrb[0].mxu0 %v3053
        %v3229 = vpop.f32.mrb[0].mxu0
        %v3230 = vadd.f32 0.0, %v3229
        %v3231 = vpop.f32.mrb[0].mxu0
        %v3232 = vadd.f32 0.0, %v3231
        %3233 = vmatprep.mubr.f32.mxu0 0.0
        %3234 = vmatmul.mubr.f32.gmra.mrb[0].mxu0 %v3056
        %v3235 = vpop.f32.mrb[0].mxu0
        %v3236 = vadd.f32 0.0, %v3235
        %v3237 = vpop.f32.mrb[0].mxu0
        %v3238 = vadd.f32 0.0, %v3237
        %3239 = vmatprep.mubr.f32.mxu0 0.0
        %3240 = vmatmul.mubr.f32.gmra.mrb[0].mxu0 %v3059
        %v3241 = vpop.f32.mrb[0].mxu0
        %v3242 = vadd.f32 0.0, %v3241
        %v3243 = vpop.f32.mrb[0].mxu0
        %v3244 = vadd.f32 0.0, %v3243
        %3245 = vmatprep.mubr.f32.mxu0 0.0
        %3246 = vmatmul.mubr.f32.gmra.mrb[0].mxu0 %v3062
        %v3247 = vpop.f32.mrb[0].mxu0
        %v3248 = vadd.f32 0.0, %v3247
        %v3249 = vpop.f32.mrb[0].mxu0
        %v3250 = vadd.f32 0.0, %v3249
        %3251 = vmatprep.mubr.f32.mxu0 0.0
        %3252 = vmatmul.mubr.f32.gmra.mrb[0].mxu0 %v3065
        %v3253 = vpop.f32.mrb[0].mxu0
        %v3254 = vadd.f32 0.0, %v3253
        %v3255 = vpop.f32.mrb[0].mxu0
        %v3256 = vadd.f32 0.0, %v3255
        %3257 = vmatprep.mubr.f32.mxu0 0.0
        %3258 = vmatmul.mubr.f32.gmra.mrb[0].mxu0 %v3068
        %v3259 = vpop.f32.mrb[0].mxu0
        %v3260 = vadd.f32 0.0, %v3259
        %v3261 = vpop.f32.mrb[0].mxu0
        %v3262 = vadd.f32 0.0, %v3261
        %3263 = vmatprep.mubr.f32.mxu0 0.0
        %3264 = vmatmul.mubr.f32.gmra.mrb[0].mxu0 %v3071
        %v3265 = vpop.f32.mrb[0].mxu0
        %v3266 = vadd.f32 0.0, %v3265
        %v3267 = vpop.f32.mrb[0].mxu0
        %v3268 = vadd.f32 0.0, %v3267
        %3269 = vmatprep.mubr.f32.mxu0 0.0
        %3270 = vmatmul.mubr.f32.gmra.mrb[0].mxu0 %v3074
        %v3271 = vpop.f32.mrb[0].mxu0
        %v3272 = vadd.f32 0.0, %v3271
        %v3273 = vpop.f32.mrb[0].mxu0
        %v3274 = vadd.f32 0.0, %v3273
        %3275 = vmatprep.mubr.f32.mxu0 0.0
        %3276 = vmatmul.mubr.f32.gmra.mrb[0].mxu0 %v3077
        %v3277 = vpop.f32.mrb[0].mxu0
        %v3278 = vadd.f32 0.0, %v3277
        %v3279 = vpop.f32.mrb[0].mxu0
        %v3280 = vadd.f32 0.0, %v3279
        %3281 = vmatprep.mubr.f32.mxu0 0.0
        %3282 = vmatmul.mubr.f32.gmra.mrb[0].mxu0 %v3080
        %v3283 = vpop.f32.mrb[0].mxu0
        %v3284 = vadd.f32 0.0, %v3283
        %v3285 = vpop.f32.mrb[0].mxu0
        %v3286 = vadd.f32 0.0, %v3285
        %3287 = vmatprep.mubr.f32.mxu0 0.0
        %3288 = vmatmul.mubr.f32.gmra.mrb[0].mxu0 %v3083
        %v3289 = vpop.f32.mrb[0].mxu0
        %v3290 = vadd.f32 0.0, %v3289
        %v3291 = vpop.f32.mrb[0].mxu0
        %v3292 = vadd.f32 0.0, %v3291
        %3293 = vmatprep.mubr.f32.mxu0 0.0
        %3294 = vmatmul.mubr.f32.gmra.mrb[0].mxu0 %v3086
        %v3295 = vpop.f32.mrb[0].mxu0
        %v3296 = vadd.f32 0.0, %v3295
        %v3297 = vpop.f32.mrb[0].mxu0
        %v3298 = vadd.f32 0.0, %v3297
        %3299 = vmatprep.mubr.f32.mxu0 0.0
        %3300 = vmatmul.mubr.f32.gmra.mrb[0].mxu0 %v3089
        %v3301 = vpop.f32.mrb[0].mxu0
        %v3302 = vadd.f32 0.0, %v3301
        %v3303 = vpop.f32.mrb[0].mxu0
        %v3304 = vadd.f32 0.0, %v3303
        %3305 = vmatprep.mubr.f32.mxu0 0.0
        %3306 = vmatmul.mubr.f32.gmra.mrb[0].mxu0 %v3092
        %v3307 = vpop.f32.mrb[0].mxu0
        %v3308 = vadd.f32 0.0, %v3307
        %v3309 = vpop.f32.mrb[0].mxu0
        %v3310 = vadd.f32 0.0, %v3309
        %3311 = vmatprep.mubr.f32.mxu0 0.0
        %3312 = vmatmul.mubr.f32.gmra.mrb[0].mxu0 %v3095
        %v3313 = vpop.f32.mrb[0].mxu0
        %v3314 = vadd.f32 0.0, %v3313
        %v3315 = vpop.f32.mrb[0].mxu0
        %v3316 = vadd.f32 0.0, %v3315
        %3317 = vmatprep.mubr.f32.mxu0 0.0
        %3318 = vmatmul.mubr.f32.gmra.mrb[0].mxu0 %v3098
        %v3319 = vpop.f32.mrb[0].mxu0
        %v3320 = vadd.f32 0.0, %v3319
        %v3321 = vpop.f32.mrb[0].mxu0
        %v3322 = vadd.f32 0.0, %v3321
        %3323 = vmatprep.mubr.f32.mxu0 0.0
        %3324 = vmatmul.mubr.f32.gmra.mrb[0].mxu0 %v3101
        %v3325 = vpop.f32.mrb[0].mxu0
        %v3326 = vadd.f32 0.0, %v3325
        %v3327 = vpop.f32.mrb[0].mxu0
        %v3328 = vadd.f32 0.0, %v3327
        %3329 = vmatprep.mubr.f32.mxu0 0.0
        %3330 = vmatmul.mubr.f32.gmra.mrb[0].mxu0 %v3104
        %v3331 = vpop.f32.mrb[0].mxu0
        %v3332 = vadd.f32 0.0, %v3331
        %v3333 = vpop.f32.mrb[0].mxu0
        %v3334 = vadd.f32 0.0, %v3333
        %3335 = vmatprep.mubr.f32.mxu0 0.0
        %3336 = vmatmul.mubr.f32.gmra.mrb[0].mxu0 %v3107
        %v3337 = vpop.f32.mrb[0].mxu0
        %v3338 = vadd.f32 0.0, %v3337
        %v3339 = vpop.f32.mrb[0].mxu0
        %v3340 = vadd.f32 0.0, %v3339
        %3341 = vmatprep.mubr.f32.mxu0 0.0
        %3342 = vmatmul.mubr.f32.gmra.mrb[0].mxu0 %v3110
        %v3343 = vpop.f32.mrb[0].mxu0
        %v3344 = vadd.f32 0.0, %v3343
        %v3345 = vpop.f32.mrb[0].mxu0
        %v3346 = vadd.f32 0.0, %v3345
        %3347 = vmatprep.mubr.f32.mxu0 0.0
        %3348 = vmatmul.mubr.f32.gmra.mrb[0].mxu0 %v3113
        %v3349 = vpop.f32.mrb[0].mxu0
        %v3350 = vadd.f32 0.0, %v3349
        %v3351 = vpop.f32.mrb[0].mxu0
        %v3352 = vadd.f32 0.0, %v3351
        %3353 = vmatprep.mubr.f32.mxu0 0.0
        %3354 = vmatmul.mubr.f32.gmra.mrb[0].mxu0 %v3116
        %v3355 = vpop.f32.mrb[0].mxu0
        %v3356 = vadd.f32 0.0, %v3355
        %v3357 = vpop.f32.mrb[0].mxu0
        %v3358 = vadd.f32 0.0, %v3357
        %3359 = vmatprep.mubr.f32.mxu0 0.0
        %3360 = vmatmul.mubr.f32.gmra.mrb[0].mxu0 %v3119
        %v3361 = vpop.f32.mrb[0].mxu0
        %v3362 = vadd.f32 0.0, %v3361
        %v3363 = vpop.f32.mrb[0].mxu0
        %v3364 = vadd.f32 0.0, %v3363
        %3365 = vmatprep.mubr.f32.mxu0 0.0
        %3366 = vmatmul.mubr.f32.gmra.mrb[0].mxu0 %v3122
        %v3367 = vpop.f32.mrb[0].mxu0
        %v3368 = vadd.f32 0.0, %v3367
        %v3369 = vpop.f32.mrb[0].mxu0
        %v3370 = vadd.f32 0.0, %v3369
        %3371 = vmatprep.mubr.f32.mxu0 0.0
        %3372 = vmatmul.mubr.f32.gmra.mrb[0].mxu0 %v3125
        %v3373 = vpop.f32.mrb[0].mxu0
        %v3374 = vadd.f32 0.0, %v3373
        %v3375 = vpop.f32.mrb[0].mxu0
        %v3376 = vadd.f32 0.0, %v3375
        %3377 = vmatprep.mubr.f32.mxu0 0.0
        %3378 = vmatmul.mubr.f32.gmra.mrb[0].mxu0 %v3128
        %v3379 = vpop.f32.mrb[0].mxu0
        %v3380 = vadd.f32 0.0, %v3379
        %v3381 = vpop.f32.mrb[0].mxu0
        %v3382 = vadd.f32 0.0, %v3381
        %3383 = vmatprep.mubr.f32.mxu0 0.0
        %3384 = vmatmul.mubr.f32.gmra.mrb[0].mxu0 %v3131
        %v3385 = vpop.f32.mrb[0].mxu0
        %v3386 = vadd.f32 0.0, %v3385
        %v3387 = vpop.f32.mrb[0].mxu0
        %v3388 = vadd.f32 0.0, %v3387
        %3389 = vdwg.mxu0
        %v3390 = vmul.f32 %v3200, %v396
        %v3391 = vmul.f32 %v3202, %v397
        %v3392 = vmul.f32 %v3206, %v398
        %v3393 = vmul.f32 %v3208, %v399
        %v3394 = vmul.f32 %v3212, %v400
        %v3395 = vmul.f32 %v3214, %v401
        %v3396 = vmul.f32 %v3218, %v402
        %v3397 = vmul.f32 %v3220, %v403
        %v3398 = vmul.f32 %v3224, %v404
        %v3399 = vmul.f32 %v3226, %v405
        %v3400 = vmul.f32 %v3230, %v406
        %v3401 = vmul.f32 %v3232, %v407
        %v3402 = vmul.f32 %v3236, %v408
        %v3403 = vmul.f32 %v3238, %v409
        %v3404 = vmul.f32 %v3242, %v410
        %v3405 = vmul.f32 %v3244, %v411
        %v3406 = vmul.f32 %v3248, %v412
        %v3407 = vmul.f32 %v3250, %v413
        %v3408 = vmul.f32 %v3254, %v414
        %v3409 = vmul.f32 %v3256, %v415
        %v3410 = vmul.f32 %v3260, %v416
        %v3411 = vmul.f32 %v3262, %v417
        %v3412 = vmul.f32 %v3266, %v418
        %v3413 = vmul.f32 %v3268, %v419
        %v3414 = vmul.f32 %v3272, %v420
        %v3415 = vmul.f32 %v3274, %v421
        %v3416 = vmul.f32 %v3278, %v422
        %v3417 = vmul.f32 %v3280, %v423
        %v3418 = vmul.f32 %v3284, %v424
        %v3419 = vmul.f32 %v3286, %v425
        %v3420 = vmul.f32 %v3290, %v426
        %v3421 = vmul.f32 %v3292, %v427
        %v3422 = vmul.f32 %v3296, %v428
        %v3423 = vmul.f32 %v3298, %v429
        %v3424 = vmul.f32 %v3302, %v430
        %v3425 = vmul.f32 %v3304, %v431
        %v3426 = vmul.f32 %v3308, %v432
        %v3427 = vmul.f32 %v3310, %v433
        %v3428 = vmul.f32 %v3314, %v434
        %v3429 = vmul.f32 %v3316, %v435
        %v3430 = vmul.f32 %v3320, %v436
        %v3431 = vmul.f32 %v3322, %v437
        %v3432 = vmul.f32 %v3326, %v438
        %v3433 = vmul.f32 %v3328, %v439
        %v3434 = vmul.f32 %v3332, %v440
        %v3435 = vmul.f32 %v3334, %v441
        %v3436 = vmul.f32 %v3338, %v442
        %v3437 = vmul.f32 %v3340, %v443
        %v3438 = vmul.f32 %v3344, %v444
        %v3439 = vmul.f32 %v3346, %v445
        %v3440 = vmul.f32 %v3350, %v446
        %v3441 = vmul.f32 %v3352, %v447
        %v3442 = vmul.f32 %v3356, %v448
        %v3443 = vmul.f32 %v3358, %v449
        %v3444 = vmul.f32 %v3362, %v450
        %v3445 = vmul.f32 %v3364, %v451
        %v3446 = vmul.f32 %v3368, %v452
        %v3447 = vmul.f32 %v3370, %v453
        %v3448 = vmul.f32 %v3374, %v454
        %v3449 = vmul.f32 %v3376, %v455
        %v3450 = vmul.f32 %v3380, %v456
        %v3451 = vmul.f32 %v3382, %v457
        %v3452 = vmul.f32 %v3386, %v458
        %v3453 = vmul.f32 %v3388, %v459
        %3454 = vmatprep.subr.mxu0 %v3391
        %3455 = vmatpush1.xpose.msra.mxu0 %v3390
        %3456 = vmatprep.subr.mxu0 %v3393
        %3457 = vmatpush1.xpose.msra.mxu0 %v3392
        %3458 = vmatprep.subr.mxu0 %v3395
        %3459 = vmatpush1.xpose.msra.mxu0 %v3394
        %3460 = vmatprep.subr.mxu0 %v3397
        %3461 = vmatpush1.xpose.msra.mxu0 %v3396
        %3462 = vmatprep.subr.mxu0 %v3399
        %3463 = vmatpush1.xpose.msra.mxu0 %v3398
        %3464 = vmatprep.subr.mxu0 %v3401
        %3465 = vmatpush1.xpose.msra.mxu0 %v3400
        %3466 = vmatprep.subr.mxu0 %v3403
        %3467 = vmatpush1.xpose.msra.mxu0 %v3402
        %3468 = vmatprep.subr.mxu0 %v3405
        %3469 = vmatpush1.xpose.msra.mxu0 %v3404
        %3470 = vmatprep.subr.mxu0 %v3407
        %3471 = vmatpush1.xpose.msra.mxu0 %v3406
        %3472 = vmatprep.subr.mxu0 %v3409
        %3473 = vmatpush1.xpose.msra.mxu0 %v3408
        %3474 = vmatprep.subr.mxu0 %v3411
        %3475 = vmatpush1.xpose.msra.mxu0 %v3410
        %3476 = vmatprep.subr.mxu0 %v3413
        %3477 = vmatpush1.xpose.msra.mxu0 %v3412
        %3478 = vmatprep.subr.mxu0 %v3415
        %3479 = vmatpush1.xpose.msra.mxu0 %v3414
        %3480 = vmatprep.subr.mxu0 %v3417
        %3481 = vmatpush1.xpose.msra.mxu0 %v3416
        %3482 = vmatprep.subr.mxu0 %v3419
        %3483 = vmatpush1.xpose.msra.mxu0 %v3418
        %3484 = vmatprep.subr.mxu0 %v3421
        %3485 = vmatpush1.xpose.msra.mxu0 %v3420
        %3486 = vmatprep.subr.mxu0 %v3423
        %3487 = vmatpush1.xpose.msra.mxu0 %v3422
        %3488 = vmatprep.subr.mxu0 %v3425
        %3489 = vmatpush1.xpose.msra.mxu0 %v3424
        %3490 = vmatprep.subr.mxu0 %v3427
        %3491 = vmatpush1.xpose.msra.mxu0 %v3426
        %3492 = vmatprep.subr.mxu0 %v3429
        %3493 = vmatpush1.xpose.msra.mxu0 %v3428
        %3494 = vmatprep.subr.mxu0 %v3431
        %3495 = vmatpush1.xpose.msra.mxu0 %v3430
        %3496 = vmatprep.subr.mxu0 %v3433
        %3497 = vmatpush1.xpose.msra.mxu0 %v3432
        %3498 = vmatprep.subr.mxu0 %v3435
        %3499 = vmatpush1.xpose.msra.mxu0 %v3434
        %3500 = vmatprep.subr.mxu0 %v3437
        %3501 = vmatpush1.xpose.msra.mxu0 %v3436
        %3502 = vmatprep.subr.mxu0 %v3439
        %3503 = vmatpush1.xpose.msra.mxu0 %v3438
        %3504 = vmatprep.subr.mxu0 %v3441
        %3505 = vmatpush1.xpose.msra.mxu0 %v3440
        %3506 = vmatprep.subr.mxu0 %v3443
        %3507 = vmatpush1.xpose.msra.mxu0 %v3442
        %3508 = vmatprep.subr.mxu0 %v3445
        %3509 = vmatpush1.xpose.msra.mxu0 %v3444
        %3510 = vmatprep.subr.mxu0 %v3447
        %3511 = vmatpush1.xpose.msra.mxu0 %v3446
        %3512 = vmatprep.subr.mxu0 %v3449
        %3513 = vmatpush1.xpose.msra.mxu0 %v3448
        %3514 = vmatprep.subr.mxu0 %v3451
        %3515 = vmatpush1.xpose.msra.mxu0 %v3450
        %3516 = vmatprep.subr.mxu0 %v3453
        %3517 = vmatpush1.xpose.msra.mxu0 %v3452
        %3518 = vmatprep.mubr.f32.mxu0 %v1995
        %3519 = vmatmul.mubr.f32.gmra.mrb[0].mxu0 %v1994
        %v3520 = vpop.f32.mrb[0].mxu0
        %v3521 = vadd.f32 0.0, %v3520
        %v3522 = vpop.f32.mrb[0].mxu0
        %v3523 = vadd.f32 0.0, %v3522
        %3524 = vdwg.mxu0
        %v3525 = vstv %s1996
        %v3526 = vmul.f32 %v3525, %v3521
        %v3527 = vmul.f32 %v3525, %v3523
        %v3528 = vadd.f32 %v1994, %v3526
        %v3529 = vadd.f32 %v1995, %v3527
        %s3530 = sld [smem:[#allocation2 + $0x2]]
        %3531 = vmatprep.subr.mxu0 %v3529
        %3532 = vmatpush1.xpose.msra.mxu0 %v3528
        %3533 = vmatprep.subr.mxu0 0.0
        %3534 = vmatpush1.xpose.msra.mxu0 0.0
        %3535 = vmatprep.subr.mxu0 0.0
        %3536 = vmatpush1.xpose.msra.mxu0 0.0
        %3537 = vmatprep.subr.mxu0 0.0
        %3538 = vmatpush1.xpose.msra.mxu0 0.0
        %3539 = vmatprep.subr.mxu0 0.0
        %3540 = vmatpush1.xpose.msra.mxu0 0.0
        %3541 = vmatprep.subr.mxu0 0.0
        %3542 = vmatpush1.xpose.msra.mxu0 0.0
        %3543 = vmatprep.subr.mxu0 0.0
        %3544 = vmatpush1.xpose.msra.mxu0 0.0
        %3545 = vmatprep.subr.mxu0 0.0
        %3546 = vmatpush1.xpose.msra.mxu0 0.0
        %3547 = vmatprep.subr.mxu0 0.0
        %3548 = vmatpush1.xpose.msra.mxu0 0.0
        %3549 = vmatprep.subr.mxu0 0.0
        %3550 = vmatpush1.xpose.msra.mxu0 0.0
        %3551 = vmatprep.subr.mxu0 0.0
        %3552 = vmatpush1.xpose.msra.mxu0 0.0
        %3553 = vmatprep.subr.mxu0 0.0
        %3554 = vmatpush1.xpose.msra.mxu0 0.0
        %3555 = vmatprep.subr.mxu0 0.0
        %3556 = vmatpush1.xpose.msra.mxu0 0.0
        %3557 = vmatprep.subr.mxu0 0.0
        %3558 = vmatpush1.xpose.msra.mxu0 0.0
        %3559 = vmatprep.subr.mxu0 0.0
        %3560 = vmatpush1.xpose.msra.mxu0 0.0
        %3561 = vmatprep.subr.mxu0 0.0
        %3562 = vmatpush1.xpose.msra.mxu0 0.0
        %3563 = vmatprep.subr.mxu0 0.0
        %3564 = vmatpush1.xpose.msra.mxu0 0.0
        %3565 = vmatprep.subr.mxu0 0.0
        %3566 = vmatpush1.xpose.msra.mxu0 0.0
        %3567 = vmatprep.subr.mxu0 0.0
        %3568 = vmatpush1.xpose.msra.mxu0 0.0
        %3569 = vmatprep.subr.mxu0 0.0
        %3570 = vmatpush1.xpose.msra.mxu0 0.0
        %3571 = vmatprep.subr.mxu0 0.0
        %3572 = vmatpush1.xpose.msra.mxu0 0.0
        %3573 = vmatprep.subr.mxu0 0.0
        %3574 = vmatpush1.xpose.msra.mxu0 0.0
        %3575 = vmatprep.subr.mxu0 0.0
        %3576 = vmatpush1.xpose.msra.mxu0 0.0
        %3577 = vmatprep.subr.mxu0 0.0
        %3578 = vmatpush1.xpose.msra.mxu0 0.0
        %3579 = vmatprep.subr.mxu0 0.0
        %3580 = vmatpush1.xpose.msra.mxu0 0.0
        %3581 = vmatprep.subr.mxu0 0.0
        %3582 = vmatpush1.xpose.msra.mxu0 0.0
        %3583 = vmatprep.subr.mxu0 0.0
        %3584 = vmatpush1.xpose.msra.mxu0 0.0
        %3585 = vmatprep.subr.mxu0 0.0
        %3586 = vmatpush1.xpose.msra.mxu0 0.0
        %3587 = vmatprep.subr.mxu0 0.0
        %3588 = vmatpush1.xpose.msra.mxu0 0.0
        %3589 = vmatprep.subr.mxu0 0.0
        %3590 = vmatpush1.xpose.msra.mxu0 0.0
        %3591 = vmatprep.subr.mxu0 0.0
        %3592 = vmatpush1.xpose.msra.mxu0 0.0
        %3593 = vmatprep.subr.mxu0 0.0
        %3594 = vmatpush1.xpose.msra.mxu0 0.0
        %3595 = vmatprep.mubr.f32.mxu0 %v3529
        %3596 = vmatmul.mubr.f32.gmra.mrb[0].mxu0 %v3528
        %v3597 = vpop.f32.mrb[0].mxu0
        %v3598 = vadd.f32 0.0, %v3597
        %v3599 = vpop.f32.mrb[0].mxu0
        %3600 = vdwg.mxu0
        %v3601 = vsel %vm525, %v3598, -inf
        %3602 = vmax.xlane.f32.xlu0 %v3601
        %v3603 = vpop.xlane.xlu0 %3602
        %v3604 = vsub.f32 %v3598, %v3603
        %v3605 = vmul.f32 %v3604, 1.442695
        %v3606 = vpow.pop %v3605
        %v3607 = vsel %vm525, %v3606, 0.0
        %3608 = vadd.xlane.f32.xlu0 %v3607
        %v3609 = vpop.xlane.xlu0 %3608
        %v3610 = vrcp.pop %v3609
        %v3611 = vmul.f32 %v3606, %v3610
        %v3613 = vsel %vm525, %v3611, 0
        %3615 = vmatprep.subr.mxu0 %v3529
        %3616 = vmatpush1.msra.mxu0 %v3528
        %3617 = vmatprep.subr.mxu0 0.0
        %3618 = vmatpush1.msra.mxu0 0.0
        %3619 = vmatprep.subr.mxu0 0.0
        %3620 = vmatpush1.msra.mxu0 0.0
        %3621 = vmatprep.subr.mxu0 0.0
        %3622 = vmatpush1.msra.mxu0 0.0
        %3623 = vmatprep.subr.mxu0 0.0
        %3624 = vmatpush1.msra.mxu0 0.0
        %3625 = vmatprep.subr.mxu0 0.0
        %3626 = vmatpush1.msra.mxu0 0.0
        %3627 = vmatprep.subr.mxu0 0.0
        %3628 = vmatpush1.msra.mxu0 0.0
        %3629 = vmatprep.subr.mxu0 0.0
        %3630 = vmatpush1.msra.mxu0 0.0
        %3631 = vmatprep.subr.mxu0 0.0
        %3632 = vmatpush1.msra.mxu0 0.0
        %3633 = vmatprep.subr.mxu0 0.0
        %3634 = vmatpush1.msra.mxu0 0.0
        %3635 = vmatprep.subr.mxu0 0.0
        %3636 = vmatpush1.msra.mxu0 0.0
        %3637 = vmatprep.subr.mxu0 0.0
        %3638 = vmatpush1.msra.mxu0 0.0
        %3639 = vmatprep.subr.mxu0 0.0
        %3640 = vmatpush1.msra.mxu0 0.0
        %3641 = vmatprep.subr.mxu0 0.0
        %3642 = vmatpush1.msra.mxu0 0.0
        %3643 = vmatprep.subr.mxu0 0.0
        %3644 = vmatpush1.msra.mxu0 0.0
        %3645 = vmatprep.subr.mxu0 0.0
        %3646 = vmatpush1.msra.mxu0 0.0
        %3647 = vmatprep.subr.mxu0 0.0
        %3648 = vmatpush1.msra.mxu0 0.0
        %3649 = vmatprep.subr.mxu0 0.0
        %3650 = vmatpush1.msra.mxu0 0.0
        %3651 = vmatprep.subr.mxu0 0.0
        %3652 = vmatpush1.msra.mxu0 0.0
        %3653 = vmatprep.subr.mxu0 0.0
        %3654 = vmatpush1.msra.mxu0 0.0
        %3655 = vmatprep.subr.mxu0 0.0
        %3656 = vmatpush1.msra.mxu0 0.0
        %3657 = vmatprep.subr.mxu0 0.0
        %3658 = vmatpush1.msra.mxu0 0.0
        %3659 = vmatprep.subr.mxu0 0.0
        %3660 = vmatpush1.msra.mxu0 0.0
        %3661 = vmatprep.subr.mxu0 0.0
        %3662 = vmatpush1.msra.mxu0 0.0
        %3663 = vmatprep.subr.mxu0 0.0
        %3664 = vmatpush1.msra.mxu0 0.0
        %3665 = vmatprep.subr.mxu0 0.0
        %3666 = vmatpush1.msra.mxu0 0.0
        %3667 = vmatprep.subr.mxu0 0.0
        %3668 = vmatpush1.msra.mxu0 0.0
        %3669 = vmatprep.subr.mxu0 0.0
        %3670 = vmatpush1.msra.mxu0 0.0
        %3671 = vmatprep.subr.mxu0 0.0
        %3672 = vmatpush1.msra.mxu0 0.0
        %3673 = vmatprep.subr.mxu0 0.0
        %3674 = vmatpush1.msra.mxu0 0.0
        %3675 = vmatprep.subr.mxu0 0.0
        %3676 = vmatpush1.msra.mxu0 0.0
        %3677 = vmatprep.subr.mxu0 0.0
        %3678 = vmatpush1.msra.mxu0 0.0
        %3679 = vmatprep.mubr.f32.mxu0 0.0
        %3680 = vmatmul.mubr.f32.gmra.mrb[0].mxu0 %v3613
        %v3681 = vpop.f32.mrb[0].mxu0
        %v3682 = vadd.f32 0.0, %v3681
        %v3683 = vpop.f32.mrb[0].mxu0
        %v3684 = vadd.f32 0.0, %v3683
        %3685 = vdwg.mxu0
        %v3686 = vstv %s3530
        %v3687 = vmul.f32 %v3686, %v3682
        %v3688 = vmul.f32 %v3686, %v3684
        %v3689 = vadd.f32 %v3528, %v3687
        %v3690 = vadd.f32 %v3529, %v3688
        %3691 = vst [vmem:[%s265] sm:$0xff] %v3689
        %3692 = vst [vmem:[%s265 + $0x8] sm:$0xff] %v3690
        %p3693 = scmp.lt.s32.totalorder %s18, 1
        %s3694 = scalar_select %p3693, %s18, 1
        %s3695 = smul.addr %s3694, 2
        %s3696 = smul.addr %s3695, 8
        %s3697 = scalar_lea.vmem %s6, %s3696
        // Predicated region
        $region49: #{full_ele_att_pallas.1} parent=43 // pred_check
          %p3698 = pneg %p167
        $region50: #{full_ele_att_pallas.1} parent=43 // pred_check_branch
          %3700 = sbr.rel (%p3698) target = $region52
        $region51: #{full_ele_att_pallas.1} parent=43 // pred_region
          _
        $region52: #{full_ele_att_pallas.1} parent=43 // pred_fallthru
          _
      $region44: #{full_ele_att_pallas.1} parent=5 // pred_fallthru
        _
      %p3701 = scmp.le.s32.totalorder 2, %s13
      // Predicated region
      $region53: #{full_ele_att_pallas.1} parent=5 // pred_check
        %p3702 = pneg %p3701
      $region54: #{full_ele_att_pallas.1} parent=5 // pred_check_branch
        %3704 = sbr.rel (%p3702) target = $region56
      $region55: #{full_ele_att_pallas.1} parent=5 // pred_region
        %s3705 = ssub.s32 %s13, 2
        // Predicated region
        $region57: #{full_ele_att_pallas.1} parent=55 // pred_check
          %p3706 = pneg %p173
        $region58: #{full_ele_att_pallas.1} parent=55 // pred_check_branch
          %3708 = sbr.rel (%p3706) target = $region60
        $region59: #{full_ele_att_pallas.1} parent=55 // pred_region
          %p3709 = scmp.lt.s32.totalorder %s19, 1
          %s3710 = scalar_select %p3709, %s19, 1
          %s3711 = smul.addr %s3710, 2
          %s3712 = smul.addr %s3711, 8
          %s3713 = scalar_lea.vmem %s6, %s3712
        $region60: #{full_ele_att_pallas.1} parent=55 // pred_fallthru
          _
      $region56: #{full_ele_att_pallas.1} parent=5 // pred_fallthru
        _
    $region6: #{full_ele_att_pallas.1} parent=1 // loop_footer
      %s17 = sadd.s32 1, %s13
    $region7: #{full_ele_att_pallas.1} parent=1 // loop_footer_branch
      %12 = sbr.rel target = $region3
    $region8: #{full_ele_att_pallas.1} parent=1 // loop_exit
      _
    %3714 = vsyncpa [#allocation3], 1
    %s3715 = scalar_lea.sflag [#allocation3], 1
    %3716 = vsyncpa %s3715, 1

</llo_original>
